<compile_context>
chip_gen: v7x
topology: tpu7x:2x2x1
jax: 0.10.0
libtpu: 0.0.40
codegen_flags: <defaults>
</compile_context>

<pallas_src>
import functools

import jax
import jax.numpy as jnp
from jax.experimental import pallas as pl
from jax.experimental.pallas import tpu as pltpu

EPS = 1e-5


def _conv3x3_reflect(x, w_ref):
    """3x3 'same' conv with reflect(1) padding as 3 MXU matmuls (K = 3*C).

    x: (H, W, C) in the MXU operand dtype.
    w_ref: Ref of shape (3, 3*Cin, Cout), dy-major, dx-major over Cin,
           same dtype as x.
    Returns (H*W, Cout) float32 (MXU accumulates in f32).

    W is the sublane axis, C the lane axis.  The three dx (column) shifts are
    built once and concatenated along the lane axis into a single (H+2, W, 3C)
    slab; the dy shifts are then leading-dim slices of the flattened slab
    (free), so each conv issues only 3 matmuls and 2 f32 accumulate adds.
    """
    H, W, C = x.shape
    # Reflect-pad rows (leading dim -> cheap): rows [1, 0..H-1, H-2].
    xh = jnp.concatenate([x[1:2], x, x[H - 2:H - 1]], axis=0)            # (H+2, W, C)
    # dx-shifted column slabs of the (virtually) reflect-padded image,
    # concatenated on the lane axis in [dx=0, dx=1, dx=2] order.
    left = jnp.concatenate([xh[:, 1:2], xh[:, :W - 1]], axis=1)          # dx = 0
    right = jnp.concatenate([xh[:, 1:], xh[:, W - 2:W - 1]], axis=1)     # dx = 2
    slab = jnp.concatenate([left, xh, right], axis=-1)                   # (H+2, W, 3C)
    # (H+2, W, 3C) -> ((H+2)*W, 3C); a layout no-op when W % 8 == 0.
    slab = slab.reshape((H + 2) * W, 3 * C)

    acc = jnp.dot(slab[0:H * W], w_ref[0], preferred_element_type=jnp.float32)
    for dy in range(1, 3):
        acc = acc + jnp.dot(slab[dy * W: dy * W + H * W], w_ref[dy],
                            preferred_element_type=jnp.float32)
    return acc                                                           # (H*W, Cout) f32


def _instance_norm(y, inv_n):
    """InstanceNorm2d(affine=False) for one image: per-channel stats over rows.

    y: (H*W, C) float32.  Two-pass (mean, then centered sum of squares) for
    numerical robustness; biased variance, eps=1e-5 (matches PyTorch).
    """
    mean = jnp.sum(y, axis=0, keepdims=True) * inv_n
    centered = y - mean
    var = jnp.sum(centered * centered, axis=0, keepdims=True) * inv_n
    return centered * jax.lax.rsqrt(var + EPS)


def res_block_kernel(x_ref, w1_ref, w2_ref, o_ref):
    # x_ref / o_ref: (H, W, C) -- one image (batch dim squeezed by BlockSpec).
    H, W, C = x_ref.shape
    n = H * W
    inv_n = 1.0 / n
    mxu_dtype = w1_ref.dtype

    x = x_ref[...]                                            # single load of the block

    # conv1 -> InstanceNorm -> ReLU.  (Conv bias omitted: exactly cancelled by
    # the affine=False InstanceNorm mean subtraction that follows.)
    c1 = _conv3x3_reflect(x.astype(mxu_dtype), w1_ref)        # (H*W, C) f32
    y = jnp.maximum(_instance_norm(c1, inv_n), 0.0)

    # conv2 -> InstanceNorm -> residual add -> final ReLU, all from VMEM.
    c2 = _conv3x3_reflect(y.reshape(H, W, C).astype(mxu_dtype), w2_ref)
    z = _instance_norm(c2, inv_n)
    out = jnp.maximum(x.astype(jnp.float32).reshape(n, C) + z, 0.0)
    o_ref[...] = out.reshape(H, W, C).astype(o_ref.dtype)


# TODO(synk): for production spatial sizes whose per-image footprint exceeds
# v7x's 64 MiB VMEM, add an H-tiled grid (grid=(B, H//TH)) with a 1-row halo
# and accumulated InstanceNorm statistics (stats pass + normalize pass, sums
# carried in scratch and finalized with pl.when) instead of whole-image blocks.
def res_block(x_nchw, w1, b1, w2, b2, *, mxu_dtype=None):
    """x_nchw: (B, C, H, W). w*: (Cout, Cin, 3, 3) PyTorch layout. b*: (C,).

    mxu_dtype: dtype of the conv matmul operands (accumulation is always f32).
    Defaults to bfloat16 when the input is float32 (native MXU dtype on
    v5e/v6e/v7x); pass jnp.float32 explicitly for bit-tighter results.
    """
    B, C, H, W = x_nchw.shape
    assert H >= 2 and W >= 2, "reflect(1) padding needs H >= 2 and W >= 2"
    del b1, b2  # exactly cancelled by InstanceNorm2d(affine=False); dead IO/compute.

    in_dt = jnp.dtype(x_nchw.dtype)
    if mxu_dtype is None:
        dt = jnp.dtype(jnp.bfloat16) if in_dt == jnp.dtype(jnp.float32) else in_dt
    else:
        dt = jnp.dtype(mxu_dtype)

    x = jnp.transpose(x_nchw, (0, 2, 3, 1))                   # NCHW -> NHWC (C on lanes)
    # Fold the 3 dx taps into the contraction: (Cout,Cin,3,3) -> (3, 3*Cin, Cout),
    # dy-major / dx-major over Cin, matching the lane-concatenated slab.
    w1k = jnp.transpose(w1, (2, 3, 1, 0)).reshape(3, 3 * C, C).astype(dt)
    w2k = jnp.transpose(w2, (2, 3, 1, 0)).reshape(3, 3 * C, C).astype(dt)

    # Per-grid-step live set (pipeline double buffers + in-kernel temps).
    n = H * W
    npad = (H + 2) * W
    per_step = (
        4 * n * C * in_dt.itemsize           # double-buffered input + output blocks
        + 2 * n * C * 4                      # f32 residual copy of x + final out temp
        + 3 * n * C * 4                      # f32 conv accumulator / IN temps / y
        + 4 * npad * C * dt.itemsize         # row-padded image + lane-concatenated 3C slab
        + 2 * n * C * dt.itemsize            # MXU-dtype copies of x and y
        + 2 * 2 * 9 * C * C * dt.itemsize    # both folded weight tensors (double-buffered)
    )
    # Generation-aware cap: ~85% of physical VMEM (v5e/v6e: 128 MiB -> ~108 MiB,
    # v7x: 64 MiB per core -> ~54 MiB, leaving headroom for Mosaic scratch).
    try:
        phys_vmem = int(getattr(pltpu.get_tpu_info(), "vmem_capacity_bytes",
                                64 * 2**20))
    except Exception:
        phys_vmem = 64 * 2**20               # conservative (v7x per-core) fallback
    cap = int(0.85 * phys_vmem)
    vmem_limit = int(min(cap, max(32 * 2**20, int(1.25 * per_step))))

    cost = pl.CostEstimate(
        flops=int(4 * 9 * B * n * C * C),                      # 2 convs, 2 flops/MAC, 9 taps
        transcendentals=int(2 * B * C),                        # per-channel rsqrt, 2 INs
        bytes_accessed=int(2 * B * n * C * in_dt.itemsize
                           + 2 * 9 * C * C * dt.itemsize),
    )

    grid_spec = pltpu.PrefetchScalarGridSpec(
        num_scalar_prefetch=0,
        grid=(B,),   # NOTE: keep per-chip B >= 2 (ideally even) on v7x for both TCs.
        in_specs=[
            pl.BlockSpec((None, H, W, C), lambda b: (b, 0, 0, 0)),
            pl.BlockSpec((3, 3 * C, C), lambda b: (0, 0, 0)),
            pl.BlockSpec((3, 3 * C, C), lambda b: (0, 0, 0)),
        ],
        out_specs=pl.BlockSpec((None, H, W, C), lambda b: (b, 0, 0, 0)),
    )

    out = pl.pallas_call(
        res_block_kernel,
        out_shape=jax.ShapeDtypeStruct((B, H, W, C), x.dtype),
        grid_spec=grid_spec,
        compiler_params=pltpu.CompilerParams(
            dimension_semantics=("parallel",),
            vmem_limit_bytes=vmem_limit,
        ),
        cost_estimate=cost,
    )(x, w1k, w2k)

    return jnp.transpose(out, (0, 3, 1, 2))                   # NHWC -> NCHW


def res_block_ref(x_nchw, w1, b1, w2, b2):
    """Plain-JAX reference (biases included -- they cancel under IN anyway)."""
    def conv(x, w, b):
        xp = jnp.pad(x, ((0, 0), (0, 0), (1, 1), (1, 1)), mode="reflect")
        y = jax.lax.conv_general_dilated(
            xp, w, (1, 1), "VALID",
            dimension_numbers=("NCHW", "OIHW", "NCHW"))
        return y + b[None, :, None, None]

    def inorm(y):
        m = jnp.mean(y, axis=(2, 3), keepdims=True)
        v = jnp.mean((y - m) ** 2, axis=(2, 3), keepdims=True)
        return (y - m) / jnp.sqrt(v + EPS)

    y = jnp.maximum(inorm(conv(x_nchw, w1, b1)), 0.0)
    z = inorm(conv(y, w2, b2))
    return jnp.maximum(x_nchw + z, 0.0)


if __name__ == "__main__":
    # TODO(synk): use_dropout path (nn.Dropout(0.5)) not implemented; this
    # instance is built with use_dropout=False, matching the chosen config.
    B, C, H, W = 2, 4, 16, 16
    key = jax.random.PRNGKey(0)
    k1, k2, k3, k4, k5 = jax.random.split(key, 5)

    x = jax.random.normal(k1, (B, C, H, W), jnp.float32)

    # Deterministic PyTorch-Conv2d-style init: U(-1/sqrt(fan_in), 1/sqrt(fan_in)).
    fan_in = C * 3 * 3
    bound = 1.0 / (fan_in ** 0.5)
    w1 = jax.random.uniform(k2, (C, C, 3, 3), jnp.float32, -bound, bound)
    b1 = jax.random.uniform(k3, (C,), jnp.float32, -bound, bound)
    w2 = jax.random.uniform(k4, (C, C, 3, 3), jnp.float32, -bound, bound)
    b2 = jax.random.uniform(k5, (C,), jnp.float32, -bound, bound)

    ref = res_block_ref(x, w1, b1, w2, b2)

    # 1) Exact-algorithm check: f32 MXU operands, tight tolerance.
    out_f32 = jax.jit(functools.partial(res_block, mxu_dtype=jnp.float32))(
        x, w1, b1, w2, b2)
    out_f32 = jax.block_until_ready(out_f32)
    assert out_f32.shape == (B, C, H, W), out_f32.shape
    err32 = float(jnp.max(jnp.abs(out_f32 - ref)))
    assert jnp.allclose(out_f32, ref, rtol=1e-4, atol=1e-4), f"f32 max_err={err32}"

    # 2) Production default: bf16 MXU operands (f32 accumulation / IN / residual).
    out_bf16 = jax.block_until_ready(jax.jit(res_block)(x, w1, b1, w2, b2))
    errbf = float(jnp.max(jnp.abs(out_bf16 - ref)))
    assert jnp.allclose(out_bf16, ref, rtol=5e-2, atol=5e-2), f"bf16 max_err={errbf}"

    print("KERNEL_OK")
</pallas_src>

<mosaic_0001>
module attributes {stable_mosaic.version = 11 : i64} {
  func.func @res_block_kernel(%arg0: i32, %arg1: memref<1x16x16x4xf32, #tpu.memory_space<vmem>>, %arg2: memref<3x12x4xf32, #tpu.memory_space<vmem>>, %arg3: memref<3x12x4xf32, #tpu.memory_space<vmem>>, %arg4: memref<1x16x16x4xf32, #tpu.memory_space<vmem>>) attributes {dimension_semantics = [#tpu.dimension_semantics<parallel>], iteration_bounds = array<i64: 2>, scalar_prefetch = 0 : i64, scratch_operands = 0 : i64, tpu.core_type = #tpu.core_type<tc>, window_params = [{transform_indices = @transform_0, window_bounds = array<i64: 1, 16, 16, 4>}, {pipeline_mode = #tpu.pipeline_mode<synchronous>, transform_indices = @transform_1, window_bounds = array<i64: 3, 12, 4>}, {pipeline_mode = #tpu.pipeline_mode<synchronous>, transform_indices = @transform_2, window_bounds = array<i64: 3, 12, 4>}, {transform_indices = @transform_3, window_bounds = array<i64: 1, 16, 16, 4>}]} {
    %c0 = arith.constant 0 : index
    %c0_0 = arith.constant 0 : index
    %c0_1 = arith.constant 0 : index
    %c0_2 = arith.constant 0 : index
    %0 = vector.load %arg1[%c0, %c0_0, %c0_1, %c0_2] : memref<1x16x16x4xf32, #tpu.memory_space<vmem>>, vector<1x16x16x4xf32>
    %1 = vector.shape_cast %0 : vector<1x16x16x4xf32> to vector<16x16x4xf32>
    %2 = vector.extract_strided_slice %1 {offsets = [1, 0, 0], sizes = [1, 16, 4], strides = [1, 1, 1]} : vector<16x16x4xf32> to vector<1x16x4xf32>
    %3 = vector.extract_strided_slice %1 {offsets = [14, 0, 0], sizes = [1, 16, 4], strides = [1, 1, 1]} : vector<16x16x4xf32> to vector<1x16x4xf32>
    %4 = tpu.concatenate %2, %1, %3 in 0 : vector<1x16x4xf32>, vector<16x16x4xf32>, vector<1x16x4xf32> -> vector<18x16x4xf32>
    %5 = vector.extract_strided_slice %4 {offsets = [0, 1, 0], sizes = [18, 1, 4], strides = [1, 1, 1]} : vector<18x16x4xf32> to vector<18x1x4xf32>
    %6 = vector.extract_strided_slice %4 {offsets = [0, 0, 0], sizes = [18, 15, 4], strides = [1, 1, 1]} : vector<18x16x4xf32> to vector<18x15x4xf32>
    %7 = tpu.concatenate %5, %6 in 1 : vector<18x1x4xf32>, vector<18x15x4xf32> -> vector<18x16x4xf32>
    %8 = vector.extract_strided_slice %4 {offsets = [0, 1, 0], sizes = [18, 15, 4], strides = [1, 1, 1]} : vector<18x16x4xf32> to vector<18x15x4xf32>
    %9 = vector.extract_strided_slice %4 {offsets = [0, 14, 0], sizes = [18, 1, 4], strides = [1, 1, 1]} : vector<18x16x4xf32> to vector<18x1x4xf32>
    %10 = tpu.concatenate %8, %9 in 1 : vector<18x15x4xf32>, vector<18x1x4xf32> -> vector<18x16x4xf32>
    %11 = tpu.concatenate %7, %4, %10 in 2 : vector<18x16x4xf32>, vector<18x16x4xf32>, vector<18x16x4xf32> -> vector<18x16x12xf32>
    %12 = vector.shape_cast %11 : vector<18x16x12xf32> to vector<288x12xf32>
    %13 = vector.extract_strided_slice %12 {offsets = [0, 0], sizes = [256, 12], strides = [1, 1]} : vector<288x12xf32> to vector<256x12xf32>
    %c0_3 = arith.constant 0 : index
    %c0_4 = arith.constant 0 : index
    %c0_5 = arith.constant 0 : index
    %14 = vector.load %arg2[%c0_3, %c0_4, %c0_5] : memref<3x12x4xf32, #tpu.memory_space<vmem>>, vector<1x12x4xf32>
    %15 = vector.shape_cast %14 : vector<1x12x4xf32> to vector<12x4xf32>
    %cst = arith.constant dense<0.000000e+00> : vector<256x4xf32>
    %16 = tpu.matmul %13, %15, %cst {dimension_numbers = #tpu.dot_dimension_numbers<[1], [0], [0], [1], [0, 0, 1, 1], [], []>} : vector<256x12xf32>, vector<12x4xf32>, vector<256x4xf32> -> vector<256x4xf32>
    %17 = vector.extract_strided_slice %12 {offsets = [16, 0], sizes = [256, 12], strides = [1, 1]} : vector<288x12xf32> to vector<256x12xf32>
    %c1 = arith.constant 1 : index
    %c0_6 = arith.constant 0 : index
    %c0_7 = arith.constant 0 : index
    %18 = vector.load %arg2[%c1, %c0_6, %c0_7] : memref<3x12x4xf32, #tpu.memory_space<vmem>>, vector<1x12x4xf32>
    %19 = vector.shape_cast %18 : vector<1x12x4xf32> to vector<12x4xf32>
    %cst_8 = arith.constant dense<0.000000e+00> : vector<256x4xf32>
    %20 = tpu.matmul %17, %19, %cst_8 {dimension_numbers = #tpu.dot_dimension_numbers<[1], [0], [0], [1], [0, 0, 1, 1], [], []>} : vector<256x12xf32>, vector<12x4xf32>, vector<256x4xf32> -> vector<256x4xf32>
    %21 = arith.addf %16, %20 : vector<256x4xf32>
    %22 = vector.extract_strided_slice %12 {offsets = [32, 0], sizes = [256, 12], strides = [1, 1]} : vector<288x12xf32> to vector<256x12xf32>
    %c2 = arith.constant 2 : index
    %c0_9 = arith.constant 0 : index
    %c0_10 = arith.constant 0 : index
    %23 = vector.load %arg2[%c2, %c0_9, %c0_10] : memref<3x12x4xf32, #tpu.memory_space<vmem>>, vector<1x12x4xf32>
    %24 = vector.shape_cast %23 : vector<1x12x4xf32> to vector<12x4xf32>
    %cst_11 = arith.constant dense<0.000000e+00> : vector<256x4xf32>
    %25 = tpu.matmul %22, %24, %cst_11 {dimension_numbers = #tpu.dot_dimension_numbers<[1], [0], [0], [1], [0, 0, 1, 1], [], []>} : vector<256x12xf32>, vector<12x4xf32>, vector<256x4xf32> -> vector<256x4xf32>
    %26 = arith.addf %21, %25 : vector<256x4xf32>
    %cst_12 = arith.constant dense<0.000000e+00> : vector<4xf32>
    %27 = vector.multi_reduction <add>, %26, %cst_12 [0] : vector<256x4xf32> to vector<4xf32>
    %28 = vector.shape_cast %27 : vector<4xf32> to vector<1x4xf32>
    %cst_13 = arith.constant 3.906250e-03 : f32
    %29 = vector.broadcast %cst_13 : f32 to vector<1x4xf32>
    %30 = arith.mulf %28, %29 : vector<1x4xf32>
    %31 = vector.broadcast %30 : vector<1x4xf32> to vector<256x4xf32>
    %32 = arith.subf %26, %31 : vector<256x4xf32>
    %33 = arith.mulf %32, %32 : vector<256x4xf32>
    %cst_14 = arith.constant dense<0.000000e+00> : vector<4xf32>
    %34 = vector.multi_reduction <add>, %33, %cst_14 [0] : vector<256x4xf32> to vector<4xf32>
    %35 = vector.shape_cast %34 : vector<4xf32> to vector<1x4xf32>
    %cst_15 = arith.constant 3.906250e-03 : f32
    %36 = vector.broadcast %cst_15 : f32 to vector<1x4xf32>
    %37 = arith.mulf %35, %36 : vector<1x4xf32>
    %cst_16 = arith.constant 9.99999974E-6 : f32
    %38 = vector.broadcast %cst_16 : f32 to vector<1x4xf32>
    %39 = arith.addf %37, %38 : vector<1x4xf32>
    %40 = math.rsqrt %39 : vector<1x4xf32>
    %41 = vector.broadcast %40 : vector<1x4xf32> to vector<256x4xf32>
    %42 = arith.mulf %32, %41 : vector<256x4xf32>
    %cst_17 = arith.constant 0.000000e+00 : f32
    %43 = vector.broadcast %cst_17 : f32 to vector<256x4xf32>
    %44 = arith.maximumf %42, %43 : vector<256x4xf32>
    %45 = vector.shape_cast %44 : vector<256x4xf32> to vector<16x16x4xf32>
    %46 = vector.extract_strided_slice %45 {offsets = [1, 0, 0], sizes = [1, 16, 4], strides = [1, 1, 1]} : vector<16x16x4xf32> to vector<1x16x4xf32>
    %47 = vector.extract_strided_slice %45 {offsets = [14, 0, 0], sizes = [1, 16, 4], strides = [1, 1, 1]} : vector<16x16x4xf32> to vector<1x16x4xf32>
    %48 = tpu.concatenate %46, %45, %47 in 0 : vector<1x16x4xf32>, vector<16x16x4xf32>, vector<1x16x4xf32> -> vector<18x16x4xf32>
    %49 = vector.extract_strided_slice %48 {offsets = [0, 1, 0], sizes = [18, 1, 4], strides = [1, 1, 1]} : vector<18x16x4xf32> to vector<18x1x4xf32>
    %50 = vector.extract_strided_slice %48 {offsets = [0, 0, 0], sizes = [18, 15, 4], strides = [1, 1, 1]} : vector<18x16x4xf32> to vector<18x15x4xf32>
    %51 = tpu.concatenate %49, %50 in 1 : vector<18x1x4xf32>, vector<18x15x4xf32> -> vector<18x16x4xf32>
    %52 = vector.extract_strided_slice %48 {offsets = [0, 1, 0], sizes = [18, 15, 4], strides = [1, 1, 1]} : vector<18x16x4xf32> to vector<18x15x4xf32>
    %53 = vector.extract_strided_slice %48 {offsets = [0, 14, 0], sizes = [18, 1, 4], strides = [1, 1, 1]} : vector<18x16x4xf32> to vector<18x1x4xf32>
    %54 = tpu.concatenate %52, %53 in 1 : vector<18x15x4xf32>, vector<18x1x4xf32> -> vector<18x16x4xf32>
    %55 = tpu.concatenate %51, %48, %54 in 2 : vector<18x16x4xf32>, vector<18x16x4xf32>, vector<18x16x4xf32> -> vector<18x16x12xf32>
    %56 = vector.shape_cast %55 : vector<18x16x12xf32> to vector<288x12xf32>
    %57 = vector.extract_strided_slice %56 {offsets = [0, 0], sizes = [256, 12], strides = [1, 1]} : vector<288x12xf32> to vector<256x12xf32>
    %c0_18 = arith.constant 0 : index
    %c0_19 = arith.constant 0 : index
    %c0_20 = arith.constant 0 : index
    %58 = vector.load %arg3[%c0_18, %c0_19, %c0_20] : memref<3x12x4xf32, #tpu.memory_space<vmem>>, vector<1x12x4xf32>
    %59 = vector.shape_cast %58 : vector<1x12x4xf32> to vector<12x4xf32>
    %cst_21 = arith.constant dense<0.000000e+00> : vector<256x4xf32>
    %60 = tpu.matmul %57, %59, %cst_21 {dimension_numbers = #tpu.dot_dimension_numbers<[1], [0], [0], [1], [0, 0, 1, 1], [], []>} : vector<256x12xf32>, vector<12x4xf32>, vector<256x4xf32> -> vector<256x4xf32>
    %61 = vector.extract_strided_slice %56 {offsets = [16, 0], sizes = [256, 12], strides = [1, 1]} : vector<288x12xf32> to vector<256x12xf32>
    %c1_22 = arith.constant 1 : index
    %c0_23 = arith.constant 0 : index
    %c0_24 = arith.constant 0 : index
    %62 = vector.load %arg3[%c1_22, %c0_23, %c0_24] : memref<3x12x4xf32, #tpu.memory_space<vmem>>, vector<1x12x4xf32>
    %63 = vector.shape_cast %62 : vector<1x12x4xf32> to vector<12x4xf32>
    %cst_25 = arith.constant dense<0.000000e+00> : vector<256x4xf32>
    %64 = tpu.matmul %61, %63, %cst_25 {dimension_numbers = #tpu.dot_dimension_numbers<[1], [0], [0], [1], [0, 0, 1, 1], [], []>} : vector<256x12xf32>, vector<12x4xf32>, vector<256x4xf32> -> vector<256x4xf32>
    %65 = arith.addf %60, %64 : vector<256x4xf32>
    %66 = vector.extract_strided_slice %56 {offsets = [32, 0], sizes = [256, 12], strides = [1, 1]} : vector<288x12xf32> to vector<256x12xf32>
    %c2_26 = arith.constant 2 : index
    %c0_27 = arith.constant 0 : index
    %c0_28 = arith.constant 0 : index
    %67 = vector.load %arg3[%c2_26, %c0_27, %c0_28] : memref<3x12x4xf32, #tpu.memory_space<vmem>>, vector<1x12x4xf32>
    %68 = vector.shape_cast %67 : vector<1x12x4xf32> to vector<12x4xf32>
    %cst_29 = arith.constant dense<0.000000e+00> : vector<256x4xf32>
    %69 = tpu.matmul %66, %68, %cst_29 {dimension_numbers = #tpu.dot_dimension_numbers<[1], [0], [0], [1], [0, 0, 1, 1], [], []>} : vector<256x12xf32>, vector<12x4xf32>, vector<256x4xf32> -> vector<256x4xf32>
    %70 = arith.addf %65, %69 : vector<256x4xf32>
    %cst_30 = arith.constant dense<0.000000e+00> : vector<4xf32>
    %71 = vector.multi_reduction <add>, %70, %cst_30 [0] : vector<256x4xf32> to vector<4xf32>
    %72 = vector.shape_cast %71 : vector<4xf32> to vector<1x4xf32>
    %cst_31 = arith.constant 3.906250e-03 : f32
    %73 = vector.broadcast %cst_31 : f32 to vector<1x4xf32>
    %74 = arith.mulf %72, %73 : vector<1x4xf32>
    %75 = vector.broadcast %74 : vector<1x4xf32> to vector<256x4xf32>
    %76 = arith.subf %70, %75 : vector<256x4xf32>
    %77 = arith.mulf %76, %76 : vector<256x4xf32>
    %cst_32 = arith.constant dense<0.000000e+00> : vector<4xf32>
    %78 = vector.multi_reduction <add>, %77, %cst_32 [0] : vector<256x4xf32> to vector<4xf32>
    %79 = vector.shape_cast %78 : vector<4xf32> to vector<1x4xf32>
    %cst_33 = arith.constant 3.906250e-03 : f32
    %80 = vector.broadcast %cst_33 : f32 to vector<1x4xf32>
    %81 = arith.mulf %79, %80 : vector<1x4xf32>
    %cst_34 = arith.constant 9.99999974E-6 : f32
    %82 = vector.broadcast %cst_34 : f32 to vector<1x4xf32>
    %83 = arith.addf %81, %82 : vector<1x4xf32>
    %84 = math.rsqrt %83 : vector<1x4xf32>
    %85 = vector.broadcast %84 : vector<1x4xf32> to vector<256x4xf32>
    %86 = arith.mulf %76, %85 : vector<256x4xf32>
    %87 = vector.shape_cast %1 : vector<16x16x4xf32> to vector<256x4xf32>
    %88 = arith.addf %87, %86 : vector<256x4xf32>
    %cst_35 = arith.constant 0.000000e+00 : f32
    %89 = vector.broadcast %cst_35 : f32 to vector<256x4xf32>
    %90 = arith.maximumf %88, %89 : vector<256x4xf32>
    %91 = vector.shape_cast %90 : vector<256x4xf32> to vector<16x16x4xf32>
    %c0_36 = arith.constant 0 : index
    %c0_37 = arith.constant 0 : index
    %c0_38 = arith.constant 0 : index
    %c0_39 = arith.constant 0 : index
    %92 = vector.load %arg4[%c0_36, %c0_37, %c0_38, %c0_39] : memref<1x16x16x4xf32, #tpu.memory_space<vmem>>, vector<1x16x16x4xf32>
    %93 = vector.shape_cast %92 : vector<1x16x16x4xf32> to vector<16x16x4xf32>
    %94 = vector.shape_cast %91 : vector<16x16x4xf32> to vector<1x16x16x4xf32>
    tpu.vector_store %arg4[%c0_36, %c0_37, %c0_38, %c0_39], %94 {strides = array<i32>} : memref<1x16x16x4xf32, #tpu.memory_space<vmem>>, vector<1x16x16x4xf32>,
    return
  }
  func.func @transform_0(%arg0: i32) -> (i32, i32, i32, i32) {
    %c0_i32 = arith.constant 0 : i32
    %c0_i32_0 = arith.constant 0 : i32
    %c0_i32_1 = arith.constant 0 : i32
    %c0_i32_2 = arith.constant 0 : i32
    return %arg0, %c0_i32, %c0_i32_0, %c0_i32_1 : i32, i32, i32, i32
  }
  func.func @transform_1(%arg0: i32) -> (i32, i32, i32) {
    %c0_i32 = arith.constant 0 : i32
    %c0_i32_0 = arith.constant 0 : i32
    %c0_i32_1 = arith.constant 0 : i32
    %c0_i32_2 = arith.constant 0 : i32
    return %c0_i32, %c0_i32_0, %c0_i32_1 : i32, i32, i32
  }
  func.func @transform_2(%arg0: i32) -> (i32, i32, i32) {
    %c0_i32 = arith.constant 0 : i32
    %c0_i32_0 = arith.constant 0 : i32
    %c0_i32_1 = arith.constant 0 : i32
    %c0_i32_2 = arith.constant 0 : i32
    return %c0_i32, %c0_i32_0, %c0_i32_1 : i32, i32, i32
  }
  func.func @transform_3(%arg0: i32) -> (i32, i32, i32, i32) {
    %c0_i32 = arith.constant 0 : i32
    %c0_i32_0 = arith.constant 0 : i32
    %c0_i32_1 = arith.constant 0 : i32
    %c0_i32_2 = arith.constant 0 : i32
    return %arg0, %c0_i32, %c0_i32_0, %c0_i32_1 : i32, i32, i32, i32
  }
}

</mosaic_0001>

<llo_original>
// kernel: res_block.1
$region0: #{res_block.1}
  #allocation0 [shape = 'u32[]', space=smem, size = 0x4, offset = 0x4, fixed_abs, tag = 'smem constant byte address 0x4 - core index']
  #allocation1 [shape = 'u32[144,128]{1,0:T(1,128)}', space=vmem, size = 0x12000, scoped, tag = 'internal scratch']
  %s0 = inlined_call_operand.vmem [shape: f32[2,16,16,4], index: 0, kind: input, shape index: {}]
  %s1 = inlined_call_operand.vmem [shape: f32[3,12,4], index: 1, kind: input, shape index: {}]
  %s2 = inlined_call_operand.vmem [shape: f32[3,12,4], index: 2, kind: input, shape index: {}]
  %s3 = inlined_call_operand.vmem [shape: f32[2,16,16,4], index: 3, kind: output, shape index: {}]
  %s4 = sld [smem:[#allocation0]]
  $region45: #{res_block.1} parent=0
    _
  %s6 = ssub.s32 1, %s4
  %s7 = scalar_select 0, %s6, %s4
  loop: start=0, step=1, limit=4
  $region2: #{res_block.1} parent=0 // loop_pre_header
    _
  $region3: #{res_block.1} parent=0 // loop_header
    %s9 = sphi 0, %s13
    %p10 = scmp.ge.s32.totalorder %s9, 4
    %s19 = sphi 0, %s21
    %s22 = sphi 0, %s19
    %s23 = sphi 0, %s22
    %s39 = sphi 0, %s23
    %s43 = sphi 0, %s43
    %s45 = sphi 0, %s43
    %s46 = sphi 0, %s45
    %s60 = sphi 0, %s46
    %s64 = sphi 0, %s64
    %s66 = sphi 0, %s64
    %s67 = sphi 0, %s66
    %s81 = sphi 0, %s67
    %s87 = sphi 0, %s89
    %s90 = sphi 0, %s87
    %s91 = sphi 0, %s90
    %s107 = sphi 0, %s91
  $region4: #{res_block.1} parent=0 // loop_header_branch
    %12 = sbr.rel (%p10) target = $region8
  $region5: #{res_block.1} parent=0 // loop_body
    %s14 = ssub.s32 %s9, 1
    %s15 = ssub.s32 %s9, 2
    %s16 = sadd.s32 %s9, 1
    %s17 = ssub.s32 %s9, %s16
    %p18 = scmp.eq.s32.totalorder %s17, 0
    %s20 = sadd.s32 %s19, 1
    %s21 = scalar_select %p18, %s19, %s20
    %p24 = pneg %p18
    %p25 = scmp.eq.s32.totalorder %s9, 1
    %p26 = por %p24, %p25
    %p27 = scmp.ne.s32.totalorder %s19, %s22
    %p28 = scmp.eq.s32.totalorder %s9, 0
    %p29 = por %p27, %p28
    %p30 = scmp.ne.s32.totalorder %s19, %s22
    %p31 = scmp.eq.s32.totalorder %s14, 1
    %p32 = por %p30, %p31
    %p33 = scmp.ne.s32.totalorder %s22, %s23
    %p34 = scmp.eq.s32.totalorder %s14, 0
    %p35 = por %p33, %p34
    %p36 = scmp.ne.s32.totalorder %s22, %s23
    %p37 = scmp.eq.s32.totalorder %s15, 1
    %p38 = por %p36, %p37
    %p40 = scmp.ne.s32.totalorder %s23, %s39
    %p41 = scmp.eq.s32.totalorder %s15, 0
    %p42 = por %p40, %p41
    %s44 = sadd.s32 %s43, 1
    %p47 = scmp.eq.s32.totalorder %s9, 1
    %p48 = scmp.ne.s32.totalorder %s43, %s45
    %p49 = scmp.eq.s32.totalorder %s9, 0
    %p50 = por %p48, %p49
    %p51 = scmp.ne.s32.totalorder %s43, %s45
    %p52 = scmp.eq.s32.totalorder %s14, 1
    %p53 = por %p51, %p52
    %p54 = scmp.ne.s32.totalorder %s45, %s46
    %p55 = scmp.eq.s32.totalorder %s14, 0
    %p56 = por %p54, %p55
    %p57 = scmp.ne.s32.totalorder %s45, %s46
    %p58 = scmp.eq.s32.totalorder %s15, 1
    %p59 = por %p57, %p58
    %p61 = scmp.ne.s32.totalorder %s46, %s60
    %p62 = scmp.eq.s32.totalorder %s15, 0
    %p63 = por %p61, %p62
    %s65 = sadd.s32 %s64, 1
    %p68 = scmp.eq.s32.totalorder %s9, 1
    %p69 = scmp.ne.s32.totalorder %s64, %s66
    %p70 = scmp.eq.s32.totalorder %s9, 0
    %p71 = por %p69, %p70
    %p72 = scmp.ne.s32.totalorder %s64, %s66
    %p73 = scmp.eq.s32.totalorder %s14, 1
    %p74 = por %p72, %p73
    %p75 = scmp.ne.s32.totalorder %s66, %s67
    %p76 = scmp.eq.s32.totalorder %s14, 0
    %p77 = por %p75, %p76
    %p78 = scmp.ne.s32.totalorder %s66, %s67
    %p79 = scmp.eq.s32.totalorder %s15, 1
    %p80 = por %p78, %p79
    %p82 = scmp.ne.s32.totalorder %s67, %s81
    %p83 = scmp.eq.s32.totalorder %s15, 0
    %p84 = por %p82, %p83
    %s85 = ssub.s32 %s9, %s16
    %p86 = scmp.eq.s32.totalorder %s85, 0
    %s88 = sadd.s32 %s87, 1
    %s89 = scalar_select %p86, %s87, %s88
    %p92 = pneg %p86
    %p93 = scmp.eq.s32.totalorder %s9, 1
    %p94 = por %p92, %p93
    %p95 = scmp.ne.s32.totalorder %s87, %s90
    %p96 = scmp.eq.s32.totalorder %s9, 0
    %p97 = por %p95, %p96
    %p98 = scmp.ne.s32.totalorder %s87, %s90
    %p99 = scmp.eq.s32.totalorder %s14, 1
    %p100 = por %p98, %p99
    %p101 = scmp.ne.s32.totalorder %s90, %s91
    %p102 = scmp.eq.s32.totalorder %s14, 0
    %p103 = por %p101, %p102
    %p104 = scmp.ne.s32.totalorder %s90, %s91
    %p105 = scmp.eq.s32.totalorder %s15, 1
    %p106 = por %p104, %p105
    %p108 = scmp.ne.s32.totalorder %s91, %s107
    %p109 = scmp.eq.s32.totalorder %s15, 0
    %p110 = por %p108, %p109
    %p111 = scmp.le.s32.totalorder 1, %s9
    %p112 = scmp.lt.s32.totalorder %s9, 3
    %p113 = pnand %p111, %p112
    %p114 = pneg %p113
    // Predicated region
    $region9: #{res_block.1} parent=5 // pred_check
      _
    $region10: #{res_block.1} parent=5 // pred_check_branch
      %116 = sbr.rel (%p113) target = $region12
    $region11: #{res_block.1} parent=5 // pred_region
      %s117 = ssub.s32 %s9, 1
      // Predicated region
      $region13: #{res_block.1} parent=11 // pred_check
        %p118 = pneg %p56
      $region14: #{res_block.1} parent=11 // pred_check_branch
        %120 = sbr.rel (%p118) target = $region16
      $region15: #{res_block.1} parent=11 // pred_region
        _
      $region16: #{res_block.1} parent=11 // pred_fallthru
        _
      // Predicated region
      $region17: #{res_block.1} parent=11 // pred_check
        %p121 = pneg %p77
      $region18: #{res_block.1} parent=11 // pred_check_branch
        %123 = sbr.rel (%p121) target = $region20
      $region19: #{res_block.1} parent=11 // pred_region
        _
      $region20: #{res_block.1} parent=11 // pred_fallthru
        _
    $region12: #{res_block.1} parent=5 // pred_fallthru
      _
    %p124 = scmp.lt.s32.totalorder %s9, 2
    // Predicated region
    $region21: #{res_block.1} parent=5 // pred_check
      %p125 = pneg %p124
    $region22: #{res_block.1} parent=5 // pred_check_branch
      %127 = sbr.rel (%p125) target = $region24
    $region23: #{res_block.1} parent=5 // pred_region
      // Predicated region
      $region25: #{res_block.1} parent=23 // pred_check
        %p128 = pneg %p29
      $region26: #{res_block.1} parent=23 // pred_check_branch
        %130 = sbr.rel (%p128) target = $region28
      $region27: #{res_block.1} parent=23 // pred_region
        %p131 = scmp.lt.s32.totalorder %s9, 1
        %s132 = scalar_select %p131, %s9, 1
        %s133 = smul.addr %s132, 32
        %s134 = smul.addr %s133, 8
        %s135 = scalar_lea.vmem %s0, %s134
      $region28: #{res_block.1} parent=23 // pred_fallthru
        _
    $region24: #{res_block.1} parent=5 // pred_fallthru
      _
    %p136 = scmp.le.s32.totalorder 1, %s9
    %p137 = scmp.lt.s32.totalorder %s9, 3
    %p138 = pnand %p136, %p137
    %p139 = pneg %p138
    // Predicated region
    $region29: #{res_block.1} parent=5 // pred_check
      _
    $region30: #{res_block.1} parent=5 // pred_check_branch
      %141 = sbr.rel (%p138) target = $region32
    $region31: #{res_block.1} parent=5 // pred_region
      %s142 = ssub.s32 %s9, 1
      %p143 = scmp.lt.s32.totalorder %s14, 1
      %s144 = scalar_select %p143, %s14, 1
      %s145 = smul.addr %s144, 32
      %s146 = smul.addr %s145, 8
      %s147 = scalar_lea.vmem %s0, %s146
      %p148 = pneg %p35
      %p149 = pneg %p32
      %p150 = pneg %p56
      %p151 = pneg %p53
      %p152 = pneg %p77
      %p153 = pneg %p74
      %p154 = pneg %p103
      %p155 = pneg %p100
      %p156 = scmp.lt.s32.totalorder %s14, 1
      %s157 = scalar_select %p156, %s14, 1
      %s158 = smul.addr %s157, 32
      %s159 = smul.addr %s158, 8
      %s160 = scalar_lea.vmem %s3, %s159
      %p161 = scmp.lt.s32.totalorder %s14, 1
      %s162 = scalar_select %p161, %s14, 1
      %s163 = smul.addr %s162, 32
      %s164 = smul.addr %s163, 8
      %s165 = scalar_lea.vmem %s0, %s164
      %p166 = scmp.lt.s32.totalorder %s14, 1
      %s167 = scalar_select %p166, %s14, 1
      %s168 = smul.addr %s167, 32
      %s169 = smul.addr %s168, 8
      %s170 = scalar_lea.vmem %s3, %s169
      %v171 = vld [vmem:[%s165] sm:$0xff]
      %v172 = vld [vmem:[%s165 + $0x8] sm:$0xff]
      %v173 = vld [vmem:[%s165 + $0x10] sm:$0xff]
      %v174 = vld [vmem:[%s165 + $0x18] sm:$0xff]
      %v175 = vld [vmem:[%s165 + $0x20] sm:$0xff]
      %v176 = vld [vmem:[%s165 + $0x28] sm:$0xff]
      %v177 = vld [vmem:[%s165 + $0x30] sm:$0xff]
      %v178 = vld [vmem:[%s165 + $0x38] sm:$0xff]
      %v179 = vld [vmem:[%s165 + $0x40] sm:$0xff]
      %v180 = vld [vmem:[%s165 + $0x48] sm:$0xff]
      %v181 = vld [vmem:[%s165 + $0x50] sm:$0xff]
      %v182 = vld [vmem:[%s165 + $0x58] sm:$0xff]
      %v183 = vld [vmem:[%s165 + $0x60] sm:$0xff]
      %v184 = vld [vmem:[%s165 + $0x68] sm:$0xff]
      %v185 = vld [vmem:[%s165 + $0x70] sm:$0xff]
      %v186 = vld [vmem:[%s165 + $0x78] sm:$0xff]
      %v187 = vld [vmem:[%s165 + $0x80] sm:$0xff]
      %v188 = vld [vmem:[%s165 + $0x88] sm:$0xff]
      %v189 = vld [vmem:[%s165 + $0x90] sm:$0xff]
      %v190 = vld [vmem:[%s165 + $0x98] sm:$0xff]
      %v191 = vld [vmem:[%s165 + $0xa0] sm:$0xff]
      %v192 = vld [vmem:[%s165 + $0xa8] sm:$0xff]
      %v193 = vld [vmem:[%s165 + $0xb0] sm:$0xff]
      %v194 = vld [vmem:[%s165 + $0xb8] sm:$0xff]
      %v195 = vld [vmem:[%s165 + $0xc0] sm:$0xff]
      %v196 = vld [vmem:[%s165 + $0xc8] sm:$0xff]
      %v197 = vld [vmem:[%s165 + $0xd0] sm:$0xff]
      %v198 = vld [vmem:[%s165 + $0xd8] sm:$0xff]
      %v199 = vld [vmem:[%s165 + $0xe0] sm:$0xff]
      %v200 = vld [vmem:[%s165 + $0xe8] sm:$0xff]
      %v201 = vld [vmem:[%s165 + $0xf0] sm:$0xff]
      %v202 = vld [vmem:[%s165 + $0xf8] sm:$0xff]
      %v219 = vrot.slane %v173, 1
      %v220 = vrot.slane %v171, 1
      %v221 = vrot.slane %v175, 1
      %v222 = vrot.slane %v177, 1
      %v223 = vrot.slane %v179, 1
      %v224 = vrot.slane %v181, 1
      %v225 = vrot.slane %v183, 1
      %v226 = vrot.slane %v185, 1
      %v227 = vrot.slane %v187, 1
      %v228 = vrot.slane %v189, 1
      %v229 = vrot.slane %v191, 1
      %v230 = vrot.slane %v193, 1
      %v231 = vrot.slane %v195, 1
      %v232 = vrot.slane %v197, 1
      %v233 = vrot.slane %v199, 1
      %v234 = vrot.slane %v201, 1
      %vm267 = vcmask 1040384
      %v268 = vrot.slane %v173, 7
      %v269 = vrot.slane %v174, 7
      %v270 = vsel %vm267, %v268, %v269
      %v271 = vrot.slane %v171, 7
      %v272 = vrot.slane %v172, 7
      %v273 = vsel %vm267, %v271, %v272
      %v274 = vrot.slane %v175, 7
      %v275 = vrot.slane %v176, 7
      %v276 = vsel %vm267, %v274, %v275
      %v277 = vrot.slane %v177, 7
      %v278 = vrot.slane %v178, 7
      %v279 = vsel %vm267, %v277, %v278
      %v280 = vrot.slane %v179, 7
      %v281 = vrot.slane %v180, 7
      %v282 = vsel %vm267, %v280, %v281
      %v283 = vrot.slane %v181, 7
      %v284 = vrot.slane %v182, 7
      %v285 = vsel %vm267, %v283, %v284
      %v286 = vrot.slane %v183, 7
      %v287 = vrot.slane %v184, 7
      %v288 = vsel %vm267, %v286, %v287
      %v289 = vrot.slane %v185, 7
      %v290 = vrot.slane %v186, 7
      %v291 = vsel %vm267, %v289, %v290
      %v292 = vrot.slane %v187, 7
      %v293 = vrot.slane %v188, 7
      %v294 = vsel %vm267, %v292, %v293
      %v295 = vrot.slane %v189, 7
      %v296 = vrot.slane %v190, 7
      %v297 = vsel %vm267, %v295, %v296
      %v298 = vrot.slane %v191, 7
      %v299 = vrot.slane %v192, 7
      %v300 = vsel %vm267, %v298, %v299
      %v301 = vrot.slane %v193, 7
      %v302 = vrot.slane %v194, 7
      %v303 = vsel %vm267, %v301, %v302
      %v304 = vrot.slane %v195, 7
      %v305 = vrot.slane %v196, 7
      %v306 = vsel %vm267, %v304, %v305
      %v307 = vrot.slane %v197, 7
      %v308 = vrot.slane %v198, 7
      %v309 = vsel %vm267, %v307, %v308
      %v310 = vrot.slane %v199, 7
      %v311 = vrot.slane %v200, 7
      %v312 = vsel %vm267, %v310, %v311
      %v313 = vrot.slane %v201, 7
      %v314 = vrot.slane %v202, 7
      %v315 = vsel %vm267, %v313, %v314
      %v348 = vsel %vm267, %v219, %v268
      %v349 = vsel %vm267, %v220, %v271
      %v350 = vsel %vm267, %v221, %v274
      %v351 = vsel %vm267, %v222, %v277
      %v352 = vsel %vm267, %v223, %v280
      %v353 = vsel %vm267, %v224, %v283
      %v354 = vsel %vm267, %v225, %v286
      %v355 = vsel %vm267, %v226, %v289
      %v356 = vsel %vm267, %v227, %v292
      %v357 = vsel %vm267, %v228, %v295
      %v358 = vsel %vm267, %v229, %v298
      %v359 = vsel %vm267, %v230, %v301
      %v360 = vsel %vm267, %v231, %v304
      %v361 = vsel %vm267, %v232, %v307
      %v362 = vsel %vm267, %v233, %v310
      %v363 = vsel %vm267, %v234, %v313
      %vm364 = vcmask 1046528
      %v365 = vrot.slane %v174, 1
      %v366 = vsel %vm364, %v219, %v365
      %v367 = vrot.slane %v172, 1
      %v368 = vsel %vm364, %v220, %v367
      %v369 = vrot.slane %v176, 1
      %v370 = vsel %vm364, %v221, %v369
      %v371 = vrot.slane %v178, 1
      %v372 = vsel %vm364, %v222, %v371
      %v373 = vrot.slane %v180, 1
      %v374 = vsel %vm364, %v223, %v373
      %v375 = vrot.slane %v182, 1
      %v376 = vsel %vm364, %v224, %v375
      %v377 = vrot.slane %v184, 1
      %v378 = vsel %vm364, %v225, %v377
      %v379 = vrot.slane %v186, 1
      %v380 = vsel %vm364, %v226, %v379
      %v381 = vrot.slane %v188, 1
      %v382 = vsel %vm364, %v227, %v381
      %v383 = vrot.slane %v190, 1
      %v384 = vsel %vm364, %v228, %v383
      %v385 = vrot.slane %v192, 1
      %v386 = vsel %vm364, %v229, %v385
      %v387 = vrot.slane %v194, 1
      %v388 = vsel %vm364, %v230, %v387
      %v389 = vrot.slane %v196, 1
      %v390 = vsel %vm364, %v231, %v389
      %v391 = vrot.slane %v198, 1
      %v392 = vsel %vm364, %v232, %v391
      %v393 = vrot.slane %v200, 1
      %v394 = vsel %vm364, %v233, %v393
      %v395 = vrot.slane %v202, 1
      %v396 = vsel %vm364, %v234, %v395
      %v429 = vsel %vm364, %v365, %v269
      %v430 = vsel %vm364, %v367, %v272
      %v431 = vsel %vm364, %v369, %v275
      %v432 = vsel %vm364, %v371, %v278
      %v433 = vsel %vm364, %v373, %v281
      %v434 = vsel %vm364, %v375, %v284
      %v435 = vsel %vm364, %v377, %v287
      %v436 = vsel %vm364, %v379, %v290
      %v437 = vsel %vm364, %v381, %v293
      %v438 = vsel %vm364, %v383, %v296
      %v439 = vsel %vm364, %v385, %v299
      %v440 = vsel %vm364, %v387, %v302
      %v441 = vsel %vm364, %v389, %v305
      %v442 = vsel %vm364, %v391, %v308
      %v443 = vsel %vm364, %v393, %v311
      %v444 = vsel %vm364, %v395, %v314
      %445 = vrot.lane.b32.xlu0 %v173, 4
      %v446 = vpop.permute.xlu0 %445
      %447 = vrot.lane.b32.xlu0 %v174, 4
      %v448 = vpop.permute.xlu0 %447
      %449 = vrot.lane.b32.xlu0 %v171, 4
      %v450 = vpop.permute.xlu0 %449
      %451 = vrot.lane.b32.xlu0 %v172, 4
      %v452 = vpop.permute.xlu0 %451
      %453 = vrot.lane.b32.xlu0 %v175, 4
      %v454 = vpop.permute.xlu0 %453
      %455 = vrot.lane.b32.xlu0 %v176, 4
      %v456 = vpop.permute.xlu0 %455
      %457 = vrot.lane.b32.xlu0 %v177, 4
      %v458 = vpop.permute.xlu0 %457
      %459 = vrot.lane.b32.xlu0 %v178, 4
      %v460 = vpop.permute.xlu0 %459
      %461 = vrot.lane.b32.xlu0 %v179, 4
      %v462 = vpop.permute.xlu0 %461
      %463 = vrot.lane.b32.xlu0 %v180, 4
      %v464 = vpop.permute.xlu0 %463
      %465 = vrot.lane.b32.xlu0 %v181, 4
      %v466 = vpop.permute.xlu0 %465
      %467 = vrot.lane.b32.xlu0 %v182, 4
      %v468 = vpop.permute.xlu0 %467
      %469 = vrot.lane.b32.xlu0 %v183, 4
      %v470 = vpop.permute.xlu0 %469
      %471 = vrot.lane.b32.xlu0 %v184, 4
      %v472 = vpop.permute.xlu0 %471
      %473 = vrot.lane.b32.xlu0 %v185, 4
      %v474 = vpop.permute.xlu0 %473
      %475 = vrot.lane.b32.xlu0 %v186, 4
      %v476 = vpop.permute.xlu0 %475
      %477 = vrot.lane.b32.xlu0 %v187, 4
      %v478 = vpop.permute.xlu0 %477
      %479 = vrot.lane.b32.xlu0 %v188, 4
      %v480 = vpop.permute.xlu0 %479
      %481 = vrot.lane.b32.xlu0 %v189, 4
      %v482 = vpop.permute.xlu0 %481
      %483 = vrot.lane.b32.xlu0 %v190, 4
      %v484 = vpop.permute.xlu0 %483
      %485 = vrot.lane.b32.xlu0 %v191, 4
      %v486 = vpop.permute.xlu0 %485
      %487 = vrot.lane.b32.xlu0 %v192, 4
      %v488 = vpop.permute.xlu0 %487
      %489 = vrot.lane.b32.xlu0 %v193, 4
      %v490 = vpop.permute.xlu0 %489
      %491 = vrot.lane.b32.xlu0 %v194, 4
      %v492 = vpop.permute.xlu0 %491
      %493 = vrot.lane.b32.xlu0 %v195, 4
      %v494 = vpop.permute.xlu0 %493
      %495 = vrot.lane.b32.xlu0 %v196, 4
      %v496 = vpop.permute.xlu0 %495
      %497 = vrot.lane.b32.xlu0 %v197, 4
      %v498 = vpop.permute.xlu0 %497
      %499 = vrot.lane.b32.xlu0 %v198, 4
      %v500 = vpop.permute.xlu0 %499
      %501 = vrot.lane.b32.xlu0 %v199, 4
      %v502 = vpop.permute.xlu0 %501
      %503 = vrot.lane.b32.xlu0 %v200, 4
      %v504 = vpop.permute.xlu0 %503
      %505 = vrot.lane.b32.xlu0 %v201, 4
      %v506 = vpop.permute.xlu0 %505
      %507 = vrot.lane.b32.xlu0 %v202, 4
      %v508 = vpop.permute.xlu0 %507
      %557 = vrot.lane.b32.xlu0 %v366, 8
      %v558 = vpop.permute.xlu0 %557
      %559 = vrot.lane.b32.xlu0 %v429, 8
      %v560 = vpop.permute.xlu0 %559
      %561 = vrot.lane.b32.xlu0 %v368, 8
      %v562 = vpop.permute.xlu0 %561
      %563 = vrot.lane.b32.xlu0 %v430, 8
      %v564 = vpop.permute.xlu0 %563
      %565 = vrot.lane.b32.xlu0 %v370, 8
      %v566 = vpop.permute.xlu0 %565
      %567 = vrot.lane.b32.xlu0 %v431, 8
      %v568 = vpop.permute.xlu0 %567
      %569 = vrot.lane.b32.xlu0 %v372, 8
      %v570 = vpop.permute.xlu0 %569
      %571 = vrot.lane.b32.xlu0 %v432, 8
      %v572 = vpop.permute.xlu0 %571
      %573 = vrot.lane.b32.xlu0 %v374, 8
      %v574 = vpop.permute.xlu0 %573
      %575 = vrot.lane.b32.xlu0 %v433, 8
      %v576 = vpop.permute.xlu0 %575
      %577 = vrot.lane.b32.xlu0 %v376, 8
      %v578 = vpop.permute.xlu0 %577
      %579 = vrot.lane.b32.xlu0 %v434, 8
      %v580 = vpop.permute.xlu0 %579
      %581 = vrot.lane.b32.xlu0 %v378, 8
      %v582 = vpop.permute.xlu0 %581
      %583 = vrot.lane.b32.xlu0 %v435, 8
      %v584 = vpop.permute.xlu0 %583
      %585 = vrot.lane.b32.xlu0 %v380, 8
      %v586 = vpop.permute.xlu0 %585
      %587 = vrot.lane.b32.xlu0 %v436, 8
      %v588 = vpop.permute.xlu0 %587
      %589 = vrot.lane.b32.xlu0 %v382, 8
      %v590 = vpop.permute.xlu0 %589
      %591 = vrot.lane.b32.xlu0 %v437, 8
      %v592 = vpop.permute.xlu0 %591
      %593 = vrot.lane.b32.xlu0 %v384, 8
      %v594 = vpop.permute.xlu0 %593
      %595 = vrot.lane.b32.xlu0 %v438, 8
      %v596 = vpop.permute.xlu0 %595
      %597 = vrot.lane.b32.xlu0 %v386, 8
      %v598 = vpop.permute.xlu0 %597
      %599 = vrot.lane.b32.xlu0 %v439, 8
      %v600 = vpop.permute.xlu0 %599
      %601 = vrot.lane.b32.xlu0 %v388, 8
      %v602 = vpop.permute.xlu0 %601
      %603 = vrot.lane.b32.xlu0 %v440, 8
      %v604 = vpop.permute.xlu0 %603
      %605 = vrot.lane.b32.xlu0 %v390, 8
      %v606 = vpop.permute.xlu0 %605
      %607 = vrot.lane.b32.xlu0 %v441, 8
      %v608 = vpop.permute.xlu0 %607
      %609 = vrot.lane.b32.xlu0 %v392, 8
      %v610 = vpop.permute.xlu0 %609
      %611 = vrot.lane.b32.xlu0 %v442, 8
      %v612 = vpop.permute.xlu0 %611
      %613 = vrot.lane.b32.xlu0 %v394, 8
      %v614 = vpop.permute.xlu0 %613
      %615 = vrot.lane.b32.xlu0 %v443, 8
      %v616 = vpop.permute.xlu0 %615
      %617 = vrot.lane.b32.xlu0 %v396, 8
      %v618 = vpop.permute.xlu0 %617
      %619 = vrot.lane.b32.xlu0 %v444, 8
      %v620 = vpop.permute.xlu0 %619
      %vm653 = vcmask 31744
      %v654 = vsel %vm653, %v348, %v446
      %v655 = vsel %vm653, %v270, %v448
      %v656 = vsel %vm653, %v349, %v450
      %v657 = vsel %vm653, %v273, %v452
      %v658 = vsel %vm653, %v350, %v454
      %v659 = vsel %vm653, %v276, %v456
      %v660 = vsel %vm653, %v351, %v458
      %v661 = vsel %vm653, %v279, %v460
      %v662 = vsel %vm653, %v352, %v462
      %v663 = vsel %vm653, %v282, %v464
      %v664 = vsel %vm653, %v353, %v466
      %v665 = vsel %vm653, %v285, %v468
      %v666 = vsel %vm653, %v354, %v470
      %v667 = vsel %vm653, %v288, %v472
      %v668 = vsel %vm653, %v355, %v474
      %v669 = vsel %vm653, %v291, %v476
      %v670 = vsel %vm653, %v356, %v478
      %v671 = vsel %vm653, %v294, %v480
      %v672 = vsel %vm653, %v357, %v482
      %v673 = vsel %vm653, %v297, %v484
      %v674 = vsel %vm653, %v358, %v486
      %v675 = vsel %vm653, %v300, %v488
      %v676 = vsel %vm653, %v359, %v490
      %v677 = vsel %vm653, %v303, %v492
      %v678 = vsel %vm653, %v360, %v494
      %v679 = vsel %vm653, %v306, %v496
      %v680 = vsel %vm653, %v361, %v498
      %v681 = vsel %vm653, %v309, %v500
      %v682 = vsel %vm653, %v362, %v502
      %v683 = vsel %vm653, %v312, %v504
      %v684 = vsel %vm653, %v363, %v506
      %v685 = vsel %vm653, %v315, %v508
      %vm686 = vcmask 64512
      %v687 = vsel %vm686, %v654, %v558
      %v688 = vsel %vm686, %v655, %v560
      %v689 = vsel %vm686, %v656, %v562
      %v690 = vsel %vm686, %v657, %v564
      %v691 = vsel %vm686, %v658, %v566
      %v692 = vsel %vm686, %v659, %v568
      %v693 = vsel %vm686, %v660, %v570
      %v694 = vsel %vm686, %v661, %v572
      %v695 = vsel %vm686, %v662, %v574
      %v696 = vsel %vm686, %v663, %v576
      %v697 = vsel %vm686, %v664, %v578
      %v698 = vsel %vm686, %v665, %v580
      %v699 = vsel %vm686, %v666, %v582
      %v700 = vsel %vm686, %v667, %v584
      %v701 = vsel %vm686, %v668, %v586
      %v702 = vsel %vm686, %v669, %v588
      %v703 = vsel %vm686, %v670, %v590
      %v704 = vsel %vm686, %v671, %v592
      %v705 = vsel %vm686, %v672, %v594
      %v706 = vsel %vm686, %v673, %v596
      %v707 = vsel %vm686, %v674, %v598
      %v708 = vsel %vm686, %v675, %v600
      %v709 = vsel %vm686, %v676, %v602
      %v710 = vsel %vm686, %v677, %v604
      %v711 = vsel %vm686, %v678, %v606
      %v712 = vsel %vm686, %v679, %v608
      %v713 = vsel %vm686, %v680, %v610
      %v714 = vsel %vm686, %v681, %v612
      %v715 = vsel %vm686, %v682, %v614
      %v716 = vsel %vm686, %v683, %v616
      %v717 = vsel %vm686, %v684, %v618
      %v718 = vsel %vm686, %v685, %v620
      %v719 = vld [vmem:[%s1] sm:$0xff]
      %v720 = vld [vmem:[%s1 + $0x8] sm:$0xf]
      %s721 = scalar_lea.vmem %s1, 16
      %v722 = vld [vmem:[%s721] sm:$0xff]
      %v723 = vld [vmem:[%s721 + $0x8] sm:$0xf]
      %vm724 = vcmask 97280
      %v726 = vsel %vm724, %v689, 0
      %v729 = vsel %vm724, %v690, 0
      %v732 = vsel %vm724, %v687, 0
      %v735 = vsel %vm724, %v688, 0
      %v738 = vsel %vm724, %v691, 0
      %v741 = vsel %vm724, %v692, 0
      %v744 = vsel %vm724, %v693, 0
      %v747 = vsel %vm724, %v694, 0
      %v750 = vsel %vm724, %v695, 0
      %v753 = vsel %vm724, %v696, 0
      %v756 = vsel %vm724, %v697, 0
      %v759 = vsel %vm724, %v698, 0
      %v762 = vsel %vm724, %v699, 0
      %v765 = vsel %vm724, %v700, 0
      %v768 = vsel %vm724, %v701, 0
      %v771 = vsel %vm724, %v702, 0
      %v774 = vsel %vm724, %v703, 0
      %v777 = vsel %vm724, %v704, 0
      %v780 = vsel %vm724, %v705, 0
      %v783 = vsel %vm724, %v706, 0
      %v786 = vsel %vm724, %v707, 0
      %v789 = vsel %vm724, %v708, 0
      %v792 = vsel %vm724, %v709, 0
      %v795 = vsel %vm724, %v710, 0
      %v798 = vsel %vm724, %v711, 0
      %v801 = vsel %vm724, %v712, 0
      %v804 = vsel %vm724, %v713, 0
      %v807 = vsel %vm724, %v714, 0
      %v810 = vsel %vm724, %v715, 0
      %v813 = vsel %vm724, %v716, 0
      %v816 = vsel %vm724, %v717, 0
      %v819 = vsel %vm724, %v718, 0
      %vm821 = vcmask 1043456
      %v823 = vsel %vm821, %v723, 0
      %825 = vmatprep.subr.mxu0 0.0
      %826 = vmatpush1.msra.mxu0 %v722
      %827 = vmatprep.subr.mxu0 0.0
      %828 = vmatpush1.msra.mxu0 %v823
      %829 = vmatprep.subr.mxu0 0.0
      %830 = vmatpush1.msra.mxu0 0.0
      %831 = vmatprep.subr.mxu0 0.0
      %832 = vmatpush1.msra.mxu0 0.0
      %833 = vmatprep.subr.mxu0 0.0
      %834 = vmatpush1.msra.mxu0 0.0
      %835 = vmatprep.subr.mxu0 0.0
      %836 = vmatpush1.msra.mxu0 0.0
      %837 = vmatprep.subr.mxu0 0.0
      %838 = vmatpush1.msra.mxu0 0.0
      %839 = vmatprep.subr.mxu0 0.0
      %840 = vmatpush1.msra.mxu0 0.0
      %841 = vmatprep.subr.mxu0 0.0
      %842 = vmatpush1.msra.mxu0 0.0
      %843 = vmatprep.subr.mxu0 0.0
      %844 = vmatpush1.msra.mxu0 0.0
      %845 = vmatprep.subr.mxu0 0.0
      %846 = vmatpush1.msra.mxu0 0.0
      %847 = vmatprep.subr.mxu0 0.0
      %848 = vmatpush1.msra.mxu0 0.0
      %849 = vmatprep.subr.mxu0 0.0
      %850 = vmatpush1.msra.mxu0 0.0
      %851 = vmatprep.subr.mxu0 0.0
      %852 = vmatpush1.msra.mxu0 0.0
      %853 = vmatprep.subr.mxu0 0.0
      %854 = vmatpush1.msra.mxu0 0.0
      %855 = vmatprep.subr.mxu0 0.0
      %856 = vmatpush1.msra.mxu0 0.0
      %857 = vmatprep.subr.mxu0 0.0
      %858 = vmatpush1.msra.mxu0 0.0
      %859 = vmatprep.subr.mxu0 0.0
      %860 = vmatpush1.msra.mxu0 0.0
      %861 = vmatprep.subr.mxu0 0.0
      %862 = vmatpush1.msra.mxu0 0.0
      %863 = vmatprep.subr.mxu0 0.0
      %864 = vmatpush1.msra.mxu0 0.0
      %865 = vmatprep.subr.mxu0 0.0
      %866 = vmatpush1.msra.mxu0 0.0
      %867 = vmatprep.subr.mxu0 0.0
      %868 = vmatpush1.msra.mxu0 0.0
      %869 = vmatprep.subr.mxu0 0.0
      %870 = vmatpush1.msra.mxu0 0.0
      %871 = vmatprep.subr.mxu0 0.0
      %872 = vmatpush1.msra.mxu0 0.0
      %873 = vmatprep.subr.mxu0 0.0
      %874 = vmatpush1.msra.mxu0 0.0
      %875 = vmatprep.subr.mxu0 0.0
      %876 = vmatpush1.msra.mxu0 0.0
      %877 = vmatprep.subr.mxu0 0.0
      %878 = vmatpush1.msra.mxu0 0.0
      %879 = vmatprep.subr.mxu0 0.0
      %880 = vmatpush1.msra.mxu0 0.0
      %881 = vmatprep.subr.mxu0 0.0
      %882 = vmatpush1.msra.mxu0 0.0
      %883 = vmatprep.subr.mxu0 0.0
      %884 = vmatpush1.msra.mxu0 0.0
      %885 = vmatprep.subr.mxu0 0.0
      %886 = vmatpush1.msra.mxu0 0.0
      %887 = vmatprep.subr.mxu0 0.0
      %888 = vmatpush1.msra.mxu0 0.0
      %889 = vmatprep.mubr.f32.mxu0 0.0
      %890 = vmatmul.mubr.f32.gmra.mrb[0].mxu0 %v726
      %v891 = vpop.f32.mrb[0].mxu0
      %v892 = vadd.f32 0.0, %v891
      %v893 = vpop.f32.mrb[0].mxu0
      %894 = vmatprep.mubr.f32.mxu0 0.0
      %895 = vmatmul.mubr.f32.gmra.mrb[0].mxu0 %v729
      %v896 = vpop.f32.mrb[0].mxu0
      %v897 = vadd.f32 0.0, %v896
      %v898 = vpop.f32.mrb[0].mxu0
      %899 = vmatprep.mubr.f32.mxu0 0.0
      %900 = vmatmul.mubr.f32.gmra.mrb[0].mxu0 %v732
      %v901 = vpop.f32.mrb[0].mxu0
      %v902 = vadd.f32 0.0, %v901
      %v903 = vpop.f32.mrb[0].mxu0
      %904 = vmatprep.mubr.f32.mxu0 0.0
      %905 = vmatmul.mubr.f32.gmra.mrb[0].mxu0 %v735
      %v906 = vpop.f32.mrb[0].mxu0
      %v907 = vadd.f32 0.0, %v906
      %v908 = vpop.f32.mrb[0].mxu0
      %909 = vmatprep.mubr.f32.mxu0 0.0
      %910 = vmatmul.mubr.f32.gmra.mrb[0].mxu0 %v738
      %v911 = vpop.f32.mrb[0].mxu0
      %v912 = vadd.f32 0.0, %v911
      %v913 = vpop.f32.mrb[0].mxu0
      %914 = vmatprep.mubr.f32.mxu0 0.0
      %915 = vmatmul.mubr.f32.gmra.mrb[0].mxu0 %v741
      %v916 = vpop.f32.mrb[0].mxu0
      %v917 = vadd.f32 0.0, %v916
      %v918 = vpop.f32.mrb[0].mxu0
      %919 = vmatprep.mubr.f32.mxu0 0.0
      %920 = vmatmul.mubr.f32.gmra.mrb[0].mxu0 %v744
      %v921 = vpop.f32.mrb[0].mxu0
      %v922 = vadd.f32 0.0, %v921
      %v923 = vpop.f32.mrb[0].mxu0
      %924 = vmatprep.mubr.f32.mxu0 0.0
      %925 = vmatmul.mubr.f32.gmra.mrb[0].mxu0 %v747
      %v926 = vpop.f32.mrb[0].mxu0
      %v927 = vadd.f32 0.0, %v926
      %v928 = vpop.f32.mrb[0].mxu0
      %929 = vmatprep.mubr.f32.mxu0 0.0
      %930 = vmatmul.mubr.f32.gmra.mrb[0].mxu0 %v750
      %v931 = vpop.f32.mrb[0].mxu0
      %v932 = vadd.f32 0.0, %v931
      %v933 = vpop.f32.mrb[0].mxu0
      %934 = vmatprep.mubr.f32.mxu0 0.0
      %935 = vmatmul.mubr.f32.gmra.mrb[0].mxu0 %v753
      %v936 = vpop.f32.mrb[0].mxu0
      %v937 = vadd.f32 0.0, %v936
      %v938 = vpop.f32.mrb[0].mxu0
      %939 = vmatprep.mubr.f32.mxu0 0.0
      %940 = vmatmul.mubr.f32.gmra.mrb[0].mxu0 %v756
      %v941 = vpop.f32.mrb[0].mxu0
      %v942 = vadd.f32 0.0, %v941
      %v943 = vpop.f32.mrb[0].mxu0
      %944 = vmatprep.mubr.f32.mxu0 0.0
      %945 = vmatmul.mubr.f32.gmra.mrb[0].mxu0 %v759
      %v946 = vpop.f32.mrb[0].mxu0
      %v947 = vadd.f32 0.0, %v946
      %v948 = vpop.f32.mrb[0].mxu0
      %949 = vmatprep.mubr.f32.mxu0 0.0
      %950 = vmatmul.mubr.f32.gmra.mrb[0].mxu0 %v762
      %v951 = vpop.f32.mrb[0].mxu0
      %v952 = vadd.f32 0.0, %v951
      %v953 = vpop.f32.mrb[0].mxu0
      %954 = vmatprep.mubr.f32.mxu0 0.0
      %955 = vmatmul.mubr.f32.gmra.mrb[0].mxu0 %v765
      %v956 = vpop.f32.mrb[0].mxu0
      %v957 = vadd.f32 0.0, %v956
      %v958 = vpop.f32.mrb[0].mxu0
      %959 = vmatprep.mubr.f32.mxu0 0.0
      %960 = vmatmul.mubr.f32.gmra.mrb[0].mxu0 %v768
      %v961 = vpop.f32.mrb[0].mxu0
      %v962 = vadd.f32 0.0, %v961
      %v963 = vpop.f32.mrb[0].mxu0
      %964 = vmatprep.mubr.f32.mxu0 0.0
      %965 = vmatmul.mubr.f32.gmra.mrb[0].mxu0 %v771
      %v966 = vpop.f32.mrb[0].mxu0
      %v967 = vadd.f32 0.0, %v966
      %v968 = vpop.f32.mrb[0].mxu0
      %969 = vmatprep.mubr.f32.mxu0 0.0
      %970 = vmatmul.mubr.f32.gmra.mrb[0].mxu0 %v774
      %v971 = vpop.f32.mrb[0].mxu0
      %v972 = vadd.f32 0.0, %v971
      %v973 = vpop.f32.mrb[0].mxu0
      %974 = vmatprep.mubr.f32.mxu0 0.0
      %975 = vmatmul.mubr.f32.gmra.mrb[0].mxu0 %v777
      %v976 = vpop.f32.mrb[0].mxu0
      %v977 = vadd.f32 0.0, %v976
      %v978 = vpop.f32.mrb[0].mxu0
      %979 = vmatprep.mubr.f32.mxu0 0.0
      %980 = vmatmul.mubr.f32.gmra.mrb[0].mxu0 %v780
      %v981 = vpop.f32.mrb[0].mxu0
      %v982 = vadd.f32 0.0, %v981
      %v983 = vpop.f32.mrb[0].mxu0
      %984 = vmatprep.mubr.f32.mxu0 0.0
      %985 = vmatmul.mubr.f32.gmra.mrb[0].mxu0 %v783
      %v986 = vpop.f32.mrb[0].mxu0
      %v987 = vadd.f32 0.0, %v986
      %v988 = vpop.f32.mrb[0].mxu0
      %989 = vmatprep.mubr.f32.mxu0 0.0
      %990 = vmatmul.mubr.f32.gmra.mrb[0].mxu0 %v786
      %v991 = vpop.f32.mrb[0].mxu0
      %v992 = vadd.f32 0.0, %v991
      %v993 = vpop.f32.mrb[0].mxu0
      %994 = vmatprep.mubr.f32.mxu0 0.0
      %995 = vmatmul.mubr.f32.gmra.mrb[0].mxu0 %v789
      %v996 = vpop.f32.mrb[0].mxu0
      %v997 = vadd.f32 0.0, %v996
      %v998 = vpop.f32.mrb[0].mxu0
      %999 = vmatprep.mubr.f32.mxu0 0.0
      %1000 = vmatmul.mubr.f32.gmra.mrb[0].mxu0 %v792
      %v1001 = vpop.f32.mrb[0].mxu0
      %v1002 = vadd.f32 0.0, %v1001
      %v1003 = vpop.f32.mrb[0].mxu0
      %1004 = vmatprep.mubr.f32.mxu0 0.0
      %1005 = vmatmul.mubr.f32.gmra.mrb[0].mxu0 %v795
      %v1006 = vpop.f32.mrb[0].mxu0
      %v1007 = vadd.f32 0.0, %v1006
      %v1008 = vpop.f32.mrb[0].mxu0
      %1009 = vmatprep.mubr.f32.mxu0 0.0
      %1010 = vmatmul.mubr.f32.gmra.mrb[0].mxu0 %v798
      %v1011 = vpop.f32.mrb[0].mxu0
      %v1012 = vadd.f32 0.0, %v1011
      %v1013 = vpop.f32.mrb[0].mxu0
      %1014 = vmatprep.mubr.f32.mxu0 0.0
      %1015 = vmatmul.mubr.f32.gmra.mrb[0].mxu0 %v801
      %v1016 = vpop.f32.mrb[0].mxu0
      %v1017 = vadd.f32 0.0, %v1016
      %v1018 = vpop.f32.mrb[0].mxu0
      %1019 = vmatprep.mubr.f32.mxu0 0.0
      %1020 = vmatmul.mubr.f32.gmra.mrb[0].mxu0 %v804
      %v1021 = vpop.f32.mrb[0].mxu0
      %v1022 = vadd.f32 0.0, %v1021
      %v1023 = vpop.f32.mrb[0].mxu0
      %1024 = vmatprep.mubr.f32.mxu0 0.0
      %1025 = vmatmul.mubr.f32.gmra.mrb[0].mxu0 %v807
      %v1026 = vpop.f32.mrb[0].mxu0
      %v1027 = vadd.f32 0.0, %v1026
      %v1028 = vpop.f32.mrb[0].mxu0
      %1029 = vmatprep.mubr.f32.mxu0 0.0
      %1030 = vmatmul.mubr.f32.gmra.mrb[0].mxu0 %v810
      %v1031 = vpop.f32.mrb[0].mxu0
      %v1032 = vadd.f32 0.0, %v1031
      %v1033 = vpop.f32.mrb[0].mxu0
      %1034 = vmatprep.mubr.f32.mxu0 0.0
      %1035 = vmatmul.mubr.f32.gmra.mrb[0].mxu0 %v813
      %v1036 = vpop.f32.mrb[0].mxu0
      %v1037 = vadd.f32 0.0, %v1036
      %v1038 = vpop.f32.mrb[0].mxu0
      %1039 = vmatprep.mubr.f32.mxu0 0.0
      %1040 = vmatmul.mubr.f32.gmra.mrb[0].mxu0 %v816
      %v1041 = vpop.f32.mrb[0].mxu0
      %v1042 = vadd.f32 0.0, %v1041
      %v1043 = vpop.f32.mrb[0].mxu0
      %1044 = vmatprep.mubr.f32.mxu0 0.0
      %1045 = vmatmul.mubr.f32.gmra.mrb[0].mxu0 %v819
      %v1046 = vpop.f32.mrb[0].mxu0
      %v1047 = vadd.f32 0.0, %v1046
      %v1048 = vpop.f32.mrb[0].mxu0
      %1049 = vdwg.mxu0
      %v1051 = vsel %vm821, %v720, 0
      %1053 = vmatprep.subr.mxu0 0.0
      %1054 = vmatpush1.msra.mxu0 %v719
      %1055 = vmatprep.subr.mxu0 0.0
      %1056 = vmatpush1.msra.mxu0 %v1051
      %1057 = vmatprep.subr.mxu0 0.0
      %1058 = vmatpush1.msra.mxu0 0.0
      %1059 = vmatprep.subr.mxu0 0.0
      %1060 = vmatpush1.msra.mxu0 0.0
      %1061 = vmatprep.subr.mxu0 0.0
      %1062 = vmatpush1.msra.mxu0 0.0
      %1063 = vmatprep.subr.mxu0 0.0
      %1064 = vmatpush1.msra.mxu0 0.0
      %1065 = vmatprep.subr.mxu0 0.0
      %1066 = vmatpush1.msra.mxu0 0.0
      %1067 = vmatprep.subr.mxu0 0.0
      %1068 = vmatpush1.msra.mxu0 0.0
      %1069 = vmatprep.subr.mxu0 0.0
      %1070 = vmatpush1.msra.mxu0 0.0
      %1071 = vmatprep.subr.mxu0 0.0
      %1072 = vmatpush1.msra.mxu0 0.0
      %1073 = vmatprep.subr.mxu0 0.0
      %1074 = vmatpush1.msra.mxu0 0.0
      %1075 = vmatprep.subr.mxu0 0.0
      %1076 = vmatpush1.msra.mxu0 0.0
      %1077 = vmatprep.subr.mxu0 0.0
      %1078 = vmatpush1.msra.mxu0 0.0
      %1079 = vmatprep.subr.mxu0 0.0
      %1080 = vmatpush1.msra.mxu0 0.0
      %1081 = vmatprep.subr.mxu0 0.0
      %1082 = vmatpush1.msra.mxu0 0.0
      %1083 = vmatprep.subr.mxu0 0.0
      %1084 = vmatpush1.msra.mxu0 0.0
      %1085 = vmatprep.subr.mxu0 0.0
      %1086 = vmatpush1.msra.mxu0 0.0
      %1087 = vmatprep.subr.mxu0 0.0
      %1088 = vmatpush1.msra.mxu0 0.0
      %1089 = vmatprep.subr.mxu0 0.0
      %1090 = vmatpush1.msra.mxu0 0.0
      %1091 = vmatprep.subr.mxu0 0.0
      %1092 = vmatpush1.msra.mxu0 0.0
      %1093 = vmatprep.subr.mxu0 0.0
      %1094 = vmatpush1.msra.mxu0 0.0
      %1095 = vmatprep.subr.mxu0 0.0
      %1096 = vmatpush1.msra.mxu0 0.0
      %1097 = vmatprep.subr.mxu0 0.0
      %1098 = vmatpush1.msra.mxu0 0.0
      %1099 = vmatprep.subr.mxu0 0.0
      %1100 = vmatpush1.msra.mxu0 0.0
      %1101 = vmatprep.subr.mxu0 0.0
      %1102 = vmatpush1.msra.mxu0 0.0
      %1103 = vmatprep.subr.mxu0 0.0
      %1104 = vmatpush1.msra.mxu0 0.0
      %1105 = vmatprep.subr.mxu0 0.0
      %1106 = vmatpush1.msra.mxu0 0.0
      %1107 = vmatprep.subr.mxu0 0.0
      %1108 = vmatpush1.msra.mxu0 0.0
      %1109 = vmatprep.subr.mxu0 0.0
      %1110 = vmatpush1.msra.mxu0 0.0
      %1111 = vmatprep.subr.mxu0 0.0
      %1112 = vmatpush1.msra.mxu0 0.0
      %1113 = vmatprep.subr.mxu0 0.0
      %1114 = vmatpush1.msra.mxu0 0.0
      %1115 = vmatprep.subr.mxu0 0.0
      %1116 = vmatpush1.msra.mxu0 0.0
      %1117 = vmatprep.mubr.f32.mxu0 0.0
      %1118 = vmatmul.mubr.f32.gmra.mrb[0].mxu0 %v732
      %v1119 = vpop.f32.mrb[0].mxu0
      %v1120 = vadd.f32 %v892, %v1119
      %v1121 = vpop.f32.mrb[0].mxu0
      %1122 = vmatprep.mubr.f32.mxu0 0.0
      %1123 = vmatmul.mubr.f32.gmra.mrb[0].mxu0 %v735
      %v1124 = vpop.f32.mrb[0].mxu0
      %v1125 = vadd.f32 %v897, %v1124
      %v1126 = vpop.f32.mrb[0].mxu0
      %1127 = vmatprep.mubr.f32.mxu0 0.0
      %1128 = vmatmul.mubr.f32.gmra.mrb[0].mxu0 %v726
      %v1129 = vpop.f32.mrb[0].mxu0
      %v1130 = vadd.f32 %v902, %v1129
      %v1131 = vpop.f32.mrb[0].mxu0
      %1132 = vmatprep.mubr.f32.mxu0 0.0
      %1133 = vmatmul.mubr.f32.gmra.mrb[0].mxu0 %v729
      %v1134 = vpop.f32.mrb[0].mxu0
      %v1135 = vadd.f32 %v907, %v1134
      %v1136 = vpop.f32.mrb[0].mxu0
      %1137 = vmatprep.mubr.f32.mxu0 0.0
      %1138 = vmatmul.mubr.f32.gmra.mrb[0].mxu0 %v732
      %v1139 = vpop.f32.mrb[0].mxu0
      %v1140 = vadd.f32 %v912, %v1139
      %v1141 = vpop.f32.mrb[0].mxu0
      %1142 = vmatprep.mubr.f32.mxu0 0.0
      %1143 = vmatmul.mubr.f32.gmra.mrb[0].mxu0 %v735
      %v1144 = vpop.f32.mrb[0].mxu0
      %v1145 = vadd.f32 %v917, %v1144
      %v1146 = vpop.f32.mrb[0].mxu0
      %1147 = vmatprep.mubr.f32.mxu0 0.0
      %1148 = vmatmul.mubr.f32.gmra.mrb[0].mxu0 %v738
      %v1149 = vpop.f32.mrb[0].mxu0
      %v1150 = vadd.f32 %v922, %v1149
      %v1151 = vpop.f32.mrb[0].mxu0
      %1152 = vmatprep.mubr.f32.mxu0 0.0
      %1153 = vmatmul.mubr.f32.gmra.mrb[0].mxu0 %v741
      %v1154 = vpop.f32.mrb[0].mxu0
      %v1155 = vadd.f32 %v927, %v1154
      %v1156 = vpop.f32.mrb[0].mxu0
      %1157 = vmatprep.mubr.f32.mxu0 0.0
      %1158 = vmatmul.mubr.f32.gmra.mrb[0].mxu0 %v744
      %v1159 = vpop.f32.mrb[0].mxu0
      %v1160 = vadd.f32 %v932, %v1159
      %v1161 = vpop.f32.mrb[0].mxu0
      %1162 = vmatprep.mubr.f32.mxu0 0.0
      %1163 = vmatmul.mubr.f32.gmra.mrb[0].mxu0 %v747
      %v1164 = vpop.f32.mrb[0].mxu0
      %v1165 = vadd.f32 %v937, %v1164
      %v1166 = vpop.f32.mrb[0].mxu0
      %1167 = vmatprep.mubr.f32.mxu0 0.0
      %1168 = vmatmul.mubr.f32.gmra.mrb[0].mxu0 %v750
      %v1169 = vpop.f32.mrb[0].mxu0
      %v1170 = vadd.f32 %v942, %v1169
      %v1171 = vpop.f32.mrb[0].mxu0
      %1172 = vmatprep.mubr.f32.mxu0 0.0
      %1173 = vmatmul.mubr.f32.gmra.mrb[0].mxu0 %v753
      %v1174 = vpop.f32.mrb[0].mxu0
      %v1175 = vadd.f32 %v947, %v1174
      %v1176 = vpop.f32.mrb[0].mxu0
      %1177 = vmatprep.mubr.f32.mxu0 0.0
      %1178 = vmatmul.mubr.f32.gmra.mrb[0].mxu0 %v756
      %v1179 = vpop.f32.mrb[0].mxu0
      %v1180 = vadd.f32 %v952, %v1179
      %v1181 = vpop.f32.mrb[0].mxu0
      %1182 = vmatprep.mubr.f32.mxu0 0.0
      %1183 = vmatmul.mubr.f32.gmra.mrb[0].mxu0 %v759
      %v1184 = vpop.f32.mrb[0].mxu0
      %v1185 = vadd.f32 %v957, %v1184
      %v1186 = vpop.f32.mrb[0].mxu0
      %1187 = vmatprep.mubr.f32.mxu0 0.0
      %1188 = vmatmul.mubr.f32.gmra.mrb[0].mxu0 %v762
      %v1189 = vpop.f32.mrb[0].mxu0
      %v1190 = vadd.f32 %v962, %v1189
      %v1191 = vpop.f32.mrb[0].mxu0
      %1192 = vmatprep.mubr.f32.mxu0 0.0
      %1193 = vmatmul.mubr.f32.gmra.mrb[0].mxu0 %v765
      %v1194 = vpop.f32.mrb[0].mxu0
      %v1195 = vadd.f32 %v967, %v1194
      %v1196 = vpop.f32.mrb[0].mxu0
      %1197 = vmatprep.mubr.f32.mxu0 0.0
      %1198 = vmatmul.mubr.f32.gmra.mrb[0].mxu0 %v768
      %v1199 = vpop.f32.mrb[0].mxu0
      %v1200 = vadd.f32 %v972, %v1199
      %v1201 = vpop.f32.mrb[0].mxu0
      %1202 = vmatprep.mubr.f32.mxu0 0.0
      %1203 = vmatmul.mubr.f32.gmra.mrb[0].mxu0 %v771
      %v1204 = vpop.f32.mrb[0].mxu0
      %v1205 = vadd.f32 %v977, %v1204
      %v1206 = vpop.f32.mrb[0].mxu0
      %1207 = vmatprep.mubr.f32.mxu0 0.0
      %1208 = vmatmul.mubr.f32.gmra.mrb[0].mxu0 %v774
      %v1209 = vpop.f32.mrb[0].mxu0
      %v1210 = vadd.f32 %v982, %v1209
      %v1211 = vpop.f32.mrb[0].mxu0
      %1212 = vmatprep.mubr.f32.mxu0 0.0
      %1213 = vmatmul.mubr.f32.gmra.mrb[0].mxu0 %v777
      %v1214 = vpop.f32.mrb[0].mxu0
      %v1215 = vadd.f32 %v987, %v1214
      %v1216 = vpop.f32.mrb[0].mxu0
      %1217 = vmatprep.mubr.f32.mxu0 0.0
      %1218 = vmatmul.mubr.f32.gmra.mrb[0].mxu0 %v780
      %v1219 = vpop.f32.mrb[0].mxu0
      %v1220 = vadd.f32 %v992, %v1219
      %v1221 = vpop.f32.mrb[0].mxu0
      %1222 = vmatprep.mubr.f32.mxu0 0.0
      %1223 = vmatmul.mubr.f32.gmra.mrb[0].mxu0 %v783
      %v1224 = vpop.f32.mrb[0].mxu0
      %v1225 = vadd.f32 %v997, %v1224
      %v1226 = vpop.f32.mrb[0].mxu0
      %1227 = vmatprep.mubr.f32.mxu0 0.0
      %1228 = vmatmul.mubr.f32.gmra.mrb[0].mxu0 %v786
      %v1229 = vpop.f32.mrb[0].mxu0
      %v1230 = vadd.f32 %v1002, %v1229
      %v1231 = vpop.f32.mrb[0].mxu0
      %1232 = vmatprep.mubr.f32.mxu0 0.0
      %1233 = vmatmul.mubr.f32.gmra.mrb[0].mxu0 %v789
      %v1234 = vpop.f32.mrb[0].mxu0
      %v1235 = vadd.f32 %v1007, %v1234
      %v1236 = vpop.f32.mrb[0].mxu0
      %1237 = vmatprep.mubr.f32.mxu0 0.0
      %1238 = vmatmul.mubr.f32.gmra.mrb[0].mxu0 %v792
      %v1239 = vpop.f32.mrb[0].mxu0
      %v1240 = vadd.f32 %v1012, %v1239
      %v1241 = vpop.f32.mrb[0].mxu0
      %1242 = vmatprep.mubr.f32.mxu0 0.0
      %1243 = vmatmul.mubr.f32.gmra.mrb[0].mxu0 %v795
      %v1244 = vpop.f32.mrb[0].mxu0
      %v1245 = vadd.f32 %v1017, %v1244
      %v1246 = vpop.f32.mrb[0].mxu0
      %1247 = vmatprep.mubr.f32.mxu0 0.0
      %1248 = vmatmul.mubr.f32.gmra.mrb[0].mxu0 %v798
      %v1249 = vpop.f32.mrb[0].mxu0
      %v1250 = vadd.f32 %v1022, %v1249
      %v1251 = vpop.f32.mrb[0].mxu0
      %1252 = vmatprep.mubr.f32.mxu0 0.0
      %1253 = vmatmul.mubr.f32.gmra.mrb[0].mxu0 %v801
      %v1254 = vpop.f32.mrb[0].mxu0
      %v1255 = vadd.f32 %v1027, %v1254
      %v1256 = vpop.f32.mrb[0].mxu0
      %1257 = vmatprep.mubr.f32.mxu0 0.0
      %1258 = vmatmul.mubr.f32.gmra.mrb[0].mxu0 %v804
      %v1259 = vpop.f32.mrb[0].mxu0
      %v1260 = vadd.f32 %v1032, %v1259
      %v1261 = vpop.f32.mrb[0].mxu0
      %1262 = vmatprep.mubr.f32.mxu0 0.0
      %1263 = vmatmul.mubr.f32.gmra.mrb[0].mxu0 %v807
      %v1264 = vpop.f32.mrb[0].mxu0
      %v1265 = vadd.f32 %v1037, %v1264
      %v1266 = vpop.f32.mrb[0].mxu0
      %1267 = vmatprep.mubr.f32.mxu0 0.0
      %1268 = vmatmul.mubr.f32.gmra.mrb[0].mxu0 %v810
      %v1269 = vpop.f32.mrb[0].mxu0
      %v1270 = vadd.f32 %v1042, %v1269
      %v1271 = vpop.f32.mrb[0].mxu0
      %1272 = vmatprep.mubr.f32.mxu0 0.0
      %1273 = vmatmul.mubr.f32.gmra.mrb[0].mxu0 %v813
      %v1274 = vpop.f32.mrb[0].mxu0
      %v1275 = vadd.f32 %v1047, %v1274
      %v1276 = vpop.f32.mrb[0].mxu0
      %1277 = vdwg.mxu0
      %s1278 = scalar_lea.vmem %s1, 32
      %v1279 = vld [vmem:[%s1278] sm:$0xff]
      %v1280 = vld [vmem:[%s1278 + $0x8] sm:$0xf]
      %v1282 = vsel %vm821, %v1280, 0
      %1284 = vmatprep.subr.mxu0 0.0
      %1285 = vmatpush1.msra.mxu0 %v1279
      %1286 = vmatprep.subr.mxu0 0.0
      %1287 = vmatpush1.msra.mxu0 %v1282
      %1288 = vmatprep.subr.mxu0 0.0
      %1289 = vmatpush1.msra.mxu0 0.0
      %1290 = vmatprep.subr.mxu0 0.0
      %1291 = vmatpush1.msra.mxu0 0.0
      %1292 = vmatprep.subr.mxu0 0.0
      %1293 = vmatpush1.msra.mxu0 0.0
      %1294 = vmatprep.subr.mxu0 0.0
      %1295 = vmatpush1.msra.mxu0 0.0
      %1296 = vmatprep.subr.mxu0 0.0
      %1297 = vmatpush1.msra.mxu0 0.0
      %1298 = vmatprep.subr.mxu0 0.0
      %1299 = vmatpush1.msra.mxu0 0.0
      %1300 = vmatprep.subr.mxu0 0.0
      %1301 = vmatpush1.msra.mxu0 0.0
      %1302 = vmatprep.subr.mxu0 0.0
      %1303 = vmatpush1.msra.mxu0 0.0
      %1304 = vmatprep.subr.mxu0 0.0
      %1305 = vmatpush1.msra.mxu0 0.0
      %1306 = vmatprep.subr.mxu0 0.0
      %1307 = vmatpush1.msra.mxu0 0.0
      %1308 = vmatprep.subr.mxu0 0.0
      %1309 = vmatpush1.msra.mxu0 0.0
      %1310 = vmatprep.subr.mxu0 0.0
      %1311 = vmatpush1.msra.mxu0 0.0
      %1312 = vmatprep.subr.mxu0 0.0
      %1313 = vmatpush1.msra.mxu0 0.0
      %1314 = vmatprep.subr.mxu0 0.0
      %1315 = vmatpush1.msra.mxu0 0.0
      %1316 = vmatprep.subr.mxu0 0.0
      %1317 = vmatpush1.msra.mxu0 0.0
      %1318 = vmatprep.subr.mxu0 0.0
      %1319 = vmatpush1.msra.mxu0 0.0
      %1320 = vmatprep.subr.mxu0 0.0
      %1321 = vmatpush1.msra.mxu0 0.0
      %1322 = vmatprep.subr.mxu0 0.0
      %1323 = vmatpush1.msra.mxu0 0.0
      %1324 = vmatprep.subr.mxu0 0.0
      %1325 = vmatpush1.msra.mxu0 0.0
      %1326 = vmatprep.subr.mxu0 0.0
      %1327 = vmatpush1.msra.mxu0 0.0
      %1328 = vmatprep.subr.mxu0 0.0
      %1329 = vmatpush1.msra.mxu0 0.0
      %1330 = vmatprep.subr.mxu0 0.0
      %1331 = vmatpush1.msra.mxu0 0.0
      %1332 = vmatprep.subr.mxu0 0.0
      %1333 = vmatpush1.msra.mxu0 0.0
      %1334 = vmatprep.subr.mxu0 0.0
      %1335 = vmatpush1.msra.mxu0 0.0
      %1336 = vmatprep.subr.mxu0 0.0
      %1337 = vmatpush1.msra.mxu0 0.0
      %1338 = vmatprep.subr.mxu0 0.0
      %1339 = vmatpush1.msra.mxu0 0.0
      %1340 = vmatprep.subr.mxu0 0.0
      %1341 = vmatpush1.msra.mxu0 0.0
      %1342 = vmatprep.subr.mxu0 0.0
      %1343 = vmatpush1.msra.mxu0 0.0
      %1344 = vmatprep.subr.mxu0 0.0
      %1345 = vmatpush1.msra.mxu0 0.0
      %1346 = vmatprep.subr.mxu0 0.0
      %1347 = vmatpush1.msra.mxu0 0.0
      %1348 = vmatprep.mubr.f32.mxu0 0.0
      %1349 = vmatmul.mubr.f32.gmra.mrb[0].mxu0 %v732
      %v1350 = vpop.f32.mrb[0].mxu0
      %v1351 = vadd.f32 0.0, %v1350
      %v1352 = vpop.f32.mrb[0].mxu0
      %1353 = vmatprep.mubr.f32.mxu0 0.0
      %1354 = vmatmul.mubr.f32.gmra.mrb[0].mxu0 %v735
      %v1355 = vpop.f32.mrb[0].mxu0
      %v1356 = vadd.f32 0.0, %v1355
      %v1357 = vpop.f32.mrb[0].mxu0
      %1358 = vmatprep.mubr.f32.mxu0 0.0
      %1359 = vmatmul.mubr.f32.gmra.mrb[0].mxu0 %v738
      %v1360 = vpop.f32.mrb[0].mxu0
      %v1361 = vadd.f32 0.0, %v1360
      %v1362 = vpop.f32.mrb[0].mxu0
      %1363 = vmatprep.mubr.f32.mxu0 0.0
      %1364 = vmatmul.mubr.f32.gmra.mrb[0].mxu0 %v741
      %v1365 = vpop.f32.mrb[0].mxu0
      %v1366 = vadd.f32 0.0, %v1365
      %v1367 = vpop.f32.mrb[0].mxu0
      %1368 = vmatprep.mubr.f32.mxu0 0.0
      %1369 = vmatmul.mubr.f32.gmra.mrb[0].mxu0 %v744
      %v1370 = vpop.f32.mrb[0].mxu0
      %v1371 = vadd.f32 0.0, %v1370
      %v1372 = vpop.f32.mrb[0].mxu0
      %1373 = vmatprep.mubr.f32.mxu0 0.0
      %1374 = vmatmul.mubr.f32.gmra.mrb[0].mxu0 %v747
      %v1375 = vpop.f32.mrb[0].mxu0
      %v1376 = vadd.f32 0.0, %v1375
      %v1377 = vpop.f32.mrb[0].mxu0
      %1378 = vmatprep.mubr.f32.mxu0 0.0
      %1379 = vmatmul.mubr.f32.gmra.mrb[0].mxu0 %v750
      %v1380 = vpop.f32.mrb[0].mxu0
      %v1381 = vadd.f32 0.0, %v1380
      %v1382 = vpop.f32.mrb[0].mxu0
      %1383 = vmatprep.mubr.f32.mxu0 0.0
      %1384 = vmatmul.mubr.f32.gmra.mrb[0].mxu0 %v753
      %v1385 = vpop.f32.mrb[0].mxu0
      %v1386 = vadd.f32 0.0, %v1385
      %v1387 = vpop.f32.mrb[0].mxu0
      %1388 = vmatprep.mubr.f32.mxu0 0.0
      %1389 = vmatmul.mubr.f32.gmra.mrb[0].mxu0 %v756
      %v1390 = vpop.f32.mrb[0].mxu0
      %v1391 = vadd.f32 0.0, %v1390
      %v1392 = vpop.f32.mrb[0].mxu0
      %1393 = vmatprep.mubr.f32.mxu0 0.0
      %1394 = vmatmul.mubr.f32.gmra.mrb[0].mxu0 %v759
      %v1395 = vpop.f32.mrb[0].mxu0
      %v1396 = vadd.f32 0.0, %v1395
      %v1397 = vpop.f32.mrb[0].mxu0
      %1398 = vmatprep.mubr.f32.mxu0 0.0
      %1399 = vmatmul.mubr.f32.gmra.mrb[0].mxu0 %v762
      %v1400 = vpop.f32.mrb[0].mxu0
      %v1401 = vadd.f32 0.0, %v1400
      %v1402 = vpop.f32.mrb[0].mxu0
      %1403 = vmatprep.mubr.f32.mxu0 0.0
      %1404 = vmatmul.mubr.f32.gmra.mrb[0].mxu0 %v765
      %v1405 = vpop.f32.mrb[0].mxu0
      %v1406 = vadd.f32 0.0, %v1405
      %v1407 = vpop.f32.mrb[0].mxu0
      %1408 = vmatprep.mubr.f32.mxu0 0.0
      %1409 = vmatmul.mubr.f32.gmra.mrb[0].mxu0 %v768
      %v1410 = vpop.f32.mrb[0].mxu0
      %v1411 = vadd.f32 0.0, %v1410
      %v1412 = vpop.f32.mrb[0].mxu0
      %1413 = vmatprep.mubr.f32.mxu0 0.0
      %1414 = vmatmul.mubr.f32.gmra.mrb[0].mxu0 %v771
      %v1415 = vpop.f32.mrb[0].mxu0
      %v1416 = vadd.f32 0.0, %v1415
      %v1417 = vpop.f32.mrb[0].mxu0
      %1418 = vmatprep.mubr.f32.mxu0 0.0
      %1419 = vmatmul.mubr.f32.gmra.mrb[0].mxu0 %v774
      %v1420 = vpop.f32.mrb[0].mxu0
      %v1421 = vadd.f32 0.0, %v1420
      %v1422 = vpop.f32.mrb[0].mxu0
      %1423 = vmatprep.mubr.f32.mxu0 0.0
      %1424 = vmatmul.mubr.f32.gmra.mrb[0].mxu0 %v777
      %v1425 = vpop.f32.mrb[0].mxu0
      %v1426 = vadd.f32 0.0, %v1425
      %v1427 = vpop.f32.mrb[0].mxu0
      %1428 = vmatprep.mubr.f32.mxu0 0.0
      %1429 = vmatmul.mubr.f32.gmra.mrb[0].mxu0 %v780
      %v1430 = vpop.f32.mrb[0].mxu0
      %v1431 = vadd.f32 0.0, %v1430
      %v1432 = vpop.f32.mrb[0].mxu0
      %1433 = vmatprep.mubr.f32.mxu0 0.0
      %1434 = vmatmul.mubr.f32.gmra.mrb[0].mxu0 %v783
      %v1435 = vpop.f32.mrb[0].mxu0
      %v1436 = vadd.f32 0.0, %v1435
      %v1437 = vpop.f32.mrb[0].mxu0
      %1438 = vmatprep.mubr.f32.mxu0 0.0
      %1439 = vmatmul.mubr.f32.gmra.mrb[0].mxu0 %v786
      %v1440 = vpop.f32.mrb[0].mxu0
      %v1441 = vadd.f32 0.0, %v1440
      %v1442 = vpop.f32.mrb[0].mxu0
      %1443 = vmatprep.mubr.f32.mxu0 0.0
      %1444 = vmatmul.mubr.f32.gmra.mrb[0].mxu0 %v789
      %v1445 = vpop.f32.mrb[0].mxu0
      %v1446 = vadd.f32 0.0, %v1445
      %v1447 = vpop.f32.mrb[0].mxu0
      %1448 = vmatprep.mubr.f32.mxu0 0.0
      %1449 = vmatmul.mubr.f32.gmra.mrb[0].mxu0 %v792
      %v1450 = vpop.f32.mrb[0].mxu0
      %v1451 = vadd.f32 0.0, %v1450
      %v1452 = vpop.f32.mrb[0].mxu0
      %1453 = vmatprep.mubr.f32.mxu0 0.0
      %1454 = vmatmul.mubr.f32.gmra.mrb[0].mxu0 %v795
      %v1455 = vpop.f32.mrb[0].mxu0
      %v1456 = vadd.f32 0.0, %v1455
      %v1457 = vpop.f32.mrb[0].mxu0
      %1458 = vmatprep.mubr.f32.mxu0 0.0
      %1459 = vmatmul.mubr.f32.gmra.mrb[0].mxu0 %v798
      %v1460 = vpop.f32.mrb[0].mxu0
      %v1461 = vadd.f32 0.0, %v1460
      %v1462 = vpop.f32.mrb[0].mxu0
      %1463 = vmatprep.mubr.f32.mxu0 0.0
      %1464 = vmatmul.mubr.f32.gmra.mrb[0].mxu0 %v801
      %v1465 = vpop.f32.mrb[0].mxu0
      %v1466 = vadd.f32 0.0, %v1465
      %v1467 = vpop.f32.mrb[0].mxu0
      %1468 = vmatprep.mubr.f32.mxu0 0.0
      %1469 = vmatmul.mubr.f32.gmra.mrb[0].mxu0 %v804
      %v1470 = vpop.f32.mrb[0].mxu0
      %v1471 = vadd.f32 0.0, %v1470
      %v1472 = vpop.f32.mrb[0].mxu0
      %1473 = vmatprep.mubr.f32.mxu0 0.0
      %1474 = vmatmul.mubr.f32.gmra.mrb[0].mxu0 %v807
      %v1475 = vpop.f32.mrb[0].mxu0
      %v1476 = vadd.f32 0.0, %v1475
      %v1477 = vpop.f32.mrb[0].mxu0
      %1478 = vmatprep.mubr.f32.mxu0 0.0
      %1479 = vmatmul.mubr.f32.gmra.mrb[0].mxu0 %v810
      %v1480 = vpop.f32.mrb[0].mxu0
      %v1481 = vadd.f32 0.0, %v1480
      %v1482 = vpop.f32.mrb[0].mxu0
      %1483 = vmatprep.mubr.f32.mxu0 0.0
      %1484 = vmatmul.mubr.f32.gmra.mrb[0].mxu0 %v813
      %v1485 = vpop.f32.mrb[0].mxu0
      %v1486 = vadd.f32 0.0, %v1485
      %v1487 = vpop.f32.mrb[0].mxu0
      %1488 = vmatprep.mubr.f32.mxu0 0.0
      %1489 = vmatmul.mubr.f32.gmra.mrb[0].mxu0 %v816
      %v1490 = vpop.f32.mrb[0].mxu0
      %v1491 = vadd.f32 0.0, %v1490
      %v1492 = vpop.f32.mrb[0].mxu0
      %1493 = vmatprep.mubr.f32.mxu0 0.0
      %1494 = vmatmul.mubr.f32.gmra.mrb[0].mxu0 %v819
      %v1495 = vpop.f32.mrb[0].mxu0
      %v1496 = vadd.f32 0.0, %v1495
      %v1497 = vpop.f32.mrb[0].mxu0
      %1498 = vmatprep.mubr.f32.mxu0 0.0
      %1499 = vmatmul.mubr.f32.gmra.mrb[0].mxu0 %v810
      %v1500 = vpop.f32.mrb[0].mxu0
      %v1501 = vadd.f32 0.0, %v1500
      %v1502 = vpop.f32.mrb[0].mxu0
      %1503 = vmatprep.mubr.f32.mxu0 0.0
      %1504 = vmatmul.mubr.f32.gmra.mrb[0].mxu0 %v813
      %v1505 = vpop.f32.mrb[0].mxu0
      %v1506 = vadd.f32 0.0, %v1505
      %v1507 = vpop.f32.mrb[0].mxu0
      %1508 = vdwg.mxu0
      %v1509 = vadd.f32 %v1120, %v1351
      %v1510 = vadd.f32 %v1125, %v1356
      %v1511 = vadd.f32 %v1130, %v1361
      %v1512 = vadd.f32 %v1135, %v1366
      %v1513 = vadd.f32 %v1140, %v1371
      %v1514 = vadd.f32 %v1145, %v1376
      %v1515 = vadd.f32 %v1150, %v1381
      %v1516 = vadd.f32 %v1155, %v1386
      %v1517 = vadd.f32 %v1160, %v1391
      %v1518 = vadd.f32 %v1165, %v1396
      %v1519 = vadd.f32 %v1170, %v1401
      %v1520 = vadd.f32 %v1175, %v1406
      %v1521 = vadd.f32 %v1180, %v1411
      %v1522 = vadd.f32 %v1185, %v1416
      %v1523 = vadd.f32 %v1190, %v1421
      %v1524 = vadd.f32 %v1195, %v1426
      %v1525 = vadd.f32 %v1200, %v1431
      %v1526 = vadd.f32 %v1205, %v1436
      %v1527 = vadd.f32 %v1210, %v1441
      %v1528 = vadd.f32 %v1215, %v1446
      %v1529 = vadd.f32 %v1220, %v1451
      %v1530 = vadd.f32 %v1225, %v1456
      %v1531 = vadd.f32 %v1230, %v1461
      %v1532 = vadd.f32 %v1235, %v1466
      %v1533 = vadd.f32 %v1240, %v1471
      %v1534 = vadd.f32 %v1245, %v1476
      %v1535 = vadd.f32 %v1250, %v1481
      %v1536 = vadd.f32 %v1255, %v1486
      %v1537 = vadd.f32 %v1260, %v1491
      %v1538 = vadd.f32 %v1265, %v1496
      %v1539 = vadd.f32 %v1270, %v1501
      %v1540 = vadd.f32 %v1275, %v1506
      %v1541 = vsel %vm653, %v1509, 0.0
      %v1542 = vsel %vm653, %v1510, 0.0
      %v1543 = vadd.f32 %v1541, %v1542
      %v1544 = vsel %vm653, %v1511, 0.0
      %v1545 = vadd.f32 %v1543, %v1544
      %v1546 = vsel %vm653, %v1512, 0.0
      %v1547 = vadd.f32 %v1545, %v1546
      %v1548 = vsel %vm653, %v1513, 0.0
      %v1549 = vadd.f32 %v1547, %v1548
      %v1550 = vsel %vm653, %v1514, 0.0
      %v1551 = vadd.f32 %v1549, %v1550
      %v1552 = vsel %vm653, %v1515, 0.0
      %v1553 = vadd.f32 %v1551, %v1552
      %v1554 = vsel %vm653, %v1516, 0.0
      %v1555 = vadd.f32 %v1553, %v1554
      %v1556 = vsel %vm653, %v1517, 0.0
      %v1557 = vadd.f32 %v1555, %v1556
      %v1558 = vsel %vm653, %v1518, 0.0
      %v1559 = vadd.f32 %v1557, %v1558
      %v1560 = vsel %vm653, %v1519, 0.0
      %v1561 = vadd.f32 %v1559, %v1560
      %v1562 = vsel %vm653, %v1520, 0.0
      %v1563 = vadd.f32 %v1561, %v1562
      %v1564 = vsel %vm653, %v1521, 0.0
      %v1565 = vadd.f32 %v1563, %v1564
      %v1566 = vsel %vm653, %v1522, 0.0
      %v1567 = vadd.f32 %v1565, %v1566
      %v1568 = vsel %vm653, %v1523, 0.0
      %v1569 = vadd.f32 %v1567, %v1568
      %v1570 = vsel %vm653, %v1524, 0.0
      %v1571 = vadd.f32 %v1569, %v1570
      %v1572 = vsel %vm653, %v1525, 0.0
      %v1573 = vadd.f32 %v1571, %v1572
      %v1574 = vsel %vm653, %v1526, 0.0
      %v1575 = vadd.f32 %v1573, %v1574
      %v1576 = vsel %vm653, %v1527, 0.0
      %v1577 = vadd.f32 %v1575, %v1576
      %v1578 = vsel %vm653, %v1528, 0.0
      %v1579 = vadd.f32 %v1577, %v1578
      %v1580 = vsel %vm653, %v1529, 0.0
      %v1581 = vadd.f32 %v1579, %v1580
      %v1582 = vsel %vm653, %v1530, 0.0
      %v1583 = vadd.f32 %v1581, %v1582
      %v1584 = vsel %vm653, %v1531, 0.0
      %v1585 = vadd.f32 %v1583, %v1584
      %v1586 = vsel %vm653, %v1532, 0.0
      %v1587 = vadd.f32 %v1585, %v1586
      %v1588 = vsel %vm653, %v1533, 0.0
      %v1589 = vadd.f32 %v1587, %v1588
      %v1590 = vsel %vm653, %v1534, 0.0
      %v1591 = vadd.f32 %v1589, %v1590
      %v1592 = vsel %vm653, %v1535, 0.0
      %v1593 = vadd.f32 %v1591, %v1592
      %v1594 = vsel %vm653, %v1536, 0.0
      %v1595 = vadd.f32 %v1593, %v1594
      %v1596 = vsel %vm653, %v1537, 0.0
      %v1597 = vadd.f32 %v1595, %v1596
      %v1598 = vsel %vm653, %v1538, 0.0
      %v1599 = vadd.f32 %v1597, %v1598
      %v1600 = vsel %vm653, %v1539, 0.0
      %v1601 = vadd.f32 %v1599, %v1600
      %v1602 = vsel %vm653, %v1540, 0.0
      %v1603 = vadd.f32 %v1601, %v1602
      %v1604 = vrot.slane %v1603, 4
      %v1605 = vadd.f32 %v1603, %v1604
      %v1606 = vrot.slane %v1605, 2
      %v1607 = vadd.f32 %v1605, %v1606
      %v1608 = vrot.slane %v1607, 1
      %v1609 = vadd.f32 %v1607, %v1608
      %v1610 = vmul.f32 %v1609, 0.00390625
      %v1611 = vsub.f32 %v1509, %v1610
      %v1612 = vsub.f32 %v1510, %v1610
      %v1613 = vsub.f32 %v1511, %v1610
      %v1614 = vsub.f32 %v1512, %v1610
      %v1615 = vsub.f32 %v1513, %v1610
      %v1616 = vsub.f32 %v1514, %v1610
      %v1617 = vsub.f32 %v1515, %v1610
      %v1618 = vsub.f32 %v1516, %v1610
      %v1619 = vsub.f32 %v1517, %v1610
      %v1620 = vsub.f32 %v1518, %v1610
      %v1621 = vsub.f32 %v1519, %v1610
      %v1622 = vsub.f32 %v1520, %v1610
      %v1623 = vsub.f32 %v1521, %v1610
      %v1624 = vsub.f32 %v1522, %v1610
      %v1625 = vsub.f32 %v1523, %v1610
      %v1626 = vsub.f32 %v1524, %v1610
      %v1627 = vsub.f32 %v1525, %v1610
      %v1628 = vsub.f32 %v1526, %v1610
      %v1629 = vsub.f32 %v1527, %v1610
      %v1630 = vsub.f32 %v1528, %v1610
      %v1631 = vsub.f32 %v1529, %v1610
      %v1632 = vsub.f32 %v1530, %v1610
      %v1633 = vsub.f32 %v1531, %v1610
      %v1634 = vsub.f32 %v1532, %v1610
      %v1635 = vsub.f32 %v1533, %v1610
      %v1636 = vsub.f32 %v1534, %v1610
      %v1637 = vsub.f32 %v1535, %v1610
      %v1638 = vsub.f32 %v1536, %v1610
      %v1639 = vsub.f32 %v1537, %v1610
      %v1640 = vsub.f32 %v1538, %v1610
      %v1641 = vsub.f32 %v1539, %v1610
      %v1642 = vsub.f32 %v1540, %v1610
      %v1643 = vmul.f32 %v1611, %v1611
      %v1644 = vmul.f32 %v1612, %v1612
      %v1645 = vmul.f32 %v1613, %v1613
      %v1646 = vmul.f32 %v1614, %v1614
      %v1647 = vmul.f32 %v1615, %v1615
      %v1648 = vmul.f32 %v1616, %v1616
      %v1649 = vmul.f32 %v1617, %v1617
      %v1650 = vmul.f32 %v1618, %v1618
      %v1651 = vmul.f32 %v1619, %v1619
      %v1652 = vmul.f32 %v1620, %v1620
      %v1653 = vmul.f32 %v1621, %v1621
      %v1654 = vmul.f32 %v1622, %v1622
      %v1655 = vmul.f32 %v1623, %v1623
      %v1656 = vmul.f32 %v1624, %v1624
      %v1657 = vmul.f32 %v1625, %v1625
      %v1658 = vmul.f32 %v1626, %v1626
      %v1659 = vmul.f32 %v1627, %v1627
      %v1660 = vmul.f32 %v1628, %v1628
      %v1661 = vmul.f32 %v1629, %v1629
      %v1662 = vmul.f32 %v1630, %v1630
      %v1663 = vmul.f32 %v1631, %v1631
      %v1664 = vmul.f32 %v1632, %v1632
      %v1665 = vmul.f32 %v1633, %v1633
      %v1666 = vmul.f32 %v1634, %v1634
      %v1667 = vmul.f32 %v1635, %v1635
      %v1668 = vmul.f32 %v1636, %v1636
      %v1669 = vmul.f32 %v1637, %v1637
      %v1670 = vmul.f32 %v1638, %v1638
      %v1671 = vmul.f32 %v1639, %v1639
      %v1672 = vmul.f32 %v1640, %v1640
      %v1673 = vmul.f32 %v1641, %v1641
      %v1674 = vmul.f32 %v1642, %v1642
      %v1675 = vsel %vm653, %v1643, 0.0
      %v1676 = vsel %vm653, %v1644, 0.0
      %v1677 = vadd.f32 %v1675, %v1676
      %v1678 = vsel %vm653, %v1645, 0.0
      %v1679 = vadd.f32 %v1677, %v1678
      %v1680 = vsel %vm653, %v1646, 0.0
      %v1681 = vadd.f32 %v1679, %v1680
      %v1682 = vsel %vm653, %v1647, 0.0
      %v1683 = vadd.f32 %v1681, %v1682
      %v1684 = vsel %vm653, %v1648, 0.0
      %v1685 = vadd.f32 %v1683, %v1684
      %v1686 = vsel %vm653, %v1649, 0.0
      %v1687 = vadd.f32 %v1685, %v1686
      %v1688 = vsel %vm653, %v1650, 0.0
      %v1689 = vadd.f32 %v1687, %v1688
      %v1690 = vsel %vm653, %v1651, 0.0
      %v1691 = vadd.f32 %v1689, %v1690
      %v1692 = vsel %vm653, %v1652, 0.0
      %v1693 = vadd.f32 %v1691, %v1692
      %v1694 = vsel %vm653, %v1653, 0.0
      %v1695 = vadd.f32 %v1693, %v1694
      %v1696 = vsel %vm653, %v1654, 0.0
      %v1697 = vadd.f32 %v1695, %v1696
      %v1698 = vsel %vm653, %v1655, 0.0
      %v1699 = vadd.f32 %v1697, %v1698
      %v1700 = vsel %vm653, %v1656, 0.0
      %v1701 = vadd.f32 %v1699, %v1700
      %v1702 = vsel %vm653, %v1657, 0.0
      %v1703 = vadd.f32 %v1701, %v1702
      %v1704 = vsel %vm653, %v1658, 0.0
      %v1705 = vadd.f32 %v1703, %v1704
      %v1706 = vsel %vm653, %v1659, 0.0
      %v1707 = vadd.f32 %v1705, %v1706
      %v1708 = vsel %vm653, %v1660, 0.0
      %v1709 = vadd.f32 %v1707, %v1708
      %v1710 = vsel %vm653, %v1661, 0.0
      %v1711 = vadd.f32 %v1709, %v1710
      %v1712 = vsel %vm653, %v1662, 0.0
      %v1713 = vadd.f32 %v1711, %v1712
      %v1714 = vsel %vm653, %v1663, 0.0
      %v1715 = vadd.f32 %v1713, %v1714
      %v1716 = vsel %vm653, %v1664, 0.0
      %v1717 = vadd.f32 %v1715, %v1716
      %v1718 = vsel %vm653, %v1665, 0.0
      %v1719 = vadd.f32 %v1717, %v1718
      %v1720 = vsel %vm653, %v1666, 0.0
      %v1721 = vadd.f32 %v1719, %v1720
      %v1722 = vsel %vm653, %v1667, 0.0
      %v1723 = vadd.f32 %v1721, %v1722
      %v1724 = vsel %vm653, %v1668, 0.0
      %v1725 = vadd.f32 %v1723, %v1724
      %v1726 = vsel %vm653, %v1669, 0.0
      %v1727 = vadd.f32 %v1725, %v1726
      %v1728 = vsel %vm653, %v1670, 0.0
      %v1729 = vadd.f32 %v1727, %v1728
      %v1730 = vsel %vm653, %v1671, 0.0
      %v1731 = vadd.f32 %v1729, %v1730
      %v1732 = vsel %vm653, %v1672, 0.0
      %v1733 = vadd.f32 %v1731, %v1732
      %v1734 = vsel %vm653, %v1673, 0.0
      %v1735 = vadd.f32 %v1733, %v1734
      %v1736 = vsel %vm653, %v1674, 0.0
      %v1737 = vadd.f32 %v1735, %v1736
      %v1738 = vrot.slane %v1737, 4
      %v1739 = vadd.f32 %v1737, %v1738
      %v1740 = vrot.slane %v1739, 2
      %v1741 = vadd.f32 %v1739, %v1740
      %v1742 = vrot.slane %v1741, 1
      %v1743 = vadd.f32 %v1741, %v1742
      %v1744 = vmul.f32 %v1743, 0.00390625
      %v1745 = vadd.f32 %v1744, 1e-05
      %v1746 = vrsqrt.pop %v1745
      %v1747 = vmul.f32 %v1611, %v1746
      %v1748 = vmul.f32 %v1612, %v1746
      %v1749 = vmul.f32 %v1613, %v1746
      %v1750 = vmul.f32 %v1614, %v1746
      %v1751 = vmul.f32 %v1615, %v1746
      %v1752 = vmul.f32 %v1616, %v1746
      %v1753 = vmul.f32 %v1617, %v1746
      %v1754 = vmul.f32 %v1618, %v1746
      %v1755 = vmul.f32 %v1619, %v1746
      %v1756 = vmul.f32 %v1620, %v1746
      %v1757 = vmul.f32 %v1621, %v1746
      %v1758 = vmul.f32 %v1622, %v1746
      %v1759 = vmul.f32 %v1623, %v1746
      %v1760 = vmul.f32 %v1624, %v1746
      %v1761 = vmul.f32 %v1625, %v1746
      %v1762 = vmul.f32 %v1626, %v1746
      %v1763 = vmul.f32 %v1627, %v1746
      %v1764 = vmul.f32 %v1628, %v1746
      %v1765 = vmul.f32 %v1629, %v1746
      %v1766 = vmul.f32 %v1630, %v1746
      %v1767 = vmul.f32 %v1631, %v1746
      %v1768 = vmul.f32 %v1632, %v1746
      %v1769 = vmul.f32 %v1633, %v1746
      %v1770 = vmul.f32 %v1634, %v1746
      %v1771 = vmul.f32 %v1635, %v1746
      %v1772 = vmul.f32 %v1636, %v1746
      %v1773 = vmul.f32 %v1637, %v1746
      %v1774 = vmul.f32 %v1638, %v1746
      %v1775 = vmul.f32 %v1639, %v1746
      %v1776 = vmul.f32 %v1640, %v1746
      %v1777 = vmul.f32 %v1641, %v1746
      %v1778 = vmul.f32 %v1642, %v1746
      %v1779 = vmax.f32 %v1747, 0.0
      %v1780 = vmax.f32 %v1748, 0.0
      %v1781 = vmax.f32 %v1749, 0.0
      %v1782 = vmax.f32 %v1750, 0.0
      %v1783 = vmax.f32 %v1751, 0.0
      %v1784 = vmax.f32 %v1752, 0.0
      %v1785 = vmax.f32 %v1753, 0.0
      %v1786 = vmax.f32 %v1754, 0.0
      %v1787 = vmax.f32 %v1755, 0.0
      %v1788 = vmax.f32 %v1756, 0.0
      %v1789 = vmax.f32 %v1757, 0.0
      %v1790 = vmax.f32 %v1758, 0.0
      %v1791 = vmax.f32 %v1759, 0.0
      %v1792 = vmax.f32 %v1760, 0.0
      %v1793 = vmax.f32 %v1761, 0.0
      %v1794 = vmax.f32 %v1762, 0.0
      %v1795 = vmax.f32 %v1763, 0.0
      %v1796 = vmax.f32 %v1764, 0.0
      %v1797 = vmax.f32 %v1765, 0.0
      %v1798 = vmax.f32 %v1766, 0.0
      %v1799 = vmax.f32 %v1767, 0.0
      %v1800 = vmax.f32 %v1768, 0.0
      %v1801 = vmax.f32 %v1769, 0.0
      %v1802 = vmax.f32 %v1770, 0.0
      %v1803 = vmax.f32 %v1771, 0.0
      %v1804 = vmax.f32 %v1772, 0.0
      %v1805 = vmax.f32 %v1773, 0.0
      %v1806 = vmax.f32 %v1774, 0.0
      %v1807 = vmax.f32 %v1775, 0.0
      %v1808 = vmax.f32 %v1776, 0.0
      %v1809 = vmax.f32 %v1777, 0.0
      %v1810 = vmax.f32 %v1778, 0.0
      %v1827 = vrot.slane %v1781, 1
      %v1828 = vrot.slane %v1779, 1
      %v1829 = vrot.slane %v1783, 1
      %v1830 = vrot.slane %v1785, 1
      %v1831 = vrot.slane %v1787, 1
      %v1832 = vrot.slane %v1789, 1
      %v1833 = vrot.slane %v1791, 1
      %v1834 = vrot.slane %v1793, 1
      %v1835 = vrot.slane %v1795, 1
      %v1836 = vrot.slane %v1797, 1
      %v1837 = vrot.slane %v1799, 1
      %v1838 = vrot.slane %v1801, 1
      %v1839 = vrot.slane %v1803, 1
      %v1840 = vrot.slane %v1805, 1
      %v1841 = vrot.slane %v1807, 1
      %v1842 = vrot.slane %v1809, 1
      %v1875 = vrot.slane %v1781, 7
      %v1876 = vrot.slane %v1782, 7
      %v1877 = vsel %vm267, %v1875, %v1876
      %v1878 = vrot.slane %v1779, 7
      %v1879 = vrot.slane %v1780, 7
      %v1880 = vsel %vm267, %v1878, %v1879
      %v1881 = vrot.slane %v1783, 7
      %v1882 = vrot.slane %v1784, 7
      %v1883 = vsel %vm267, %v1881, %v1882
      %v1884 = vrot.slane %v1785, 7
      %v1885 = vrot.slane %v1786, 7
      %v1886 = vsel %vm267, %v1884, %v1885
      %v1887 = vrot.slane %v1787, 7
      %v1888 = vrot.slane %v1788, 7
      %v1889 = vsel %vm267, %v1887, %v1888
      %v1890 = vrot.slane %v1789, 7
      %v1891 = vrot.slane %v1790, 7
      %v1892 = vsel %vm267, %v1890, %v1891
      %v1893 = vrot.slane %v1791, 7
      %v1894 = vrot.slane %v1792, 7
      %v1895 = vsel %vm267, %v1893, %v1894
      %v1896 = vrot.slane %v1793, 7
      %v1897 = vrot.slane %v1794, 7
      %v1898 = vsel %vm267, %v1896, %v1897
      %v1899 = vrot.slane %v1795, 7
      %v1900 = vrot.slane %v1796, 7
      %v1901 = vsel %vm267, %v1899, %v1900
      %v1902 = vrot.slane %v1797, 7
      %v1903 = vrot.slane %v1798, 7
      %v1904 = vsel %vm267, %v1902, %v1903
      %v1905 = vrot.slane %v1799, 7
      %v1906 = vrot.slane %v1800, 7
      %v1907 = vsel %vm267, %v1905, %v1906
      %v1908 = vrot.slane %v1801, 7
      %v1909 = vrot.slane %v1802, 7
      %v1910 = vsel %vm267, %v1908, %v1909
      %v1911 = vrot.slane %v1803, 7
      %v1912 = vrot.slane %v1804, 7
      %v1913 = vsel %vm267, %v1911, %v1912
      %v1914 = vrot.slane %v1805, 7
      %v1915 = vrot.slane %v1806, 7
      %v1916 = vsel %vm267, %v1914, %v1915
      %v1917 = vrot.slane %v1807, 7
      %v1918 = vrot.slane %v1808, 7
      %v1919 = vsel %vm267, %v1917, %v1918
      %v1920 = vrot.slane %v1809, 7
      %v1921 = vrot.slane %v1810, 7
      %v1922 = vsel %vm267, %v1920, %v1921
      %v1955 = vsel %vm267, %v1827, %v1875
      %v1956 = vsel %vm267, %v1828, %v1878
      %v1957 = vsel %vm267, %v1829, %v1881
      %v1958 = vsel %vm267, %v1830, %v1884
      %v1959 = vsel %vm267, %v1831, %v1887
      %v1960 = vsel %vm267, %v1832, %v1890
      %v1961 = vsel %vm267, %v1833, %v1893
      %v1962 = vsel %vm267, %v1834, %v1896
      %v1963 = vsel %vm267, %v1835, %v1899
      %v1964 = vsel %vm267, %v1836, %v1902
      %v1965 = vsel %vm267, %v1837, %v1905
      %v1966 = vsel %vm267, %v1838, %v1908
      %v1967 = vsel %vm267, %v1839, %v1911
      %v1968 = vsel %vm267, %v1840, %v1914
      %v1969 = vsel %vm267, %v1841, %v1917
      %v1970 = vsel %vm267, %v1842, %v1920
      %v1971 = vrot.slane %v1782, 1
      %v1972 = vsel %vm364, %v1827, %v1971
      %v1973 = vrot.slane %v1780, 1
      %v1974 = vsel %vm364, %v1828, %v1973
      %v1975 = vrot.slane %v1784, 1
      %v1976 = vsel %vm364, %v1829, %v1975
      %v1977 = vrot.slane %v1786, 1
      %v1978 = vsel %vm364, %v1830, %v1977
      %v1979 = vrot.slane %v1788, 1
      %v1980 = vsel %vm364, %v1831, %v1979
      %v1981 = vrot.slane %v1790, 1
      %v1982 = vsel %vm364, %v1832, %v1981
      %v1983 = vrot.slane %v1792, 1
      %v1984 = vsel %vm364, %v1833, %v1983
      %v1985 = vrot.slane %v1794, 1
      %v1986 = vsel %vm364, %v1834, %v1985
      %v1987 = vrot.slane %v1796, 1
      %v1988 = vsel %vm364, %v1835, %v1987
      %v1989 = vrot.slane %v1798, 1
      %v1990 = vsel %vm364, %v1836, %v1989
      %v1991 = vrot.slane %v1800, 1
      %v1992 = vsel %vm364, %v1837, %v1991
      %v1993 = vrot.slane %v1802, 1
      %v1994 = vsel %vm364, %v1838, %v1993
      %v1995 = vrot.slane %v1804, 1
      %v1996 = vsel %vm364, %v1839, %v1995
      %v1997 = vrot.slane %v1806, 1
      %v1998 = vsel %vm364, %v1840, %v1997
      %v1999 = vrot.slane %v1808, 1
      %v2000 = vsel %vm364, %v1841, %v1999
      %v2001 = vrot.slane %v1810, 1
      %v2002 = vsel %vm364, %v1842, %v2001
      %v2035 = vsel %vm364, %v1971, %v1876
      %v2036 = vsel %vm364, %v1973, %v1879
      %v2037 = vsel %vm364, %v1975, %v1882
      %v2038 = vsel %vm364, %v1977, %v1885
      %v2039 = vsel %vm364, %v1979, %v1888
      %v2040 = vsel %vm364, %v1981, %v1891
      %v2041 = vsel %vm364, %v1983, %v1894
      %v2042 = vsel %vm364, %v1985, %v1897
      %v2043 = vsel %vm364, %v1987, %v1900
      %v2044 = vsel %vm364, %v1989, %v1903
      %v2045 = vsel %vm364, %v1991, %v1906
      %v2046 = vsel %vm364, %v1993, %v1909
      %v2047 = vsel %vm364, %v1995, %v1912
      %v2048 = vsel %vm364, %v1997, %v1915
      %v2049 = vsel %vm364, %v1999, %v1918
      %v2050 = vsel %vm364, %v2001, %v1921
      %2051 = vrot.lane.b32.xlu0 %v1781, 4
      %v2052 = vpop.permute.xlu0 %2051
      %2053 = vrot.lane.b32.xlu0 %v1782, 4
      %v2054 = vpop.permute.xlu0 %2053
      %2055 = vrot.lane.b32.xlu0 %v1779, 4
      %v2056 = vpop.permute.xlu0 %2055
      %2057 = vrot.lane.b32.xlu0 %v1780, 4
      %v2058 = vpop.permute.xlu0 %2057
      %2059 = vrot.lane.b32.xlu0 %v1783, 4
      %v2060 = vpop.permute.xlu0 %2059
      %2061 = vrot.lane.b32.xlu0 %v1784, 4
      %v2062 = vpop.permute.xlu0 %2061
      %2063 = vrot.lane.b32.xlu0 %v1785, 4
      %v2064 = vpop.permute.xlu0 %2063
      %2065 = vrot.lane.b32.xlu0 %v1786, 4
      %v2066 = vpop.permute.xlu0 %2065
      %2067 = vrot.lane.b32.xlu0 %v1787, 4
      %v2068 = vpop.permute.xlu0 %2067
      %2069 = vrot.lane.b32.xlu0 %v1788, 4
      %v2070 = vpop.permute.xlu0 %2069
      %2071 = vrot.lane.b32.xlu0 %v1789, 4
      %v2072 = vpop.permute.xlu0 %2071
      %2073 = vrot.lane.b32.xlu0 %v1790, 4
      %v2074 = vpop.permute.xlu0 %2073
      %2075 = vrot.lane.b32.xlu0 %v1791, 4
      %v2076 = vpop.permute.xlu0 %2075
      %2077 = vrot.lane.b32.xlu0 %v1792, 4
      %v2078 = vpop.permute.xlu0 %2077
      %2079 = vrot.lane.b32.xlu0 %v1793, 4
      %v2080 = vpop.permute.xlu0 %2079
      %2081 = vrot.lane.b32.xlu0 %v1794, 4
      %v2082 = vpop.permute.xlu0 %2081
      %2083 = vrot.lane.b32.xlu0 %v1795, 4
      %v2084 = vpop.permute.xlu0 %2083
      %2085 = vrot.lane.b32.xlu0 %v1796, 4
      %v2086 = vpop.permute.xlu0 %2085
      %2087 = vrot.lane.b32.xlu0 %v1797, 4
      %v2088 = vpop.permute.xlu0 %2087
      %2089 = vrot.lane.b32.xlu0 %v1798, 4
      %v2090 = vpop.permute.xlu0 %2089
      %2091 = vrot.lane.b32.xlu0 %v1799, 4
      %v2092 = vpop.permute.xlu0 %2091
      %2093 = vrot.lane.b32.xlu0 %v1800, 4
      %v2094 = vpop.permute.xlu0 %2093
      %2095 = vrot.lane.b32.xlu0 %v1801, 4
      %v2096 = vpop.permute.xlu0 %2095
      %2097 = vrot.lane.b32.xlu0 %v1802, 4
      %v2098 = vpop.permute.xlu0 %2097
      %2099 = vrot.lane.b32.xlu0 %v1803, 4
      %v2100 = vpop.permute.xlu0 %2099
      %2101 = vrot.lane.b32.xlu0 %v1804, 4
      %v2102 = vpop.permute.xlu0 %2101
      %2103 = vrot.lane.b32.xlu0 %v1805, 4
      %v2104 = vpop.permute.xlu0 %2103
      %2105 = vrot.lane.b32.xlu0 %v1806, 4
      %v2106 = vpop.permute.xlu0 %2105
      %2107 = vrot.lane.b32.xlu0 %v1807, 4
      %v2108 = vpop.permute.xlu0 %2107
      %2109 = vrot.lane.b32.xlu0 %v1808, 4
      %v2110 = vpop.permute.xlu0 %2109
      %2111 = vrot.lane.b32.xlu0 %v1809, 4
      %v2112 = vpop.permute.xlu0 %2111
      %2113 = vrot.lane.b32.xlu0 %v1810, 4
      %v2114 = vpop.permute.xlu0 %2113
      %2163 = vrot.lane.b32.xlu0 %v1972, 8
      %v2164 = vpop.permute.xlu0 %2163
      %2165 = vrot.lane.b32.xlu0 %v2035, 8
      %v2166 = vpop.permute.xlu0 %2165
      %2167 = vrot.lane.b32.xlu0 %v1974, 8
      %v2168 = vpop.permute.xlu0 %2167
      %2169 = vrot.lane.b32.xlu0 %v2036, 8
      %v2170 = vpop.permute.xlu0 %2169
      %2171 = vrot.lane.b32.xlu0 %v1976, 8
      %v2172 = vpop.permute.xlu0 %2171
      %2173 = vrot.lane.b32.xlu0 %v2037, 8
      %v2174 = vpop.permute.xlu0 %2173
      %2175 = vrot.lane.b32.xlu0 %v1978, 8
      %v2176 = vpop.permute.xlu0 %2175
      %2177 = vrot.lane.b32.xlu0 %v2038, 8
      %v2178 = vpop.permute.xlu0 %2177
      %2179 = vrot.lane.b32.xlu0 %v1980, 8
      %v2180 = vpop.permute.xlu0 %2179
      %2181 = vrot.lane.b32.xlu0 %v2039, 8
      %v2182 = vpop.permute.xlu0 %2181
      %2183 = vrot.lane.b32.xlu0 %v1982, 8
      %v2184 = vpop.permute.xlu0 %2183
      %2185 = vrot.lane.b32.xlu0 %v2040, 8
      %v2186 = vpop.permute.xlu0 %2185
      %2187 = vrot.lane.b32.xlu0 %v1984, 8
      %v2188 = vpop.permute.xlu0 %2187
      %2189 = vrot.lane.b32.xlu0 %v2041, 8
      %v2190 = vpop.permute.xlu0 %2189
      %2191 = vrot.lane.b32.xlu0 %v1986, 8
      %v2192 = vpop.permute.xlu0 %2191
      %2193 = vrot.lane.b32.xlu0 %v2042, 8
      %v2194 = vpop.permute.xlu0 %2193
      %2195 = vrot.lane.b32.xlu0 %v1988, 8
      %v2196 = vpop.permute.xlu0 %2195
      %2197 = vrot.lane.b32.xlu0 %v2043, 8
      %v2198 = vpop.permute.xlu0 %2197
      %2199 = vrot.lane.b32.xlu0 %v1990, 8
      %v2200 = vpop.permute.xlu0 %2199
      %2201 = vrot.lane.b32.xlu0 %v2044, 8
      %v2202 = vpop.permute.xlu0 %2201
      %2203 = vrot.lane.b32.xlu0 %v1992, 8
      %v2204 = vpop.permute.xlu0 %2203
      %2205 = vrot.lane.b32.xlu0 %v2045, 8
      %v2206 = vpop.permute.xlu0 %2205
      %2207 = vrot.lane.b32.xlu0 %v1994, 8
      %v2208 = vpop.permute.xlu0 %2207
      %2209 = vrot.lane.b32.xlu0 %v2046, 8
      %v2210 = vpop.permute.xlu0 %2209
      %2211 = vrot.lane.b32.xlu0 %v1996, 8
      %v2212 = vpop.permute.xlu0 %2211
      %2213 = vrot.lane.b32.xlu0 %v2047, 8
      %v2214 = vpop.permute.xlu0 %2213
      %2215 = vrot.lane.b32.xlu0 %v1998, 8
      %v2216 = vpop.permute.xlu0 %2215
      %2217 = vrot.lane.b32.xlu0 %v2048, 8
      %v2218 = vpop.permute.xlu0 %2217
      %2219 = vrot.lane.b32.xlu0 %v2000, 8
      %v2220 = vpop.permute.xlu0 %2219
      %2221 = vrot.lane.b32.xlu0 %v2049, 8
      %v2222 = vpop.permute.xlu0 %2221
      %2223 = vrot.lane.b32.xlu0 %v2002, 8
      %v2224 = vpop.permute.xlu0 %2223
      %2225 = vrot.lane.b32.xlu0 %v2050, 8
      %v2226 = vpop.permute.xlu0 %2225
      %v2259 = vsel %vm653, %v1955, %v2052
      %v2260 = vsel %vm653, %v1877, %v2054
      %v2261 = vsel %vm653, %v1956, %v2056
      %v2262 = vsel %vm653, %v1880, %v2058
      %v2263 = vsel %vm653, %v1957, %v2060
      %v2264 = vsel %vm653, %v1883, %v2062
      %v2265 = vsel %vm653, %v1958, %v2064
      %v2266 = vsel %vm653, %v1886, %v2066
      %v2267 = vsel %vm653, %v1959, %v2068
      %v2268 = vsel %vm653, %v1889, %v2070
      %v2269 = vsel %vm653, %v1960, %v2072
      %v2270 = vsel %vm653, %v1892, %v2074
      %v2271 = vsel %vm653, %v1961, %v2076
      %v2272 = vsel %vm653, %v1895, %v2078
      %v2273 = vsel %vm653, %v1962, %v2080
      %v2274 = vsel %vm653, %v1898, %v2082
      %v2275 = vsel %vm653, %v1963, %v2084
      %v2276 = vsel %vm653, %v1901, %v2086
      %v2277 = vsel %vm653, %v1964, %v2088
      %v2278 = vsel %vm653, %v1904, %v2090
      %v2279 = vsel %vm653, %v1965, %v2092
      %v2280 = vsel %vm653, %v1907, %v2094
      %v2281 = vsel %vm653, %v1966, %v2096
      %v2282 = vsel %vm653, %v1910, %v2098
      %v2283 = vsel %vm653, %v1967, %v2100
      %v2284 = vsel %vm653, %v1913, %v2102
      %v2285 = vsel %vm653, %v1968, %v2104
      %v2286 = vsel %vm653, %v1916, %v2106
      %v2287 = vsel %vm653, %v1969, %v2108
      %v2288 = vsel %vm653, %v1919, %v2110
      %v2289 = vsel %vm653, %v1970, %v2112
      %v2290 = vsel %vm653, %v1922, %v2114
      %v2291 = vsel %vm686, %v2259, %v2164
      %v2292 = vsel %vm686, %v2260, %v2166
      %v2293 = vsel %vm686, %v2261, %v2168
      %v2294 = vsel %vm686, %v2262, %v2170
      %v2295 = vsel %vm686, %v2263, %v2172
      %v2296 = vsel %vm686, %v2264, %v2174
      %v2297 = vsel %vm686, %v2265, %v2176
      %v2298 = vsel %vm686, %v2266, %v2178
      %v2299 = vsel %vm686, %v2267, %v2180
      %v2300 = vsel %vm686, %v2268, %v2182
      %v2301 = vsel %vm686, %v2269, %v2184
      %v2302 = vsel %vm686, %v2270, %v2186
      %v2303 = vsel %vm686, %v2271, %v2188
      %v2304 = vsel %vm686, %v2272, %v2190
      %v2305 = vsel %vm686, %v2273, %v2192
      %v2306 = vsel %vm686, %v2274, %v2194
      %v2307 = vsel %vm686, %v2275, %v2196
      %v2308 = vsel %vm686, %v2276, %v2198
      %v2309 = vsel %vm686, %v2277, %v2200
      %v2310 = vsel %vm686, %v2278, %v2202
      %v2311 = vsel %vm686, %v2279, %v2204
      %v2312 = vsel %vm686, %v2280, %v2206
      %v2313 = vsel %vm686, %v2281, %v2208
      %v2314 = vsel %vm686, %v2282, %v2210
      %v2315 = vsel %vm686, %v2283, %v2212
      %v2316 = vsel %vm686, %v2284, %v2214
      %v2317 = vsel %vm686, %v2285, %v2216
      %v2318 = vsel %vm686, %v2286, %v2218
      %v2319 = vsel %vm686, %v2287, %v2220
      %v2320 = vsel %vm686, %v2288, %v2222
      %v2321 = vsel %vm686, %v2289, %v2224
      %v2322 = vsel %vm686, %v2290, %v2226
      %v2323 = vld [vmem:[%s2] sm:$0xff]
      %v2324 = vld [vmem:[%s2 + $0x8] sm:$0xf]
      %s2325 = scalar_lea.vmem %s2, 16
      %v2326 = vld [vmem:[%s2325] sm:$0xff]
      %v2327 = vld [vmem:[%s2325 + $0x8] sm:$0xf]
      %v2329 = vsel %vm724, %v2293, 0
      %v2332 = vsel %vm724, %v2294, 0
      %v2335 = vsel %vm724, %v2291, 0
      %v2338 = vsel %vm724, %v2292, 0
      %v2341 = vsel %vm724, %v2295, 0
      %v2344 = vsel %vm724, %v2296, 0
      %v2347 = vsel %vm724, %v2297, 0
      %v2350 = vsel %vm724, %v2298, 0
      %v2353 = vsel %vm724, %v2299, 0
      %v2356 = vsel %vm724, %v2300, 0
      %v2359 = vsel %vm724, %v2301, 0
      %v2362 = vsel %vm724, %v2302, 0
      %v2365 = vsel %vm724, %v2303, 0
      %v2368 = vsel %vm724, %v2304, 0
      %v2371 = vsel %vm724, %v2305, 0
      %v2374 = vsel %vm724, %v2306, 0
      %v2377 = vsel %vm724, %v2307, 0
      %v2380 = vsel %vm724, %v2308, 0
      %v2383 = vsel %vm724, %v2309, 0
      %v2386 = vsel %vm724, %v2310, 0
      %v2389 = vsel %vm724, %v2311, 0
      %v2392 = vsel %vm724, %v2312, 0
      %v2395 = vsel %vm724, %v2313, 0
      %v2398 = vsel %vm724, %v2314, 0
      %v2401 = vsel %vm724, %v2315, 0
      %v2404 = vsel %vm724, %v2316, 0
      %v2407 = vsel %vm724, %v2317, 0
      %v2410 = vsel %vm724, %v2318, 0
      %v2413 = vsel %vm724, %v2319, 0
      %v2416 = vsel %vm724, %v2320, 0
      %v2419 = vsel %vm724, %v2321, 0
      %v2422 = vsel %vm724, %v2322, 0
      %v2425 = vsel %vm821, %v2327, 0
      %2427 = vmatprep.subr.mxu0 0.0
      %2428 = vmatpush1.msra.mxu0 %v2326
      %2429 = vmatprep.subr.mxu0 0.0
      %2430 = vmatpush1.msra.mxu0 %v2425
      %2431 = vmatprep.subr.mxu0 0.0
      %2432 = vmatpush1.msra.mxu0 0.0
      %2433 = vmatprep.subr.mxu0 0.0
      %2434 = vmatpush1.msra.mxu0 0.0
      %2435 = vmatprep.subr.mxu0 0.0
      %2436 = vmatpush1.msra.mxu0 0.0
      %2437 = vmatprep.subr.mxu0 0.0
      %2438 = vmatpush1.msra.mxu0 0.0
      %2439 = vmatprep.subr.mxu0 0.0
      %2440 = vmatpush1.msra.mxu0 0.0
      %2441 = vmatprep.subr.mxu0 0.0
      %2442 = vmatpush1.msra.mxu0 0.0
      %2443 = vmatprep.subr.mxu0 0.0
      %2444 = vmatpush1.msra.mxu0 0.0
      %2445 = vmatprep.subr.mxu0 0.0
      %2446 = vmatpush1.msra.mxu0 0.0
      %2447 = vmatprep.subr.mxu0 0.0
      %2448 = vmatpush1.msra.mxu0 0.0
      %2449 = vmatprep.subr.mxu0 0.0
      %2450 = vmatpush1.msra.mxu0 0.0
      %2451 = vmatprep.subr.mxu0 0.0
      %2452 = vmatpush1.msra.mxu0 0.0
      %2453 = vmatprep.subr.mxu0 0.0
      %2454 = vmatpush1.msra.mxu0 0.0
      %2455 = vmatprep.subr.mxu0 0.0
      %2456 = vmatpush1.msra.mxu0 0.0
      %2457 = vmatprep.subr.mxu0 0.0
      %2458 = vmatpush1.msra.mxu0 0.0
      %2459 = vmatprep.subr.mxu0 0.0
      %2460 = vmatpush1.msra.mxu0 0.0
      %2461 = vmatprep.subr.mxu0 0.0
      %2462 = vmatpush1.msra.mxu0 0.0
      %2463 = vmatprep.subr.mxu0 0.0
      %2464 = vmatpush1.msra.mxu0 0.0
      %2465 = vmatprep.subr.mxu0 0.0
      %2466 = vmatpush1.msra.mxu0 0.0
      %2467 = vmatprep.subr.mxu0 0.0
      %2468 = vmatpush1.msra.mxu0 0.0
      %2469 = vmatprep.subr.mxu0 0.0
      %2470 = vmatpush1.msra.mxu0 0.0
      %2471 = vmatprep.subr.mxu0 0.0
      %2472 = vmatpush1.msra.mxu0 0.0
      %2473 = vmatprep.subr.mxu0 0.0
      %2474 = vmatpush1.msra.mxu0 0.0
      %2475 = vmatprep.subr.mxu0 0.0
      %2476 = vmatpush1.msra.mxu0 0.0
      %2477 = vmatprep.subr.mxu0 0.0
      %2478 = vmatpush1.msra.mxu0 0.0
      %2479 = vmatprep.subr.mxu0 0.0
      %2480 = vmatpush1.msra.mxu0 0.0
      %2481 = vmatprep.subr.mxu0 0.0
      %2482 = vmatpush1.msra.mxu0 0.0
      %2483 = vmatprep.subr.mxu0 0.0
      %2484 = vmatpush1.msra.mxu0 0.0
      %2485 = vmatprep.subr.mxu0 0.0
      %2486 = vmatpush1.msra.mxu0 0.0
      %2487 = vmatprep.subr.mxu0 0.0
      %2488 = vmatpush1.msra.mxu0 0.0
      %2489 = vmatprep.subr.mxu0 0.0
      %2490 = vmatpush1.msra.mxu0 0.0
      %2491 = vmatprep.mubr.f32.mxu0 0.0
      %2492 = vmatmul.mubr.f32.gmra.mrb[0].mxu0 %v2329
      %v2493 = vpop.f32.mrb[0].mxu0
      %v2494 = vadd.f32 0.0, %v2493
      %v2495 = vpop.f32.mrb[0].mxu0
      %2496 = vmatprep.mubr.f32.mxu0 0.0
      %2497 = vmatmul.mubr.f32.gmra.mrb[0].mxu0 %v2332
      %v2498 = vpop.f32.mrb[0].mxu0
      %v2499 = vadd.f32 0.0, %v2498
      %v2500 = vpop.f32.mrb[0].mxu0
      %2501 = vmatprep.mubr.f32.mxu0 0.0
      %2502 = vmatmul.mubr.f32.gmra.mrb[0].mxu0 %v2335
      %v2503 = vpop.f32.mrb[0].mxu0
      %v2504 = vadd.f32 0.0, %v2503
      %v2505 = vpop.f32.mrb[0].mxu0
      %2506 = vmatprep.mubr.f32.mxu0 0.0
      %2507 = vmatmul.mubr.f32.gmra.mrb[0].mxu0 %v2338
      %v2508 = vpop.f32.mrb[0].mxu0
      %v2509 = vadd.f32 0.0, %v2508
      %v2510 = vpop.f32.mrb[0].mxu0
      %2511 = vmatprep.mubr.f32.mxu0 0.0
      %2512 = vmatmul.mubr.f32.gmra.mrb[0].mxu0 %v2341
      %v2513 = vpop.f32.mrb[0].mxu0
      %v2514 = vadd.f32 0.0, %v2513
      %v2515 = vpop.f32.mrb[0].mxu0
      %2516 = vmatprep.mubr.f32.mxu0 0.0
      %2517 = vmatmul.mubr.f32.gmra.mrb[0].mxu0 %v2344
      %v2518 = vpop.f32.mrb[0].mxu0
      %v2519 = vadd.f32 0.0, %v2518
      %v2520 = vpop.f32.mrb[0].mxu0
      %2521 = vmatprep.mubr.f32.mxu0 0.0
      %2522 = vmatmul.mubr.f32.gmra.mrb[0].mxu0 %v2347
      %v2523 = vpop.f32.mrb[0].mxu0
      %v2524 = vadd.f32 0.0, %v2523
      %v2525 = vpop.f32.mrb[0].mxu0
      %2526 = vmatprep.mubr.f32.mxu0 0.0
      %2527 = vmatmul.mubr.f32.gmra.mrb[0].mxu0 %v2350
      %v2528 = vpop.f32.mrb[0].mxu0
      %v2529 = vadd.f32 0.0, %v2528
      %v2530 = vpop.f32.mrb[0].mxu0
      %2531 = vmatprep.mubr.f32.mxu0 0.0
      %2532 = vmatmul.mubr.f32.gmra.mrb[0].mxu0 %v2353
      %v2533 = vpop.f32.mrb[0].mxu0
      %v2534 = vadd.f32 0.0, %v2533
      %v2535 = vpop.f32.mrb[0].mxu0
      %2536 = vmatprep.mubr.f32.mxu0 0.0
      %2537 = vmatmul.mubr.f32.gmra.mrb[0].mxu0 %v2356
      %v2538 = vpop.f32.mrb[0].mxu0
      %v2539 = vadd.f32 0.0, %v2538
      %v2540 = vpop.f32.mrb[0].mxu0
      %2541 = vmatprep.mubr.f32.mxu0 0.0
      %2542 = vmatmul.mubr.f32.gmra.mrb[0].mxu0 %v2359
      %v2543 = vpop.f32.mrb[0].mxu0
      %v2544 = vadd.f32 0.0, %v2543
      %v2545 = vpop.f32.mrb[0].mxu0
      %2546 = vmatprep.mubr.f32.mxu0 0.0
      %2547 = vmatmul.mubr.f32.gmra.mrb[0].mxu0 %v2362
      %v2548 = vpop.f32.mrb[0].mxu0
      %v2549 = vadd.f32 0.0, %v2548
      %v2550 = vpop.f32.mrb[0].mxu0
      %2551 = vmatprep.mubr.f32.mxu0 0.0
      %2552 = vmatmul.mubr.f32.gmra.mrb[0].mxu0 %v2365
      %v2553 = vpop.f32.mrb[0].mxu0
      %v2554 = vadd.f32 0.0, %v2553
      %v2555 = vpop.f32.mrb[0].mxu0
      %2556 = vmatprep.mubr.f32.mxu0 0.0
      %2557 = vmatmul.mubr.f32.gmra.mrb[0].mxu0 %v2368
      %v2558 = vpop.f32.mrb[0].mxu0
      %v2559 = vadd.f32 0.0, %v2558
      %v2560 = vpop.f32.mrb[0].mxu0
      %2561 = vmatprep.mubr.f32.mxu0 0.0
      %2562 = vmatmul.mubr.f32.gmra.mrb[0].mxu0 %v2371
      %v2563 = vpop.f32.mrb[0].mxu0
      %v2564 = vadd.f32 0.0, %v2563
      %v2565 = vpop.f32.mrb[0].mxu0
      %2566 = vmatprep.mubr.f32.mxu0 0.0
      %2567 = vmatmul.mubr.f32.gmra.mrb[0].mxu0 %v2374
      %v2568 = vpop.f32.mrb[0].mxu0
      %v2569 = vadd.f32 0.0, %v2568
      %v2570 = vpop.f32.mrb[0].mxu0
      %2571 = vmatprep.mubr.f32.mxu0 0.0
      %2572 = vmatmul.mubr.f32.gmra.mrb[0].mxu0 %v2377
      %v2573 = vpop.f32.mrb[0].mxu0
      %v2574 = vadd.f32 0.0, %v2573
      %v2575 = vpop.f32.mrb[0].mxu0
      %2576 = vmatprep.mubr.f32.mxu0 0.0
      %2577 = vmatmul.mubr.f32.gmra.mrb[0].mxu0 %v2380
      %v2578 = vpop.f32.mrb[0].mxu0
      %v2579 = vadd.f32 0.0, %v2578
      %v2580 = vpop.f32.mrb[0].mxu0
      %2581 = vmatprep.mubr.f32.mxu0 0.0
      %2582 = vmatmul.mubr.f32.gmra.mrb[0].mxu0 %v2383
      %v2583 = vpop.f32.mrb[0].mxu0
      %v2584 = vadd.f32 0.0, %v2583
      %v2585 = vpop.f32.mrb[0].mxu0
      %2586 = vmatprep.mubr.f32.mxu0 0.0
      %2587 = vmatmul.mubr.f32.gmra.mrb[0].mxu0 %v2386
      %v2588 = vpop.f32.mrb[0].mxu0
      %v2589 = vadd.f32 0.0, %v2588
      %v2590 = vpop.f32.mrb[0].mxu0
      %2591 = vmatprep.mubr.f32.mxu0 0.0
      %2592 = vmatmul.mubr.f32.gmra.mrb[0].mxu0 %v2389
      %v2593 = vpop.f32.mrb[0].mxu0
      %v2594 = vadd.f32 0.0, %v2593
      %v2595 = vpop.f32.mrb[0].mxu0
      %2596 = vmatprep.mubr.f32.mxu0 0.0
      %2597 = vmatmul.mubr.f32.gmra.mrb[0].mxu0 %v2392
      %v2598 = vpop.f32.mrb[0].mxu0
      %v2599 = vadd.f32 0.0, %v2598
      %v2600 = vpop.f32.mrb[0].mxu0
      %2601 = vmatprep.mubr.f32.mxu0 0.0
      %2602 = vmatmul.mubr.f32.gmra.mrb[0].mxu0 %v2395
      %v2603 = vpop.f32.mrb[0].mxu0
      %v2604 = vadd.f32 0.0, %v2603
      %v2605 = vpop.f32.mrb[0].mxu0
      %2606 = vmatprep.mubr.f32.mxu0 0.0
      %2607 = vmatmul.mubr.f32.gmra.mrb[0].mxu0 %v2398
      %v2608 = vpop.f32.mrb[0].mxu0
      %v2609 = vadd.f32 0.0, %v2608
      %v2610 = vpop.f32.mrb[0].mxu0
      %2611 = vmatprep.mubr.f32.mxu0 0.0
      %2612 = vmatmul.mubr.f32.gmra.mrb[0].mxu0 %v2401
      %v2613 = vpop.f32.mrb[0].mxu0
      %v2614 = vadd.f32 0.0, %v2613
      %v2615 = vpop.f32.mrb[0].mxu0
      %2616 = vmatprep.mubr.f32.mxu0 0.0
      %2617 = vmatmul.mubr.f32.gmra.mrb[0].mxu0 %v2404
      %v2618 = vpop.f32.mrb[0].mxu0
      %v2619 = vadd.f32 0.0, %v2618
      %v2620 = vpop.f32.mrb[0].mxu0
      %2621 = vmatprep.mubr.f32.mxu0 0.0
      %2622 = vmatmul.mubr.f32.gmra.mrb[0].mxu0 %v2407
      %v2623 = vpop.f32.mrb[0].mxu0
      %v2624 = vadd.f32 0.0, %v2623
      %v2625 = vpop.f32.mrb[0].mxu0
      %2626 = vmatprep.mubr.f32.mxu0 0.0
      %2627 = vmatmul.mubr.f32.gmra.mrb[0].mxu0 %v2410
      %v2628 = vpop.f32.mrb[0].mxu0
      %v2629 = vadd.f32 0.0, %v2628
      %v2630 = vpop.f32.mrb[0].mxu0
      %2631 = vmatprep.mubr.f32.mxu0 0.0
      %2632 = vmatmul.mubr.f32.gmra.mrb[0].mxu0 %v2413
      %v2633 = vpop.f32.mrb[0].mxu0
      %v2634 = vadd.f32 0.0, %v2633
      %v2635 = vpop.f32.mrb[0].mxu0
      %2636 = vmatprep.mubr.f32.mxu0 0.0
      %2637 = vmatmul.mubr.f32.gmra.mrb[0].mxu0 %v2416
      %v2638 = vpop.f32.mrb[0].mxu0
      %v2639 = vadd.f32 0.0, %v2638
      %v2640 = vpop.f32.mrb[0].mxu0
      %2641 = vmatprep.mubr.f32.mxu0 0.0
      %2642 = vmatmul.mubr.f32.gmra.mrb[0].mxu0 %v2419
      %v2643 = vpop.f32.mrb[0].mxu0
      %v2644 = vadd.f32 0.0, %v2643
      %v2645 = vpop.f32.mrb[0].mxu0
      %2646 = vmatprep.mubr.f32.mxu0 0.0
      %2647 = vmatmul.mubr.f32.gmra.mrb[0].mxu0 %v2422
      %v2648 = vpop.f32.mrb[0].mxu0
      %v2649 = vadd.f32 0.0, %v2648
      %v2650 = vpop.f32.mrb[0].mxu0
      %2651 = vdwg.mxu0
      %v2653 = vsel %vm821, %v2324, 0
      %2655 = vmatprep.subr.mxu0 0.0
      %2656 = vmatpush1.msra.mxu0 %v2323
      %2657 = vmatprep.subr.mxu0 0.0
      %2658 = vmatpush1.msra.mxu0 %v2653
      %2659 = vmatprep.subr.mxu0 0.0
      %2660 = vmatpush1.msra.mxu0 0.0
      %2661 = vmatprep.subr.mxu0 0.0
      %2662 = vmatpush1.msra.mxu0 0.0
      %2663 = vmatprep.subr.mxu0 0.0
      %2664 = vmatpush1.msra.mxu0 0.0
      %2665 = vmatprep.subr.mxu0 0.0
      %2666 = vmatpush1.msra.mxu0 0.0
      %2667 = vmatprep.subr.mxu0 0.0
      %2668 = vmatpush1.msra.mxu0 0.0
      %2669 = vmatprep.subr.mxu0 0.0
      %2670 = vmatpush1.msra.mxu0 0.0
      %2671 = vmatprep.subr.mxu0 0.0
      %2672 = vmatpush1.msra.mxu0 0.0
      %2673 = vmatprep.subr.mxu0 0.0
      %2674 = vmatpush1.msra.mxu0 0.0
      %2675 = vmatprep.subr.mxu0 0.0
      %2676 = vmatpush1.msra.mxu0 0.0
      %2677 = vmatprep.subr.mxu0 0.0
      %2678 = vmatpush1.msra.mxu0 0.0
      %2679 = vmatprep.subr.mxu0 0.0
      %2680 = vmatpush1.msra.mxu0 0.0
      %2681 = vmatprep.subr.mxu0 0.0
      %2682 = vmatpush1.msra.mxu0 0.0
      %2683 = vmatprep.subr.mxu0 0.0
      %2684 = vmatpush1.msra.mxu0 0.0
      %2685 = vmatprep.subr.mxu0 0.0
      %2686 = vmatpush1.msra.mxu0 0.0
      %2687 = vmatprep.subr.mxu0 0.0
      %2688 = vmatpush1.msra.mxu0 0.0
      %2689 = vmatprep.subr.mxu0 0.0
      %2690 = vmatpush1.msra.mxu0 0.0
      %2691 = vmatprep.subr.mxu0 0.0
      %2692 = vmatpush1.msra.mxu0 0.0
      %2693 = vmatprep.subr.mxu0 0.0
      %2694 = vmatpush1.msra.mxu0 0.0
      %2695 = vmatprep.subr.mxu0 0.0
      %2696 = vmatpush1.msra.mxu0 0.0
      %2697 = vmatprep.subr.mxu0 0.0
      %2698 = vmatpush1.msra.mxu0 0.0
      %2699 = vmatprep.subr.mxu0 0.0
      %2700 = vmatpush1.msra.mxu0 0.0
      %2701 = vmatprep.subr.mxu0 0.0
      %2702 = vmatpush1.msra.mxu0 0.0
      %2703 = vmatprep.subr.mxu0 0.0
      %2704 = vmatpush1.msra.mxu0 0.0
      %2705 = vmatprep.subr.mxu0 0.0
      %2706 = vmatpush1.msra.mxu0 0.0
      %2707 = vmatprep.subr.mxu0 0.0
      %2708 = vmatpush1.msra.mxu0 0.0
      %2709 = vmatprep.subr.mxu0 0.0
      %2710 = vmatpush1.msra.mxu0 0.0
      %2711 = vmatprep.subr.mxu0 0.0
      %2712 = vmatpush1.msra.mxu0 0.0
      %2713 = vmatprep.subr.mxu0 0.0
      %2714 = vmatpush1.msra.mxu0 0.0
      %2715 = vmatprep.subr.mxu0 0.0
      %2716 = vmatpush1.msra.mxu0 0.0
      %2717 = vmatprep.subr.mxu0 0.0
      %2718 = vmatpush1.msra.mxu0 0.0
      %2719 = vmatprep.mubr.f32.mxu0 0.0
      %2720 = vmatmul.mubr.f32.gmra.mrb[0].mxu0 %v2335
      %v2721 = vpop.f32.mrb[0].mxu0
      %v2722 = vadd.f32 %v2494, %v2721
      %v2723 = vpop.f32.mrb[0].mxu0
      %2724 = vmatprep.mubr.f32.mxu0 0.0
      %2725 = vmatmul.mubr.f32.gmra.mrb[0].mxu0 %v2338
      %v2726 = vpop.f32.mrb[0].mxu0
      %v2727 = vadd.f32 %v2499, %v2726
      %v2728 = vpop.f32.mrb[0].mxu0
      %2729 = vmatprep.mubr.f32.mxu0 0.0
      %2730 = vmatmul.mubr.f32.gmra.mrb[0].mxu0 %v2329
      %v2731 = vpop.f32.mrb[0].mxu0
      %v2732 = vadd.f32 %v2504, %v2731
      %v2733 = vpop.f32.mrb[0].mxu0
      %2734 = vmatprep.mubr.f32.mxu0 0.0
      %2735 = vmatmul.mubr.f32.gmra.mrb[0].mxu0 %v2332
      %v2736 = vpop.f32.mrb[0].mxu0
      %v2737 = vadd.f32 %v2509, %v2736
      %v2738 = vpop.f32.mrb[0].mxu0
      %2739 = vmatprep.mubr.f32.mxu0 0.0
      %2740 = vmatmul.mubr.f32.gmra.mrb[0].mxu0 %v2335
      %v2741 = vpop.f32.mrb[0].mxu0
      %v2742 = vadd.f32 %v2514, %v2741
      %v2743 = vpop.f32.mrb[0].mxu0
      %2744 = vmatprep.mubr.f32.mxu0 0.0
      %2745 = vmatmul.mubr.f32.gmra.mrb[0].mxu0 %v2338
      %v2746 = vpop.f32.mrb[0].mxu0
      %v2747 = vadd.f32 %v2519, %v2746
      %v2748 = vpop.f32.mrb[0].mxu0
      %2749 = vmatprep.mubr.f32.mxu0 0.0
      %2750 = vmatmul.mubr.f32.gmra.mrb[0].mxu0 %v2341
      %v2751 = vpop.f32.mrb[0].mxu0
      %v2752 = vadd.f32 %v2524, %v2751
      %v2753 = vpop.f32.mrb[0].mxu0
      %2754 = vmatprep.mubr.f32.mxu0 0.0
      %2755 = vmatmul.mubr.f32.gmra.mrb[0].mxu0 %v2344
      %v2756 = vpop.f32.mrb[0].mxu0
      %v2757 = vadd.f32 %v2529, %v2756
      %v2758 = vpop.f32.mrb[0].mxu0
      %2759 = vmatprep.mubr.f32.mxu0 0.0
      %2760 = vmatmul.mubr.f32.gmra.mrb[0].mxu0 %v2347
      %v2761 = vpop.f32.mrb[0].mxu0
      %v2762 = vadd.f32 %v2534, %v2761
      %v2763 = vpop.f32.mrb[0].mxu0
      %2764 = vmatprep.mubr.f32.mxu0 0.0
      %2765 = vmatmul.mubr.f32.gmra.mrb[0].mxu0 %v2350
      %v2766 = vpop.f32.mrb[0].mxu0
      %v2767 = vadd.f32 %v2539, %v2766
      %v2768 = vpop.f32.mrb[0].mxu0
      %2769 = vmatprep.mubr.f32.mxu0 0.0
      %2770 = vmatmul.mubr.f32.gmra.mrb[0].mxu0 %v2353
      %v2771 = vpop.f32.mrb[0].mxu0
      %v2772 = vadd.f32 %v2544, %v2771
      %v2773 = vpop.f32.mrb[0].mxu0
      %2774 = vmatprep.mubr.f32.mxu0 0.0
      %2775 = vmatmul.mubr.f32.gmra.mrb[0].mxu0 %v2356
      %v2776 = vpop.f32.mrb[0].mxu0
      %v2777 = vadd.f32 %v2549, %v2776
      %v2778 = vpop.f32.mrb[0].mxu0
      %2779 = vmatprep.mubr.f32.mxu0 0.0
      %2780 = vmatmul.mubr.f32.gmra.mrb[0].mxu0 %v2359
      %v2781 = vpop.f32.mrb[0].mxu0
      %v2782 = vadd.f32 %v2554, %v2781
      %v2783 = vpop.f32.mrb[0].mxu0
      %2784 = vmatprep.mubr.f32.mxu0 0.0
      %2785 = vmatmul.mubr.f32.gmra.mrb[0].mxu0 %v2362
      %v2786 = vpop.f32.mrb[0].mxu0
      %v2787 = vadd.f32 %v2559, %v2786
      %v2788 = vpop.f32.mrb[0].mxu0
      %2789 = vmatprep.mubr.f32.mxu0 0.0
      %2790 = vmatmul.mubr.f32.gmra.mrb[0].mxu0 %v2365
      %v2791 = vpop.f32.mrb[0].mxu0
      %v2792 = vadd.f32 %v2564, %v2791
      %v2793 = vpop.f32.mrb[0].mxu0
      %2794 = vmatprep.mubr.f32.mxu0 0.0
      %2795 = vmatmul.mubr.f32.gmra.mrb[0].mxu0 %v2368
      %v2796 = vpop.f32.mrb[0].mxu0
      %v2797 = vadd.f32 %v2569, %v2796
      %v2798 = vpop.f32.mrb[0].mxu0
      %2799 = vmatprep.mubr.f32.mxu0 0.0
      %2800 = vmatmul.mubr.f32.gmra.mrb[0].mxu0 %v2371
      %v2801 = vpop.f32.mrb[0].mxu0
      %v2802 = vadd.f32 %v2574, %v2801
      %v2803 = vpop.f32.mrb[0].mxu0
      %2804 = vmatprep.mubr.f32.mxu0 0.0
      %2805 = vmatmul.mubr.f32.gmra.mrb[0].mxu0 %v2374
      %v2806 = vpop.f32.mrb[0].mxu0
      %v2807 = vadd.f32 %v2579, %v2806
      %v2808 = vpop.f32.mrb[0].mxu0
      %2809 = vmatprep.mubr.f32.mxu0 0.0
      %2810 = vmatmul.mubr.f32.gmra.mrb[0].mxu0 %v2377
      %v2811 = vpop.f32.mrb[0].mxu0
      %v2812 = vadd.f32 %v2584, %v2811
      %v2813 = vpop.f32.mrb[0].mxu0
      %2814 = vmatprep.mubr.f32.mxu0 0.0
      %2815 = vmatmul.mubr.f32.gmra.mrb[0].mxu0 %v2380
      %v2816 = vpop.f32.mrb[0].mxu0
      %v2817 = vadd.f32 %v2589, %v2816
      %v2818 = vpop.f32.mrb[0].mxu0
      %2819 = vmatprep.mubr.f32.mxu0 0.0
      %2820 = vmatmul.mubr.f32.gmra.mrb[0].mxu0 %v2383
      %v2821 = vpop.f32.mrb[0].mxu0
      %v2822 = vadd.f32 %v2594, %v2821
      %v2823 = vpop.f32.mrb[0].mxu0
      %2824 = vmatprep.mubr.f32.mxu0 0.0
      %2825 = vmatmul.mubr.f32.gmra.mrb[0].mxu0 %v2386
      %v2826 = vpop.f32.mrb[0].mxu0
      %v2827 = vadd.f32 %v2599, %v2826
      %v2828 = vpop.f32.mrb[0].mxu0
      %2829 = vmatprep.mubr.f32.mxu0 0.0
      %2830 = vmatmul.mubr.f32.gmra.mrb[0].mxu0 %v2389
      %v2831 = vpop.f32.mrb[0].mxu0
      %v2832 = vadd.f32 %v2604, %v2831
      %v2833 = vpop.f32.mrb[0].mxu0
      %2834 = vmatprep.mubr.f32.mxu0 0.0
      %2835 = vmatmul.mubr.f32.gmra.mrb[0].mxu0 %v2392
      %v2836 = vpop.f32.mrb[0].mxu0
      %v2837 = vadd.f32 %v2609, %v2836
      %v2838 = vpop.f32.mrb[0].mxu0
      %2839 = vmatprep.mubr.f32.mxu0 0.0
      %2840 = vmatmul.mubr.f32.gmra.mrb[0].mxu0 %v2395
      %v2841 = vpop.f32.mrb[0].mxu0
      %v2842 = vadd.f32 %v2614, %v2841
      %v2843 = vpop.f32.mrb[0].mxu0
      %2844 = vmatprep.mubr.f32.mxu0 0.0
      %2845 = vmatmul.mubr.f32.gmra.mrb[0].mxu0 %v2398
      %v2846 = vpop.f32.mrb[0].mxu0
      %v2847 = vadd.f32 %v2619, %v2846
      %v2848 = vpop.f32.mrb[0].mxu0
      %2849 = vmatprep.mubr.f32.mxu0 0.0
      %2850 = vmatmul.mubr.f32.gmra.mrb[0].mxu0 %v2401
      %v2851 = vpop.f32.mrb[0].mxu0
      %v2852 = vadd.f32 %v2624, %v2851
      %v2853 = vpop.f32.mrb[0].mxu0
      %2854 = vmatprep.mubr.f32.mxu0 0.0
      %2855 = vmatmul.mubr.f32.gmra.mrb[0].mxu0 %v2404
      %v2856 = vpop.f32.mrb[0].mxu0
      %v2857 = vadd.f32 %v2629, %v2856
      %v2858 = vpop.f32.mrb[0].mxu0
      %2859 = vmatprep.mubr.f32.mxu0 0.0
      %2860 = vmatmul.mubr.f32.gmra.mrb[0].mxu0 %v2407
      %v2861 = vpop.f32.mrb[0].mxu0
      %v2862 = vadd.f32 %v2634, %v2861
      %v2863 = vpop.f32.mrb[0].mxu0
      %2864 = vmatprep.mubr.f32.mxu0 0.0
      %2865 = vmatmul.mubr.f32.gmra.mrb[0].mxu0 %v2410
      %v2866 = vpop.f32.mrb[0].mxu0
      %v2867 = vadd.f32 %v2639, %v2866
      %v2868 = vpop.f32.mrb[0].mxu0
      %2869 = vmatprep.mubr.f32.mxu0 0.0
      %2870 = vmatmul.mubr.f32.gmra.mrb[0].mxu0 %v2413
      %v2871 = vpop.f32.mrb[0].mxu0
      %v2872 = vadd.f32 %v2644, %v2871
      %v2873 = vpop.f32.mrb[0].mxu0
      %2874 = vmatprep.mubr.f32.mxu0 0.0
      %2875 = vmatmul.mubr.f32.gmra.mrb[0].mxu0 %v2416
      %v2876 = vpop.f32.mrb[0].mxu0
      %v2877 = vadd.f32 %v2649, %v2876
      %v2878 = vpop.f32.mrb[0].mxu0
      %2879 = vdwg.mxu0
      %s2880 = scalar_lea.vmem %s2, 32
      %v2881 = vld [vmem:[%s2880] sm:$0xff]
      %v2882 = vld [vmem:[%s2880 + $0x8] sm:$0xf]
      %v2884 = vsel %vm821, %v2882, 0
      %2886 = vmatprep.subr.mxu0 0.0
      %2887 = vmatpush1.msra.mxu0 %v2881
      %2888 = vmatprep.subr.mxu0 0.0
      %2889 = vmatpush1.msra.mxu0 %v2884
      %2890 = vmatprep.subr.mxu0 0.0
      %2891 = vmatpush1.msra.mxu0 0.0
      %2892 = vmatprep.subr.mxu0 0.0
      %2893 = vmatpush1.msra.mxu0 0.0
      %2894 = vmatprep.subr.mxu0 0.0
      %2895 = vmatpush1.msra.mxu0 0.0
      %2896 = vmatprep.subr.mxu0 0.0
      %2897 = vmatpush1.msra.mxu0 0.0
      %2898 = vmatprep.subr.mxu0 0.0
      %2899 = vmatpush1.msra.mxu0 0.0
      %2900 = vmatprep.subr.mxu0 0.0
      %2901 = vmatpush1.msra.mxu0 0.0
      %2902 = vmatprep.subr.mxu0 0.0
      %2903 = vmatpush1.msra.mxu0 0.0
      %2904 = vmatprep.subr.mxu0 0.0
      %2905 = vmatpush1.msra.mxu0 0.0
      %2906 = vmatprep.subr.mxu0 0.0
      %2907 = vmatpush1.msra.mxu0 0.0
      %2908 = vmatprep.subr.mxu0 0.0
      %2909 = vmatpush1.msra.mxu0 0.0
      %2910 = vmatprep.subr.mxu0 0.0
      %2911 = vmatpush1.msra.mxu0 0.0
      %2912 = vmatprep.subr.mxu0 0.0
      %2913 = vmatpush1.msra.mxu0 0.0
      %2914 = vmatprep.subr.mxu0 0.0
      %2915 = vmatpush1.msra.mxu0 0.0
      %2916 = vmatprep.subr.mxu0 0.0
      %2917 = vmatpush1.msra.mxu0 0.0
      %2918 = vmatprep.subr.mxu0 0.0
      %2919 = vmatpush1.msra.mxu0 0.0
      %2920 = vmatprep.subr.mxu0 0.0
      %2921 = vmatpush1.msra.mxu0 0.0
      %2922 = vmatprep.subr.mxu0 0.0
      %2923 = vmatpush1.msra.mxu0 0.0
      %2924 = vmatprep.subr.mxu0 0.0
      %2925 = vmatpush1.msra.mxu0 0.0
      %2926 = vmatprep.subr.mxu0 0.0
      %2927 = vmatpush1.msra.mxu0 0.0
      %2928 = vmatprep.subr.mxu0 0.0
      %2929 = vmatpush1.msra.mxu0 0.0
      %2930 = vmatprep.subr.mxu0 0.0
      %2931 = vmatpush1.msra.mxu0 0.0
      %2932 = vmatprep.subr.mxu0 0.0
      %2933 = vmatpush1.msra.mxu0 0.0
      %2934 = vmatprep.subr.mxu0 0.0
      %2935 = vmatpush1.msra.mxu0 0.0
      %2936 = vmatprep.subr.mxu0 0.0
      %2937 = vmatpush1.msra.mxu0 0.0
      %2938 = vmatprep.subr.mxu0 0.0
      %2939 = vmatpush1.msra.mxu0 0.0
      %2940 = vmatprep.subr.mxu0 0.0
      %2941 = vmatpush1.msra.mxu0 0.0
      %2942 = vmatprep.subr.mxu0 0.0
      %2943 = vmatpush1.msra.mxu0 0.0
      %2944 = vmatprep.subr.mxu0 0.0
      %2945 = vmatpush1.msra.mxu0 0.0
      %2946 = vmatprep.subr.mxu0 0.0
      %2947 = vmatpush1.msra.mxu0 0.0
      %2948 = vmatprep.subr.mxu0 0.0
      %2949 = vmatpush1.msra.mxu0 0.0
      %2950 = vmatprep.mubr.f32.mxu0 0.0
      %2951 = vmatmul.mubr.f32.gmra.mrb[0].mxu0 %v2335
      %v2952 = vpop.f32.mrb[0].mxu0
      %v2953 = vadd.f32 0.0, %v2952
      %v2954 = vpop.f32.mrb[0].mxu0
      %2955 = vmatprep.mubr.f32.mxu0 0.0
      %2956 = vmatmul.mubr.f32.gmra.mrb[0].mxu0 %v2338
      %v2957 = vpop.f32.mrb[0].mxu0
      %v2958 = vadd.f32 0.0, %v2957
      %v2959 = vpop.f32.mrb[0].mxu0
      %2960 = vmatprep.mubr.f32.mxu0 0.0
      %2961 = vmatmul.mubr.f32.gmra.mrb[0].mxu0 %v2341
      %v2962 = vpop.f32.mrb[0].mxu0
      %v2963 = vadd.f32 0.0, %v2962
      %v2964 = vpop.f32.mrb[0].mxu0
      %2965 = vmatprep.mubr.f32.mxu0 0.0
      %2966 = vmatmul.mubr.f32.gmra.mrb[0].mxu0 %v2344
      %v2967 = vpop.f32.mrb[0].mxu0
      %v2968 = vadd.f32 0.0, %v2967
      %v2969 = vpop.f32.mrb[0].mxu0
      %2970 = vmatprep.mubr.f32.mxu0 0.0
      %2971 = vmatmul.mubr.f32.gmra.mrb[0].mxu0 %v2347
      %v2972 = vpop.f32.mrb[0].mxu0
      %v2973 = vadd.f32 0.0, %v2972
      %v2974 = vpop.f32.mrb[0].mxu0
      %2975 = vmatprep.mubr.f32.mxu0 0.0
      %2976 = vmatmul.mubr.f32.gmra.mrb[0].mxu0 %v2350
      %v2977 = vpop.f32.mrb[0].mxu0
      %v2978 = vadd.f32 0.0, %v2977
      %v2979 = vpop.f32.mrb[0].mxu0
      %2980 = vmatprep.mubr.f32.mxu0 0.0
      %2981 = vmatmul.mubr.f32.gmra.mrb[0].mxu0 %v2353
      %v2982 = vpop.f32.mrb[0].mxu0
      %v2983 = vadd.f32 0.0, %v2982
      %v2984 = vpop.f32.mrb[0].mxu0
      %2985 = vmatprep.mubr.f32.mxu0 0.0
      %2986 = vmatmul.mubr.f32.gmra.mrb[0].mxu0 %v2356
      %v2987 = vpop.f32.mrb[0].mxu0
      %v2988 = vadd.f32 0.0, %v2987
      %v2989 = vpop.f32.mrb[0].mxu0
      %2990 = vmatprep.mubr.f32.mxu0 0.0
      %2991 = vmatmul.mubr.f32.gmra.mrb[0].mxu0 %v2359
      %v2992 = vpop.f32.mrb[0].mxu0
      %v2993 = vadd.f32 0.0, %v2992
      %v2994 = vpop.f32.mrb[0].mxu0
      %2995 = vmatprep.mubr.f32.mxu0 0.0
      %2996 = vmatmul.mubr.f32.gmra.mrb[0].mxu0 %v2362
      %v2997 = vpop.f32.mrb[0].mxu0
      %v2998 = vadd.f32 0.0, %v2997
      %v2999 = vpop.f32.mrb[0].mxu0
      %3000 = vmatprep.mubr.f32.mxu0 0.0
      %3001 = vmatmul.mubr.f32.gmra.mrb[0].mxu0 %v2365
      %v3002 = vpop.f32.mrb[0].mxu0
      %v3003 = vadd.f32 0.0, %v3002
      %v3004 = vpop.f32.mrb[0].mxu0
      %3005 = vmatprep.mubr.f32.mxu0 0.0
      %3006 = vmatmul.mubr.f32.gmra.mrb[0].mxu0 %v2368
      %v3007 = vpop.f32.mrb[0].mxu0
      %v3008 = vadd.f32 0.0, %v3007
      %v3009 = vpop.f32.mrb[0].mxu0
      %3010 = vmatprep.mubr.f32.mxu0 0.0
      %3011 = vmatmul.mubr.f32.gmra.mrb[0].mxu0 %v2371
      %v3012 = vpop.f32.mrb[0].mxu0
      %v3013 = vadd.f32 0.0, %v3012
      %v3014 = vpop.f32.mrb[0].mxu0
      %3015 = vmatprep.mubr.f32.mxu0 0.0
      %3016 = vmatmul.mubr.f32.gmra.mrb[0].mxu0 %v2374
      %v3017 = vpop.f32.mrb[0].mxu0
      %v3018 = vadd.f32 0.0, %v3017
      %v3019 = vpop.f32.mrb[0].mxu0
      %3020 = vmatprep.mubr.f32.mxu0 0.0
      %3021 = vmatmul.mubr.f32.gmra.mrb[0].mxu0 %v2377
      %v3022 = vpop.f32.mrb[0].mxu0
      %v3023 = vadd.f32 0.0, %v3022
      %v3024 = vpop.f32.mrb[0].mxu0
      %3025 = vmatprep.mubr.f32.mxu0 0.0
      %3026 = vmatmul.mubr.f32.gmra.mrb[0].mxu0 %v2380
      %v3027 = vpop.f32.mrb[0].mxu0
      %v3028 = vadd.f32 0.0, %v3027
      %v3029 = vpop.f32.mrb[0].mxu0
      %3030 = vmatprep.mubr.f32.mxu0 0.0
      %3031 = vmatmul.mubr.f32.gmra.mrb[0].mxu0 %v2383
      %v3032 = vpop.f32.mrb[0].mxu0
      %v3033 = vadd.f32 0.0, %v3032
      %v3034 = vpop.f32.mrb[0].mxu0
      %3035 = vmatprep.mubr.f32.mxu0 0.0
      %3036 = vmatmul.mubr.f32.gmra.mrb[0].mxu0 %v2386
      %v3037 = vpop.f32.mrb[0].mxu0
      %v3038 = vadd.f32 0.0, %v3037
      %v3039 = vpop.f32.mrb[0].mxu0
      %3040 = vmatprep.mubr.f32.mxu0 0.0
      %3041 = vmatmul.mubr.f32.gmra.mrb[0].mxu0 %v2389
      %v3042 = vpop.f32.mrb[0].mxu0
      %v3043 = vadd.f32 0.0, %v3042
      %v3044 = vpop.f32.mrb[0].mxu0
      %3045 = vmatprep.mubr.f32.mxu0 0.0
      %3046 = vmatmul.mubr.f32.gmra.mrb[0].mxu0 %v2392
      %v3047 = vpop.f32.mrb[0].mxu0
      %v3048 = vadd.f32 0.0, %v3047
      %v3049 = vpop.f32.mrb[0].mxu0
      %3050 = vmatprep.mubr.f32.mxu0 0.0
      %3051 = vmatmul.mubr.f32.gmra.mrb[0].mxu0 %v2395
      %v3052 = vpop.f32.mrb[0].mxu0
      %v3053 = vadd.f32 0.0, %v3052
      %v3054 = vpop.f32.mrb[0].mxu0
      %3055 = vmatprep.mubr.f32.mxu0 0.0
      %3056 = vmatmul.mubr.f32.gmra.mrb[0].mxu0 %v2398
      %v3057 = vpop.f32.mrb[0].mxu0
      %v3058 = vadd.f32 0.0, %v3057
      %v3059 = vpop.f32.mrb[0].mxu0
      %3060 = vmatprep.mubr.f32.mxu0 0.0
      %3061 = vmatmul.mubr.f32.gmra.mrb[0].mxu0 %v2401
      %v3062 = vpop.f32.mrb[0].mxu0
      %v3063 = vadd.f32 0.0, %v3062
      %v3064 = vpop.f32.mrb[0].mxu0
      %3065 = vmatprep.mubr.f32.mxu0 0.0
      %3066 = vmatmul.mubr.f32.gmra.mrb[0].mxu0 %v2404
      %v3067 = vpop.f32.mrb[0].mxu0
      %v3068 = vadd.f32 0.0, %v3067
      %v3069 = vpop.f32.mrb[0].mxu0
      %3070 = vmatprep.mubr.f32.mxu0 0.0
      %3071 = vmatmul.mubr.f32.gmra.mrb[0].mxu0 %v2407
      %v3072 = vpop.f32.mrb[0].mxu0
      %v3073 = vadd.f32 0.0, %v3072
      %v3074 = vpop.f32.mrb[0].mxu0
      %3075 = vmatprep.mubr.f32.mxu0 0.0
      %3076 = vmatmul.mubr.f32.gmra.mrb[0].mxu0 %v2410
      %v3077 = vpop.f32.mrb[0].mxu0
      %v3078 = vadd.f32 0.0, %v3077
      %v3079 = vpop.f32.mrb[0].mxu0
      %3080 = vmatprep.mubr.f32.mxu0 0.0
      %3081 = vmatmul.mubr.f32.gmra.mrb[0].mxu0 %v2413
      %v3082 = vpop.f32.mrb[0].mxu0
      %v3083 = vadd.f32 0.0, %v3082
      %v3084 = vpop.f32.mrb[0].mxu0
      %3085 = vmatprep.mubr.f32.mxu0 0.0
      %3086 = vmatmul.mubr.f32.gmra.mrb[0].mxu0 %v2416
      %v3087 = vpop.f32.mrb[0].mxu0
      %v3088 = vadd.f32 0.0, %v3087
      %v3089 = vpop.f32.mrb[0].mxu0
      %3090 = vmatprep.mubr.f32.mxu0 0.0
      %3091 = vmatmul.mubr.f32.gmra.mrb[0].mxu0 %v2419
      %v3092 = vpop.f32.mrb[0].mxu0
      %v3093 = vadd.f32 0.0, %v3092
      %v3094 = vpop.f32.mrb[0].mxu0
      %3095 = vmatprep.mubr.f32.mxu0 0.0
      %3096 = vmatmul.mubr.f32.gmra.mrb[0].mxu0 %v2422
      %v3097 = vpop.f32.mrb[0].mxu0
      %v3098 = vadd.f32 0.0, %v3097
      %v3099 = vpop.f32.mrb[0].mxu0
      %3100 = vmatprep.mubr.f32.mxu0 0.0
      %3101 = vmatmul.mubr.f32.gmra.mrb[0].mxu0 %v2413
      %v3102 = vpop.f32.mrb[0].mxu0
      %v3103 = vadd.f32 0.0, %v3102
      %v3104 = vpop.f32.mrb[0].mxu0
      %3105 = vmatprep.mubr.f32.mxu0 0.0
      %3106 = vmatmul.mubr.f32.gmra.mrb[0].mxu0 %v2416
      %v3107 = vpop.f32.mrb[0].mxu0
      %v3108 = vadd.f32 0.0, %v3107
      %v3109 = vpop.f32.mrb[0].mxu0
      %3110 = vdwg.mxu0
      %v3111 = vadd.f32 %v2722, %v2953
      %v3112 = vadd.f32 %v2727, %v2958
      %v3113 = vadd.f32 %v2732, %v2963
      %v3114 = vadd.f32 %v2737, %v2968
      %v3115 = vadd.f32 %v2742, %v2973
      %v3116 = vadd.f32 %v2747, %v2978
      %v3117 = vadd.f32 %v2752, %v2983
      %v3118 = vadd.f32 %v2757, %v2988
      %v3119 = vadd.f32 %v2762, %v2993
      %v3120 = vadd.f32 %v2767, %v2998
      %v3121 = vadd.f32 %v2772, %v3003
      %v3122 = vadd.f32 %v2777, %v3008
      %v3123 = vadd.f32 %v2782, %v3013
      %v3124 = vadd.f32 %v2787, %v3018
      %v3125 = vadd.f32 %v2792, %v3023
      %v3126 = vadd.f32 %v2797, %v3028
      %v3127 = vadd.f32 %v2802, %v3033
      %v3128 = vadd.f32 %v2807, %v3038
      %v3129 = vadd.f32 %v2812, %v3043
      %v3130 = vadd.f32 %v2817, %v3048
      %v3131 = vadd.f32 %v2822, %v3053
      %v3132 = vadd.f32 %v2827, %v3058
      %v3133 = vadd.f32 %v2832, %v3063
      %v3134 = vadd.f32 %v2837, %v3068
      %v3135 = vadd.f32 %v2842, %v3073
      %v3136 = vadd.f32 %v2847, %v3078
      %v3137 = vadd.f32 %v2852, %v3083
      %v3138 = vadd.f32 %v2857, %v3088
      %v3139 = vadd.f32 %v2862, %v3093
      %v3140 = vadd.f32 %v2867, %v3098
      %v3141 = vadd.f32 %v2872, %v3103
      %v3142 = vadd.f32 %v2877, %v3108
      %v3143 = vsel %vm653, %v3111, 0.0
      %v3144 = vsel %vm653, %v3112, 0.0
      %v3145 = vadd.f32 %v3143, %v3144
      %v3146 = vsel %vm653, %v3113, 0.0
      %v3147 = vadd.f32 %v3145, %v3146
      %v3148 = vsel %vm653, %v3114, 0.0
      %v3149 = vadd.f32 %v3147, %v3148
      %v3150 = vsel %vm653, %v3115, 0.0
      %v3151 = vadd.f32 %v3149, %v3150
      %v3152 = vsel %vm653, %v3116, 0.0
      %v3153 = vadd.f32 %v3151, %v3152
      %v3154 = vsel %vm653, %v3117, 0.0
      %v3155 = vadd.f32 %v3153, %v3154
      %v3156 = vsel %vm653, %v3118, 0.0
      %v3157 = vadd.f32 %v3155, %v3156
      %v3158 = vsel %vm653, %v3119, 0.0
      %v3159 = vadd.f32 %v3157, %v3158
      %v3160 = vsel %vm653, %v3120, 0.0
      %v3161 = vadd.f32 %v3159, %v3160
      %v3162 = vsel %vm653, %v3121, 0.0
      %v3163 = vadd.f32 %v3161, %v3162
      %v3164 = vsel %vm653, %v3122, 0.0
      %v3165 = vadd.f32 %v3163, %v3164
      %v3166 = vsel %vm653, %v3123, 0.0
      %v3167 = vadd.f32 %v3165, %v3166
      %v3168 = vsel %vm653, %v3124, 0.0
      %v3169 = vadd.f32 %v3167, %v3168
      %v3170 = vsel %vm653, %v3125, 0.0
      %v3171 = vadd.f32 %v3169, %v3170
      %v3172 = vsel %vm653, %v3126, 0.0
      %v3173 = vadd.f32 %v3171, %v3172
      %v3174 = vsel %vm653, %v3127, 0.0
      %v3175 = vadd.f32 %v3173, %v3174
      %v3176 = vsel %vm653, %v3128, 0.0
      %v3177 = vadd.f32 %v3175, %v3176
      %v3178 = vsel %vm653, %v3129, 0.0
      %v3179 = vadd.f32 %v3177, %v3178
      %v3180 = vsel %vm653, %v3130, 0.0
      %v3181 = vadd.f32 %v3179, %v3180
      %v3182 = vsel %vm653, %v3131, 0.0
      %v3183 = vadd.f32 %v3181, %v3182
      %v3184 = vsel %vm653, %v3132, 0.0
      %v3185 = vadd.f32 %v3183, %v3184
      %v3186 = vsel %vm653, %v3133, 0.0
      %v3187 = vadd.f32 %v3185, %v3186
      %v3188 = vsel %vm653, %v3134, 0.0
      %v3189 = vadd.f32 %v3187, %v3188
      %v3190 = vsel %vm653, %v3135, 0.0
      %v3191 = vadd.f32 %v3189, %v3190
      %v3192 = vsel %vm653, %v3136, 0.0
      %v3193 = vadd.f32 %v3191, %v3192
      %v3194 = vsel %vm653, %v3137, 0.0
      %v3195 = vadd.f32 %v3193, %v3194
      %v3196 = vsel %vm653, %v3138, 0.0
      %v3197 = vadd.f32 %v3195, %v3196
      %v3198 = vsel %vm653, %v3139, 0.0
      %v3199 = vadd.f32 %v3197, %v3198
      %v3200 = vsel %vm653, %v3140, 0.0
      %v3201 = vadd.f32 %v3199, %v3200
      %v3202 = vsel %vm653, %v3141, 0.0
      %v3203 = vadd.f32 %v3201, %v3202
      %v3204 = vsel %vm653, %v3142, 0.0
      %v3205 = vadd.f32 %v3203, %v3204
      %v3206 = vrot.slane %v3205, 4
      %v3207 = vadd.f32 %v3205, %v3206
      %v3208 = vrot.slane %v3207, 2
      %v3209 = vadd.f32 %v3207, %v3208
      %v3210 = vrot.slane %v3209, 1
      %v3211 = vadd.f32 %v3209, %v3210
      %v3212 = vmul.f32 %v3211, 0.00390625
      %v3213 = vsub.f32 %v3111, %v3212
      %v3214 = vsub.f32 %v3112, %v3212
      %v3215 = vsub.f32 %v3113, %v3212
      %v3216 = vsub.f32 %v3114, %v3212
      %v3217 = vsub.f32 %v3115, %v3212
      %v3218 = vsub.f32 %v3116, %v3212
      %v3219 = vsub.f32 %v3117, %v3212
      %v3220 = vsub.f32 %v3118, %v3212
      %v3221 = vsub.f32 %v3119, %v3212
      %v3222 = vsub.f32 %v3120, %v3212
      %v3223 = vsub.f32 %v3121, %v3212
      %v3224 = vsub.f32 %v3122, %v3212
      %v3225 = vsub.f32 %v3123, %v3212
      %v3226 = vsub.f32 %v3124, %v3212
      %v3227 = vsub.f32 %v3125, %v3212
      %v3228 = vsub.f32 %v3126, %v3212
      %v3229 = vsub.f32 %v3127, %v3212
      %v3230 = vsub.f32 %v3128, %v3212
      %v3231 = vsub.f32 %v3129, %v3212
      %v3232 = vsub.f32 %v3130, %v3212
      %v3233 = vsub.f32 %v3131, %v3212
      %v3234 = vsub.f32 %v3132, %v3212
      %v3235 = vsub.f32 %v3133, %v3212
      %v3236 = vsub.f32 %v3134, %v3212
      %v3237 = vsub.f32 %v3135, %v3212
      %v3238 = vsub.f32 %v3136, %v3212
      %v3239 = vsub.f32 %v3137, %v3212
      %v3240 = vsub.f32 %v3138, %v3212
      %v3241 = vsub.f32 %v3139, %v3212
      %v3242 = vsub.f32 %v3140, %v3212
      %v3243 = vsub.f32 %v3141, %v3212
      %v3244 = vsub.f32 %v3142, %v3212
      %v3245 = vmul.f32 %v3213, %v3213
      %v3246 = vmul.f32 %v3214, %v3214
      %v3247 = vmul.f32 %v3215, %v3215
      %v3248 = vmul.f32 %v3216, %v3216
      %v3249 = vmul.f32 %v3217, %v3217
      %v3250 = vmul.f32 %v3218, %v3218
      %v3251 = vmul.f32 %v3219, %v3219
      %v3252 = vmul.f32 %v3220, %v3220
      %v3253 = vmul.f32 %v3221, %v3221
      %v3254 = vmul.f32 %v3222, %v3222
      %v3255 = vmul.f32 %v3223, %v3223
      %v3256 = vmul.f32 %v3224, %v3224
      %v3257 = vmul.f32 %v3225, %v3225
      %v3258 = vmul.f32 %v3226, %v3226
      %v3259 = vmul.f32 %v3227, %v3227
      %v3260 = vmul.f32 %v3228, %v3228
      %v3261 = vmul.f32 %v3229, %v3229
      %v3262 = vmul.f32 %v3230, %v3230
      %v3263 = vmul.f32 %v3231, %v3231
      %v3264 = vmul.f32 %v3232, %v3232
      %v3265 = vmul.f32 %v3233, %v3233
      %v3266 = vmul.f32 %v3234, %v3234
      %v3267 = vmul.f32 %v3235, %v3235
      %v3268 = vmul.f32 %v3236, %v3236
      %v3269 = vmul.f32 %v3237, %v3237
      %v3270 = vmul.f32 %v3238, %v3238
      %v3271 = vmul.f32 %v3239, %v3239
      %v3272 = vmul.f32 %v3240, %v3240
      %v3273 = vmul.f32 %v3241, %v3241
      %v3274 = vmul.f32 %v3242, %v3242
      %v3275 = vmul.f32 %v3243, %v3243
      %v3276 = vmul.f32 %v3244, %v3244
      %v3277 = vsel %vm653, %v3245, 0.0
      %v3278 = vsel %vm653, %v3246, 0.0
      %v3279 = vadd.f32 %v3277, %v3278
      %v3280 = vsel %vm653, %v3247, 0.0
      %v3281 = vadd.f32 %v3279, %v3280
      %v3282 = vsel %vm653, %v3248, 0.0
      %v3283 = vadd.f32 %v3281, %v3282
      %v3284 = vsel %vm653, %v3249, 0.0
      %v3285 = vadd.f32 %v3283, %v3284
      %v3286 = vsel %vm653, %v3250, 0.0
      %v3287 = vadd.f32 %v3285, %v3286
      %v3288 = vsel %vm653, %v3251, 0.0
      %v3289 = vadd.f32 %v3287, %v3288
      %v3290 = vsel %vm653, %v3252, 0.0
      %v3291 = vadd.f32 %v3289, %v3290
      %v3292 = vsel %vm653, %v3253, 0.0
      %v3293 = vadd.f32 %v3291, %v3292
      %v3294 = vsel %vm653, %v3254, 0.0
      %v3295 = vadd.f32 %v3293, %v3294
      %v3296 = vsel %vm653, %v3255, 0.0
      %v3297 = vadd.f32 %v3295, %v3296
      %v3298 = vsel %vm653, %v3256, 0.0
      %v3299 = vadd.f32 %v3297, %v3298
      %v3300 = vsel %vm653, %v3257, 0.0
      %v3301 = vadd.f32 %v3299, %v3300
      %v3302 = vsel %vm653, %v3258, 0.0
      %v3303 = vadd.f32 %v3301, %v3302
      %v3304 = vsel %vm653, %v3259, 0.0
      %v3305 = vadd.f32 %v3303, %v3304
      %v3306 = vsel %vm653, %v3260, 0.0
      %v3307 = vadd.f32 %v3305, %v3306
      %v3308 = vsel %vm653, %v3261, 0.0
      %v3309 = vadd.f32 %v3307, %v3308
      %v3310 = vsel %vm653, %v3262, 0.0
      %v3311 = vadd.f32 %v3309, %v3310
      %v3312 = vsel %vm653, %v3263, 0.0
      %v3313 = vadd.f32 %v3311, %v3312
      %v3314 = vsel %vm653, %v3264, 0.0
      %v3315 = vadd.f32 %v3313, %v3314
      %v3316 = vsel %vm653, %v3265, 0.0
      %v3317 = vadd.f32 %v3315, %v3316
      %v3318 = vsel %vm653, %v3266, 0.0
      %v3319 = vadd.f32 %v3317, %v3318
      %v3320 = vsel %vm653, %v3267, 0.0
      %v3321 = vadd.f32 %v3319, %v3320
      %v3322 = vsel %vm653, %v3268, 0.0
      %v3323 = vadd.f32 %v3321, %v3322
      %v3324 = vsel %vm653, %v3269, 0.0
      %v3325 = vadd.f32 %v3323, %v3324
      %v3326 = vsel %vm653, %v3270, 0.0
      %v3327 = vadd.f32 %v3325, %v3326
      %v3328 = vsel %vm653, %v3271, 0.0
      %v3329 = vadd.f32 %v3327, %v3328
      %v3330 = vsel %vm653, %v3272, 0.0
      %v3331 = vadd.f32 %v3329, %v3330
      %v3332 = vsel %vm653, %v3273, 0.0
      %v3333 = vadd.f32 %v3331, %v3332
      %v3334 = vsel %vm653, %v3274, 0.0
      %v3335 = vadd.f32 %v3333, %v3334
      %v3336 = vsel %vm653, %v3275, 0.0
      %v3337 = vadd.f32 %v3335, %v3336
      %v3338 = vsel %vm653, %v3276, 0.0
      %v3339 = vadd.f32 %v3337, %v3338
      %v3340 = vrot.slane %v3339, 4
      %v3341 = vadd.f32 %v3339, %v3340
      %v3342 = vrot.slane %v3341, 2
      %v3343 = vadd.f32 %v3341, %v3342
      %v3344 = vrot.slane %v3343, 1
      %v3345 = vadd.f32 %v3343, %v3344
      %v3346 = vmul.f32 %v3345, 0.00390625
      %v3347 = vadd.f32 %v3346, 1e-05
      %v3348 = vrsqrt.pop %v3347
      %v3349 = vmul.f32 %v3213, %v3348
      %v3350 = vmul.f32 %v3214, %v3348
      %v3351 = vmul.f32 %v3215, %v3348
      %v3352 = vmul.f32 %v3216, %v3348
      %v3353 = vmul.f32 %v3217, %v3348
      %v3354 = vmul.f32 %v3218, %v3348
      %v3355 = vmul.f32 %v3219, %v3348
      %v3356 = vmul.f32 %v3220, %v3348
      %v3357 = vmul.f32 %v3221, %v3348
      %v3358 = vmul.f32 %v3222, %v3348
      %v3359 = vmul.f32 %v3223, %v3348
      %v3360 = vmul.f32 %v3224, %v3348
      %v3361 = vmul.f32 %v3225, %v3348
      %v3362 = vmul.f32 %v3226, %v3348
      %v3363 = vmul.f32 %v3227, %v3348
      %v3364 = vmul.f32 %v3228, %v3348
      %v3365 = vmul.f32 %v3229, %v3348
      %v3366 = vmul.f32 %v3230, %v3348
      %v3367 = vmul.f32 %v3231, %v3348
      %v3368 = vmul.f32 %v3232, %v3348
      %v3369 = vmul.f32 %v3233, %v3348
      %v3370 = vmul.f32 %v3234, %v3348
      %v3371 = vmul.f32 %v3235, %v3348
      %v3372 = vmul.f32 %v3236, %v3348
      %v3373 = vmul.f32 %v3237, %v3348
      %v3374 = vmul.f32 %v3238, %v3348
      %v3375 = vmul.f32 %v3239, %v3348
      %v3376 = vmul.f32 %v3240, %v3348
      %v3377 = vmul.f32 %v3241, %v3348
      %v3378 = vmul.f32 %v3242, %v3348
      %v3379 = vmul.f32 %v3243, %v3348
      %v3380 = vmul.f32 %v3244, %v3348
      %v3381 = vadd.f32 %v171, %v3349
      %v3382 = vadd.f32 %v172, %v3350
      %v3383 = vadd.f32 %v173, %v3351
      %v3384 = vadd.f32 %v174, %v3352
      %v3385 = vadd.f32 %v175, %v3353
      %v3386 = vadd.f32 %v176, %v3354
      %v3387 = vadd.f32 %v177, %v3355
      %v3388 = vadd.f32 %v178, %v3356
      %v3389 = vadd.f32 %v179, %v3357
      %v3390 = vadd.f32 %v180, %v3358
      %v3391 = vadd.f32 %v181, %v3359
      %v3392 = vadd.f32 %v182, %v3360
      %v3393 = vadd.f32 %v183, %v3361
      %v3394 = vadd.f32 %v184, %v3362
      %v3395 = vadd.f32 %v185, %v3363
      %v3396 = vadd.f32 %v186, %v3364
      %v3397 = vadd.f32 %v187, %v3365
      %v3398 = vadd.f32 %v188, %v3366
      %v3399 = vadd.f32 %v189, %v3367
      %v3400 = vadd.f32 %v190, %v3368
      %v3401 = vadd.f32 %v191, %v3369
      %v3402 = vadd.f32 %v192, %v3370
      %v3403 = vadd.f32 %v193, %v3371
      %v3404 = vadd.f32 %v194, %v3372
      %v3405 = vadd.f32 %v195, %v3373
      %v3406 = vadd.f32 %v196, %v3374
      %v3407 = vadd.f32 %v197, %v3375
      %v3408 = vadd.f32 %v198, %v3376
      %v3409 = vadd.f32 %v199, %v3377
      %v3410 = vadd.f32 %v200, %v3378
      %v3411 = vadd.f32 %v201, %v3379
      %v3412 = vadd.f32 %v202, %v3380
      %v3413 = vmax.f32 %v3381, 0.0
      %v3414 = vmax.f32 %v3382, 0.0
      %v3415 = vmax.f32 %v3383, 0.0
      %v3416 = vmax.f32 %v3384, 0.0
      %v3417 = vmax.f32 %v3385, 0.0
      %v3418 = vmax.f32 %v3386, 0.0
      %v3419 = vmax.f32 %v3387, 0.0
      %v3420 = vmax.f32 %v3388, 0.0
      %v3421 = vmax.f32 %v3389, 0.0
      %v3422 = vmax.f32 %v3390, 0.0
      %v3423 = vmax.f32 %v3391, 0.0
      %v3424 = vmax.f32 %v3392, 0.0
      %v3425 = vmax.f32 %v3393, 0.0
      %v3426 = vmax.f32 %v3394, 0.0
      %v3427 = vmax.f32 %v3395, 0.0
      %v3428 = vmax.f32 %v3396, 0.0
      %v3429 = vmax.f32 %v3397, 0.0
      %v3430 = vmax.f32 %v3398, 0.0
      %v3431 = vmax.f32 %v3399, 0.0
      %v3432 = vmax.f32 %v3400, 0.0
      %v3433 = vmax.f32 %v3401, 0.0
      %v3434 = vmax.f32 %v3402, 0.0
      %v3435 = vmax.f32 %v3403, 0.0
      %v3436 = vmax.f32 %v3404, 0.0
      %v3437 = vmax.f32 %v3405, 0.0
      %v3438 = vmax.f32 %v3406, 0.0
      %v3439 = vmax.f32 %v3407, 0.0
      %v3440 = vmax.f32 %v3408, 0.0
      %v3441 = vmax.f32 %v3409, 0.0
      %v3442 = vmax.f32 %v3410, 0.0
      %v3443 = vmax.f32 %v3411, 0.0
      %v3444 = vmax.f32 %v3412, 0.0
      %3445 = vst.msk [vmem:[%s170] sm:$0xff] %vm653, %v3413
      %3446 = vst.msk [vmem:[%s170 + $0x8] sm:$0xff] %vm653, %v3414
      %3447 = vst.msk [vmem:[%s170 + $0x10] sm:$0xff] %vm653, %v3415
      %3448 = vst.msk [vmem:[%s170 + $0x18] sm:$0xff] %vm653, %v3416
      %3449 = vst.msk [vmem:[%s170 + $0x20] sm:$0xff] %vm653, %v3417
      %3450 = vst.msk [vmem:[%s170 + $0x28] sm:$0xff] %vm653, %v3418
      %3451 = vst.msk [vmem:[%s170 + $0x30] sm:$0xff] %vm653, %v3419
      %3452 = vst.msk [vmem:[%s170 + $0x38] sm:$0xff] %vm653, %v3420
      %3453 = vst.msk [vmem:[%s170 + $0x40] sm:$0xff] %vm653, %v3421
      %3454 = vst.msk [vmem:[%s170 + $0x48] sm:$0xff] %vm653, %v3422
      %3455 = vst.msk [vmem:[%s170 + $0x50] sm:$0xff] %vm653, %v3423
      %3456 = vst.msk [vmem:[%s170 + $0x58] sm:$0xff] %vm653, %v3424
      %3457 = vst.msk [vmem:[%s170 + $0x60] sm:$0xff] %vm653, %v3425
      %3458 = vst.msk [vmem:[%s170 + $0x68] sm:$0xff] %vm653, %v3426
      %3459 = vst.msk [vmem:[%s170 + $0x70] sm:$0xff] %vm653, %v3427
      %3460 = vst.msk [vmem:[%s170 + $0x78] sm:$0xff] %vm653, %v3428
      %3461 = vst.msk [vmem:[%s170 + $0x80] sm:$0xff] %vm653, %v3429
      %3462 = vst.msk [vmem:[%s170 + $0x88] sm:$0xff] %vm653, %v3430
      %3463 = vst.msk [vmem:[%s170 + $0x90] sm:$0xff] %vm653, %v3431
      %3464 = vst.msk [vmem:[%s170 + $0x98] sm:$0xff] %vm653, %v3432
      %3465 = vst.msk [vmem:[%s170 + $0xa0] sm:$0xff] %vm653, %v3433
      %3466 = vst.msk [vmem:[%s170 + $0xa8] sm:$0xff] %vm653, %v3434
      %3467 = vst.msk [vmem:[%s170 + $0xb0] sm:$0xff] %vm653, %v3435
      %3468 = vst.msk [vmem:[%s170 + $0xb8] sm:$0xff] %vm653, %v3436
      %3469 = vst.msk [vmem:[%s170 + $0xc0] sm:$0xff] %vm653, %v3437
      %3470 = vst.msk [vmem:[%s170 + $0xc8] sm:$0xff] %vm653, %v3438
      %3471 = vst.msk [vmem:[%s170 + $0xd0] sm:$0xff] %vm653, %v3439
      %3472 = vst.msk [vmem:[%s170 + $0xd8] sm:$0xff] %vm653, %v3440
      %3473 = vst.msk [vmem:[%s170 + $0xe0] sm:$0xff] %vm653, %v3441
      %3474 = vst.msk [vmem:[%s170 + $0xe8] sm:$0xff] %vm653, %v3442
      %3475 = vst.msk [vmem:[%s170 + $0xf0] sm:$0xff] %vm653, %v3443
      %3476 = vst.msk [vmem:[%s170 + $0xf8] sm:$0xff] %vm653, %v3444
      %p3477 = scmp.lt.s32.totalorder %s14, 1
      %s3478 = scalar_select %p3477, %s14, 1
      %s3479 = smul.addr %s3478, 32
      %s3480 = smul.addr %s3479, 8
      %s3481 = scalar_lea.vmem %s3, %s3480
      // Predicated region
      $region33: #{res_block.1} parent=31 // pred_check
        %p3482 = pneg %p100
      $region34: #{res_block.1} parent=31 // pred_check_branch
        %3484 = sbr.rel (%p3482) target = $region36
      $region35: #{res_block.1} parent=31 // pred_region
        _
      $region36: #{res_block.1} parent=31 // pred_fallthru
        _
    $region32: #{res_block.1} parent=5 // pred_fallthru
      _
    %p3485 = scmp.le.s32.totalorder 2, %s9
    // Predicated region
    $region37: #{res_block.1} parent=5 // pred_check
      %p3486 = pneg %p3485
    $region38: #{res_block.1} parent=5 // pred_check_branch
      %3488 = sbr.rel (%p3486) target = $region40
    $region39: #{res_block.1} parent=5 // pred_region
      %s3489 = ssub.s32 %s9, 2
      // Predicated region
      $region41: #{res_block.1} parent=39 // pred_check
        %p3490 = pneg %p106
      $region42: #{res_block.1} parent=39 // pred_check_branch
        %3492 = sbr.rel (%p3490) target = $region44
      $region43: #{res_block.1} parent=39 // pred_region
        %p3493 = scmp.lt.s32.totalorder %s15, 1
        %s3494 = scalar_select %p3493, %s15, 1
        %s3495 = smul.addr %s3494, 32
        %s3496 = smul.addr %s3495, 8
        %s3497 = scalar_lea.vmem %s3, %s3496
      $region44: #{res_block.1} parent=39 // pred_fallthru
        _
    $region40: #{res_block.1} parent=5 // pred_fallthru
      _
  $region6: #{res_block.1} parent=0 // loop_footer
    %s13 = sadd.s32 1, %s9
  $region7: #{res_block.1} parent=0 // loop_footer_branch
    %8 = sbr.rel target = $region3
  $region8: #{res_block.1} parent=0 // loop_exit
    _

</llo_original>
